<compile_context>
chip_gen: v7x
topology: tpu7x:2x2x1
jax: 0.10.0
libtpu: 0.0.40
codegen_flags: <defaults>
</compile_context>

<pallas_src>
import functools

import jax
import jax.numpy as jnp
from jax.experimental import pallas as pl
from jax.experimental.pallas import tpu as pltpu


# ----------------------------- Pallas kernel ------------------------------ #

def _conv3x3s2_bn_act_kernel(xm_ref, xh_ref, w_ref, b_ref, o_ref, *,
                             toh, ow, apply_gelu, transpose_out):
    """3x3 / stride-2 / pad-1 conv + folded BN (+ GELU) for one output-row tile.

    xm_ref: (1, toh, 2, OW+1, 2*Cin)  phase-merged input rows of this tile
    xh_ref: (1, 1,   2, OW+1, 2*Cin)  one-row halo (kh=2 taps of the last row)
    w_ref : (3, 2*Cin, 2*Cout)        conv weight with BN scale folded in (bf16);
                                      last axis = [shift-0 weights | shift-1 weights]
    b_ref : (1, Cout)                 folded BN bias (f32)
    o_ref : (1, toh*OW, Cout)         if not transpose_out  (NHWC, flat spatial)
            (1, Cout, toh*OW)         if transpose_out      (NCHW, lane-dense)
    """
    xm = xm_ref[0]                                    # (toh, 2, OW+1, 2C)
    xh = xh_ref[0]                                    # (1,   2, OW+1, 2C)
    w_all = w_ref[...]                                # (3, 2C, 2*Cout), resident
    cout = b_ref.shape[-1]

    # Row phases: kh=0 -> even rows, kh=1 -> odd rows, kh=2 -> even rows shifted
    # down by one output row (last one comes from the halo block).
    r0 = xm[:, 0]                                     # (toh, OW+1, 2C)
    r1 = xm[:, 1]
    if toh > 1:
        r2 = jnp.concatenate([xm[1:, 0], xh[:, 0]], axis=0)
    else:
        r2 = xh[:, 0]

    npair = r0.shape[1]                               # OW + 1 column pairs
    cin2 = r0.shape[-1]
    m = toh * ow

    # One matmul per kernel row tap; the two column-pair shifts are packed into
    # the N axis of the weights, then recombined with a shifted slice + add.
    acc = jnp.zeros((toh, ow, cout), jnp.float32)
    for kh, rows in enumerate((r0, r1, r2)):
        a = rows.reshape(toh * npair, cin2)
        y = jnp.dot(a, w_all[kh], preferred_element_type=jnp.float32)
        y = y.reshape(toh, npair, 2 * cout)
        acc = acc + y[:, :ow, :cout] + y[:, 1:, cout:]

    out = acc.reshape(m, cout) + b_ref[...]           # (m, Cout), f32 epilogue
    if apply_gelu:                                    # exact erf GELU (torch default)
        out = 0.5 * out * (1.0 + jax.lax.erf(out * 0.7071067811865476))

    if transpose_out:
        o_ref[0] = out.T.astype(o_ref.dtype)          # lane-dense [Cout, m] store
    else:
        o_ref[0] = out.astype(o_ref.dtype)


# ------------------------------ wrappers ----------------------------------- #

def _pick_row_tile(oh, ow, row_bytes, *, lane_dense, out_itemsize,
                   target_bytes, max_rows=None):
    """Largest divisor of `oh` whose double-buffered tile fits the byte budget."""
    sublane = max(8, 32 // out_itemsize)              # 8 rows (f32) / 16 (bf16)

    def ok(d):
        if d == oh:                                   # full extent: always legal
            return True
        m = d * ow
        return (m % 128 == 0) if lane_dense else (m % sublane == 0)

    valid = [d for d in range(1, oh + 1) if oh % d == 0 and ok(d)]
    capped = [d for d in valid if max_rows is None or d <= max_rows] or valid
    fitting = [d for d in capped if d * row_bytes <= target_bytes]
    return max(fitting) if fitting else min(capped)


def conv3x3s2_bn_act(x_nhwc, wcat, bias, *, apply_gelu, transpose_out,
                     out_dtype, compute_dtype=jnp.bfloat16,
                     max_row_tile=None, vmem_target_bytes=3 * 1024 * 1024):
    """Conv2d(3,3,stride=2,pad=1,bias=False) + folded BN (+ GELU) on NHWC input."""
    B, H, W, C = x_nhwc.shape
    OH, OW = (H + 1) // 2, (W + 1) // 2
    cout = wcat.shape[-1] // 2

    # Pad 1px top/left plus enough bottom/right to make both spatial dims equal
    # 2*(OH+1) / 2*(OW+1), then fold the 2x2 pixel phases into the row-parity
    # and channel dims.  The reshape is a free (contiguous) relabeling.
    Hp, Wp = 2 * (OH + 1), 2 * (OW + 1)
    xp = jnp.pad(x_nhwc.astype(compute_dtype),
                 ((0, 0), (1, Hp - 1 - H), (1, Wp - 1 - W), (0, 0)))
    xm = xp.reshape(B, OH + 1, 2, OW + 1, 2 * C)

    in_b = jnp.dtype(compute_dtype).itemsize
    out_b = jnp.dtype(out_dtype).itemsize
    # per-output-row bytes: pipelined input + output tiles, plus the live f32
    # accumulator / matmul result held in vregs / spilled VMEM.
    row_bytes = (2 * (OW + 1) * 2 * C * in_b
                 + OW * cout * out_b
                 + OW * cout * 4 + (OW + 1) * 2 * cout * 4)
    toh = _pick_row_tile(OH, OW, row_bytes, lane_dense=transpose_out,
                         out_itemsize=out_b, target_bytes=vmem_target_bytes,
                         max_rows=max_row_tile)
    n_row_tiles = OH // toh

    kernel = functools.partial(_conv3x3s2_bn_act_kernel, toh=toh, ow=OW,
                               apply_gelu=apply_gelu,
                               transpose_out=transpose_out)

    if transpose_out:   # final layer: lane-dense stores, yields NCHW directly
        out_shape = jax.ShapeDtypeStruct((B, cout, OH * OW), out_dtype)
        out_spec = pl.BlockSpec((1, cout, toh * OW), lambda b, r: (b, 0, r))
    else:               # intermediate layer: NHWC with flattened spatial dim
        out_shape = jax.ShapeDtypeStruct((B, OH * OW, cout), out_dtype)
        out_spec = pl.BlockSpec((1, toh * OW, cout), lambda b, r: (b, r, 0))

    y = pl.pallas_call(
        kernel,
        out_shape=out_shape,
        grid=(B, n_row_tiles),
        in_specs=[
            # main row stripe of the tile (input rows 2*oh, 2*oh+1)
            pl.BlockSpec((1, toh, 2, OW + 1, 2 * C),
                         lambda b, r: (b, r, 0, 0, 0)),
            # one-row halo (input rows 2*oh+2 of the tile's last output row)
            pl.BlockSpec((1, 1, 2, OW + 1, 2 * C),
                         lambda b, r: (b, (r + 1) * toh, 0, 0, 0)),
            # weights / bias have constant index maps -> stay resident in VMEM
            pl.BlockSpec(wcat.shape, lambda b, r: (0, 0, 0)),
            pl.BlockSpec(bias.shape, lambda b, r: (0, 0)),
        ],
        out_specs=out_spec,
        compiler_params=pltpu.CompilerParams(
            dimension_semantics=("parallel", "parallel"),
            vmem_limit_bytes=32 * 1024 * 1024),
    )(xm, xm, wcat, bias)
    return y, (OH, OW)


# ------------------------------ parameters --------------------------------- #

def _fold_conv_bn(w_oihw, gamma, beta, mean, var, *, eps, compute_dtype):
    """Fold eval-mode BN into the conv weight, phase-merged + shift-packed layout."""
    cout, cin = w_oihw.shape[0], w_oihw.shape[1]
    scale = gamma / jnp.sqrt(var + eps)
    bias = (beta - mean * scale).astype(jnp.float32).reshape(1, cout)
    w = (w_oihw * scale[:, None, None, None]).astype(jnp.float32)
    w = jnp.transpose(w, (2, 3, 1, 0))                        # (3, 3, Cin, Cout)
    w_s0 = jnp.concatenate([w[:, 0], w[:, 1]], axis=1)        # taps kw=0, kw=1
    w_s1 = jnp.concatenate([w[:, 2],
                            jnp.zeros((3, cin, cout), w.dtype)], axis=1)  # kw=2
    wcat = jnp.concatenate([w_s0, w_s1], axis=-1)             # (3, 2*Cin, 2*Cout)
    return wcat.astype(compute_dtype), bias


def init_params(key, in_chans, embed_dim, dtype=jnp.float32):
    """Synthetic PatchEmbed parameters (conv weights + eval-mode BN statistics)."""
    n = embed_dim
    k = jax.random.split(key, 10)

    def bn_stats(c, k0, k1, k2, k3):
        return dict(gamma=1.0 + 0.1 * jax.random.normal(k0, (c,), dtype),
                    beta=0.1 * jax.random.normal(k1, (c,), dtype),
                    mean=0.1 * jax.random.normal(k2, (c,), dtype),
                    var=1.0 + 0.1 * jax.random.uniform(k3, (c,), dtype))

    return dict(
        w1=0.02 * jax.random.normal(k[0], (n // 2, in_chans, 3, 3), dtype),
        bn1=bn_stats(n // 2, k[1], k[2], k[3], k[4]),
        w2=0.02 * jax.random.normal(k[5], (n, n // 2, 3, 3), dtype),
        bn2=bn_stats(n, k[6], k[7], k[8], k[9]),
    )


def prepare_params(raw, *, eps=1e-5, compute_dtype=jnp.bfloat16):
    w1, b1 = _fold_conv_bn(raw["w1"], raw["bn1"]["gamma"], raw["bn1"]["beta"],
                           raw["bn1"]["mean"], raw["bn1"]["var"],
                           eps=eps, compute_dtype=compute_dtype)
    w2, b2 = _fold_conv_bn(raw["w2"], raw["bn2"]["gamma"], raw["bn2"]["beta"],
                           raw["bn2"]["mean"], raw["bn2"]["var"],
                           eps=eps, compute_dtype=compute_dtype)
    return dict(w1=w1, b1=b1, w2=w2, b2=b2)


# ------------------------------ forward pass ------------------------------- #

def patch_embed_forward(x_nchw, params, *, compute_dtype=jnp.bfloat16,
                        max_row_tile=None):
    """PatchEmbed.forward: NCHW in -> NCHW [B, embed_dim, H//4, W//4] out."""
    B = x_nchw.shape[0]
    x = jnp.transpose(x_nchw, (0, 2, 3, 1))           # NCHW -> NHWC (chans on lanes)

    # Conv2d_BN(in_chans, n//2, 3, 2, 1) + GELU; intermediate stays bf16 NHWC.
    y1, (oh1, ow1) = conv3x3s2_bn_act(
        x, params["w1"], params["b1"], apply_gelu=True, transpose_out=False,
        out_dtype=compute_dtype, compute_dtype=compute_dtype,
        max_row_tile=max_row_tile)
    y1 = y1.reshape(B, oh1, ow1, -1)

    # Conv2d_BN(n//2, n, 3, 2, 1); kernel emits lane-dense NCHW output directly.
    y2, (oh2, ow2) = conv3x3s2_bn_act(
        y1, params["w2"], params["b2"], apply_gelu=False, transpose_out=True,
        out_dtype=jnp.float32, compute_dtype=compute_dtype,
        max_row_tile=max_row_tile)
    return y2.reshape(B, -1, oh2, ow2)


# ---------------------------- pure-JAX reference --------------------------- #

def reference_forward(x_nchw, raw, eps=1e-5):
    def conv_bn(x, w, bn):
        y = jax.lax.conv_general_dilated(
            x, w, window_strides=(2, 2), padding=((1, 1), (1, 1)),
            dimension_numbers=("NCHW", "OIHW", "NCHW"),
            precision=jax.lax.Precision.HIGHEST)
        scale = bn["gamma"] / jnp.sqrt(bn["var"] + eps)
        bias = bn["beta"] - bn["mean"] * scale
        return y * scale[None, :, None, None] + bias[None, :, None, None]

    y = conv_bn(x_nchw, raw["w1"], raw["bn1"])
    y = 0.5 * y * (1.0 + jax.lax.erf(y * 0.7071067811865476))
    return conv_bn(y, raw["w2"], raw["bn2"])


# --------------------------------- main ------------------------------------ #

if __name__ == "__main__":
    B, in_chans, resolution, embed_dim = 2, 4, 16, 32

    key = jax.random.PRNGKey(0)
    kx, kp = jax.random.split(key)
    x = jax.random.normal(kx, (B, in_chans, resolution, resolution), jnp.float32)

    raw = init_params(kp, in_chans, embed_dim)
    params = prepare_params(raw)

    # max_row_tile=4 forces a multi-tile grid even at this toy size so the
    # halo / pipelined path is exercised; at SAM sizes the tiler picks ~16-32 rows.
    fwd = jax.jit(functools.partial(patch_embed_forward, max_row_tile=4))
    out = jax.block_until_ready(fwd(x, params))

    expected_shape = (B, embed_dim, resolution // 4, resolution // 4)
    assert out.shape == expected_shape, (out.shape, expected_shape)
    assert out.dtype == jnp.float32

    ref = jax.block_until_ready(jax.jit(reference_forward)(x, raw))
    max_err = float(jnp.max(jnp.abs(out - ref)))
    assert max_err < 5e-3, f"mismatch vs reference: max abs err {max_err}"

    print("KERNEL_OK")
</pallas_src>

<mosaic_0001>
module attributes {stable_mosaic.version = 11 : i64} {
  func.func @_conv3x3s2_bn_act_kernel(%arg0: i32, %arg1: i32, %arg2: memref<1x4x2x9x8xbf16, #tpu.memory_space<vmem>>, %arg3: memref<1x1x2x9x8xbf16, #tpu.memory_space<vmem>>, %arg4: memref<3x8x32xbf16, #tpu.memory_space<vmem>>, %arg5: memref<1x16xf32, #tpu.memory_space<vmem>>, %arg6: memref<1x32x16xbf16, #tpu.memory_space<vmem>>) attributes {dimension_semantics = [#tpu.dimension_semantics<parallel>, #tpu.dimension_semantics<parallel>], iteration_bounds = array<i64: 2, 2>, scalar_prefetch = 0 : i64, scratch_operands = 0 : i64, tpu.core_type = #tpu.core_type<tc>, window_params = [{transform_indices = @transform_0, window_bounds = array<i64: 1, 4, 2, 9, 8>}, {transform_indices = @transform_1, window_bounds = array<i64: 1, 1, 2, 9, 8>}, {pipeline_mode = #tpu.pipeline_mode<synchronous>, transform_indices = @transform_2, window_bounds = array<i64: 3, 8, 32>}, {pipeline_mode = #tpu.pipeline_mode<synchronous>, transform_indices = @transform_3, window_bounds = array<i64: 1, 16>}, {transform_indices = @transform_4, window_bounds = array<i64: 1, 32, 16>}]} {
    %c0 = arith.constant 0 : index
    %c0_0 = arith.constant 0 : index
    %c0_1 = arith.constant 0 : index
    %c0_2 = arith.constant 0 : index
    %c0_3 = arith.constant 0 : index
    %0 = vector.load %arg2[%c0, %c0_0, %c0_1, %c0_2, %c0_3] : memref<1x4x2x9x8xbf16, #tpu.memory_space<vmem>>, vector<1x4x2x9x8xbf16>
    %1 = vector.shape_cast %0 : vector<1x4x2x9x8xbf16> to vector<4x2x9x8xbf16>
    %c0_4 = arith.constant 0 : index
    %c0_5 = arith.constant 0 : index
    %c0_6 = arith.constant 0 : index
    %c0_7 = arith.constant 0 : index
    %c0_8 = arith.constant 0 : index
    %2 = vector.load %arg3[%c0_4, %c0_5, %c0_6, %c0_7, %c0_8] : memref<1x1x2x9x8xbf16, #tpu.memory_space<vmem>>, vector<1x1x2x9x8xbf16>
    %3 = vector.shape_cast %2 : vector<1x1x2x9x8xbf16> to vector<1x2x9x8xbf16>
    %c0_9 = arith.constant 0 : index
    %c0_10 = arith.constant 0 : index
    %c0_11 = arith.constant 0 : index
    %4 = vector.load %arg4[%c0_9, %c0_10, %c0_11] : memref<3x8x32xbf16, #tpu.memory_space<vmem>>, vector<3x8x32xbf16>
    %5 = vector.extract_strided_slice %1 {offsets = [0, 0, 0, 0], sizes = [4, 1, 9, 8], strides = [1, 1, 1, 1]} : vector<4x2x9x8xbf16> to vector<4x1x9x8xbf16>
    %6 = vector.shape_cast %5 : vector<4x1x9x8xbf16> to vector<4x9x8xbf16>
    %7 = vector.extract_strided_slice %1 {offsets = [0, 1, 0, 0], sizes = [4, 1, 9, 8], strides = [1, 1, 1, 1]} : vector<4x2x9x8xbf16> to vector<4x1x9x8xbf16>
    %8 = vector.shape_cast %7 : vector<4x1x9x8xbf16> to vector<4x9x8xbf16>
    %9 = vector.extract_strided_slice %1 {offsets = [1, 0, 0, 0], sizes = [3, 1, 9, 8], strides = [1, 1, 1, 1]} : vector<4x2x9x8xbf16> to vector<3x1x9x8xbf16>
    %10 = vector.shape_cast %9 : vector<3x1x9x8xbf16> to vector<3x9x8xbf16>
    %11 = vector.extract_strided_slice %3 {offsets = [0, 0, 0, 0], sizes = [1, 1, 9, 8], strides = [1, 1, 1, 1]} : vector<1x2x9x8xbf16> to vector<1x1x9x8xbf16>
    %12 = vector.shape_cast %11 : vector<1x1x9x8xbf16> to vector<1x9x8xbf16>
    %13 = tpu.concatenate %10, %12 in 0 : vector<3x9x8xbf16>, vector<1x9x8xbf16> -> vector<4x9x8xbf16>
    %cst = arith.constant 0.000000e+00 : f32
    %14 = vector.broadcast %cst : f32 to vector<4x8x16xf32>
    %15 = vector.shape_cast %6 : vector<4x9x8xbf16> to vector<36x8xbf16>
    %16 = vector.extract_strided_slice %4 {offsets = [0, 0, 0], sizes = [1, 8, 32], strides = [1, 1, 1]} : vector<3x8x32xbf16> to vector<1x8x32xbf16>
    %17 = vector.shape_cast %16 : vector<1x8x32xbf16> to vector<8x32xbf16>
    %cst_12 = arith.constant dense<0.000000e+00> : vector<36x32xf32>
    %18 = tpu.matmul %15, %17, %cst_12 {dimension_numbers = #tpu.dot_dimension_numbers<[1], [0], [0], [1], [0, 0, 1, 1], [], []>} : vector<36x8xbf16>, vector<8x32xbf16>, vector<36x32xf32> -> vector<36x32xf32>
    %19 = vector.shape_cast %18 : vector<36x32xf32> to vector<4x9x32xf32>
    %20 = vector.extract_strided_slice %19 {offsets = [0, 0, 0], sizes = [4, 8, 16], strides = [1, 1, 1]} : vector<4x9x32xf32> to vector<4x8x16xf32>
    %21 = arith.addf %14, %20 : vector<4x8x16xf32>
    %22 = vector.extract_strided_slice %19 {offsets = [0, 1, 16], sizes = [4, 8, 16], strides = [1, 1, 1]} : vector<4x9x32xf32> to vector<4x8x16xf32>
    %23 = arith.addf %21, %22 : vector<4x8x16xf32>
    %24 = vector.shape_cast %8 : vector<4x9x8xbf16> to vector<36x8xbf16>
    %25 = vector.extract_strided_slice %4 {offsets = [1, 0, 0], sizes = [1, 8, 32], strides = [1, 1, 1]} : vector<3x8x32xbf16> to vector<1x8x32xbf16>
    %26 = vector.shape_cast %25 : vector<1x8x32xbf16> to vector<8x32xbf16>
    %cst_13 = arith.constant dense<0.000000e+00> : vector<36x32xf32>
    %27 = tpu.matmul %24, %26, %cst_13 {dimension_numbers = #tpu.dot_dimension_numbers<[1], [0], [0], [1], [0, 0, 1, 1], [], []>} : vector<36x8xbf16>, vector<8x32xbf16>, vector<36x32xf32> -> vector<36x32xf32>
    %28 = vector.shape_cast %27 : vector<36x32xf32> to vector<4x9x32xf32>
    %29 = vector.extract_strided_slice %28 {offsets = [0, 0, 0], sizes = [4, 8, 16], strides = [1, 1, 1]} : vector<4x9x32xf32> to vector<4x8x16xf32>
    %30 = arith.addf %23, %29 : vector<4x8x16xf32>
    %31 = vector.extract_strided_slice %28 {offsets = [0, 1, 16], sizes = [4, 8, 16], strides = [1, 1, 1]} : vector<4x9x32xf32> to vector<4x8x16xf32>
    %32 = arith.addf %30, %31 : vector<4x8x16xf32>
    %33 = vector.shape_cast %13 : vector<4x9x8xbf16> to vector<36x8xbf16>
    %34 = vector.extract_strided_slice %4 {offsets = [2, 0, 0], sizes = [1, 8, 32], strides = [1, 1, 1]} : vector<3x8x32xbf16> to vector<1x8x32xbf16>
    %35 = vector.shape_cast %34 : vector<1x8x32xbf16> to vector<8x32xbf16>
    %cst_14 = arith.constant dense<0.000000e+00> : vector<36x32xf32>
    %36 = tpu.matmul %33, %35, %cst_14 {dimension_numbers = #tpu.dot_dimension_numbers<[1], [0], [0], [1], [0, 0, 1, 1], [], []>} : vector<36x8xbf16>, vector<8x32xbf16>, vector<36x32xf32> -> vector<36x32xf32>
    %37 = vector.shape_cast %36 : vector<36x32xf32> to vector<4x9x32xf32>
    %38 = vector.extract_strided_slice %37 {offsets = [0, 0, 0], sizes = [4, 8, 16], strides = [1, 1, 1]} : vector<4x9x32xf32> to vector<4x8x16xf32>
    %39 = arith.addf %32, %38 : vector<4x8x16xf32>
    %40 = vector.extract_strided_slice %37 {offsets = [0, 1, 16], sizes = [4, 8, 16], strides = [1, 1, 1]} : vector<4x9x32xf32> to vector<4x8x16xf32>
    %41 = arith.addf %39, %40 : vector<4x8x16xf32>
    %42 = vector.shape_cast %41 : vector<4x8x16xf32> to vector<32x16xf32>
    %c0_15 = arith.constant 0 : index
    %c0_16 = arith.constant 0 : index
    %43 = vector.load %arg5[%c0_15, %c0_16] : memref<1x16xf32, #tpu.memory_space<vmem>>, vector<1x16xf32>
    %44 = vector.broadcast %43 : vector<1x16xf32> to vector<32x16xf32>
    %45 = arith.addf %42, %44 : vector<32x16xf32>
    %cst_17 = arith.constant 5.000000e-01 : f32
    %46 = vector.broadcast %cst_17 : f32 to vector<32x16xf32>
    %47 = arith.mulf %46, %45 : vector<32x16xf32>
    %cst_18 = arith.constant 0.707106769 : f32
    %48 = vector.broadcast %cst_18 : f32 to vector<32x16xf32>
    %49 = arith.mulf %45, %48 : vector<32x16xf32>
    %50 = math.erf %49 : vector<32x16xf32>
    %cst_19 = arith.constant 1.000000e+00 : f32
    %51 = vector.broadcast %cst_19 : f32 to vector<32x16xf32>
    %52 = arith.addf %51, %50 : vector<32x16xf32>
    %53 = arith.mulf %47, %52 : vector<32x16xf32>
    %54 = arith.truncf %53 : vector<32x16xf32> to vector<32x16xbf16>
    %c0_20 = arith.constant 0 : index
    %c0_21 = arith.constant 0 : index
    %c0_22 = arith.constant 0 : index
    %55 = vector.load %arg6[%c0_20, %c0_21, %c0_22] : memref<1x32x16xbf16, #tpu.memory_space<vmem>>, vector<1x32x16xbf16>
    %56 = vector.shape_cast %55 : vector<1x32x16xbf16> to vector<32x16xbf16>
    %57 = vector.shape_cast %54 : vector<32x16xbf16> to vector<1x32x16xbf16>
    tpu.vector_store %arg6[%c0_20, %c0_21, %c0_22], %57 {strides = array<i32>} : memref<1x32x16xbf16, #tpu.memory_space<vmem>>, vector<1x32x16xbf16>,
    return
  }
  func.func @transform_0(%arg0: i32, %arg1: i32) -> (i32, i32, i32, i32, i32) {
    %c0_i32 = arith.constant 0 : i32
    %c0_i32_0 = arith.constant 0 : i32
    %c0_i32_1 = arith.constant 0 : i32
    %c0_i32_2 = arith.constant 0 : i32
    return %arg0, %arg1, %c0_i32, %c0_i32_0, %c0_i32_1 : i32, i32, i32, i32, i32
  }
  func.func @transform_1(%arg0: i32, %arg1: i32) -> (i32, i32, i32, i32, i32) {
    %c1_i32 = arith.constant 1 : i32
    %0 = arith.addi %arg1, %c1_i32 : i32
    %c4_i32 = arith.constant 4 : i32
    %1 = arith.muli %0, %c4_i32 : i32
    %c0_i32 = arith.constant 0 : i32
    %c0_i32_0 = arith.constant 0 : i32
    %c0_i32_1 = arith.constant 0 : i32
    %c0_i32_2 = arith.constant 0 : i32
    return %arg0, %1, %c0_i32, %c0_i32_0, %c0_i32_1 : i32, i32, i32, i32, i32
  }
  func.func @transform_2(%arg0: i32, %arg1: i32) -> (i32, i32, i32) {
    %c0_i32 = arith.constant 0 : i32
    %c0_i32_0 = arith.constant 0 : i32
    %c0_i32_1 = arith.constant 0 : i32
    %c0_i32_2 = arith.constant 0 : i32
    return %c0_i32, %c0_i32_0, %c0_i32_1 : i32, i32, i32
  }
  func.func @transform_3(%arg0: i32, %arg1: i32) -> (i32, i32) {
    %c0_i32 = arith.constant 0 : i32
    %c0_i32_0 = arith.constant 0 : i32
    %c0_i32_1 = arith.constant 0 : i32
    return %c0_i32, %c0_i32_0 : i32, i32
  }
  func.func @transform_4(%arg0: i32, %arg1: i32) -> (i32, i32, i32) {
    %c0_i32 = arith.constant 0 : i32
    %c0_i32_0 = arith.constant 0 : i32
    return %arg0, %arg1, %c0_i32 : i32, i32, i32
  }
}

module attributes {stable_mosaic.version = 11 : i64} {
  func.func @_conv3x3s2_bn_act_kernel(%arg0: i32, %arg1: i32, %arg2: memref<1x4x2x5x32xbf16, #tpu.memory_space<vmem>>, %arg3: memref<1x1x2x5x32xbf16, #tpu.memory_space<vmem>>, %arg4: memref<3x32x64xbf16, #tpu.memory_space<vmem>>, %arg5: memref<1x32xf32, #tpu.memory_space<vmem>>, %arg6: memref<1x32x16xf32, #tpu.memory_space<vmem>>) attributes {dimension_semantics = [#tpu.dimension_semantics<parallel>, #tpu.dimension_semantics<parallel>], iteration_bounds = array<i64: 2, 1>, scalar_prefetch = 0 : i64, scratch_operands = 0 : i64, tpu.core_type = #tpu.core_type<tc>, window_params = [{transform_indices = @transform_0, window_bounds = array<i64: 1, 4, 2, 5, 32>}, {transform_indices = @transform_1, window_bounds = array<i64: 1, 1, 2, 5, 32>}, {pipeline_mode = #tpu.pipeline_mode<synchronous>, transform_indices = @transform_2, window_bounds = array<i64: 3, 32, 64>}, {pipeline_mode = #tpu.pipeline_mode<synchronous>, transform_indices = @transform_3, window_bounds = array<i64: 1, 32>}, {transform_indices = @transform_4, window_bounds = array<i64: 1, 32, 16>}]} {
    %c0 = arith.constant 0 : index
    %c0_0 = arith.constant 0 : index
    %c0_1 = arith.constant 0 : index
    %c0_2 = arith.constant 0 : index
    %c0_3 = arith.constant 0 : index
    %0 = vector.load %arg2[%c0, %c0_0, %c0_1, %c0_2, %c0_3] : memref<1x4x2x5x32xbf16, #tpu.memory_space<vmem>>, vector<1x4x2x5x32xbf16>
    %1 = vector.shape_cast %0 : vector<1x4x2x5x32xbf16> to vector<4x2x5x32xbf16>
    %c0_4 = arith.constant 0 : index
    %c0_5 = arith.constant 0 : index
    %c0_6 = arith.constant 0 : index
    %c0_7 = arith.constant 0 : index
    %c0_8 = arith.constant 0 : index
    %2 = vector.load %arg3[%c0_4, %c0_5, %c0_6, %c0_7, %c0_8] : memref<1x1x2x5x32xbf16, #tpu.memory_space<vmem>>, vector<1x1x2x5x32xbf16>
    %3 = vector.shape_cast %2 : vector<1x1x2x5x32xbf16> to vector<1x2x5x32xbf16>
    %c0_9 = arith.constant 0 : index
    %c0_10 = arith.constant 0 : index
    %c0_11 = arith.constant 0 : index
    %4 = vector.load %arg4[%c0_9, %c0_10, %c0_11] : memref<3x32x64xbf16, #tpu.memory_space<vmem>>, vector<3x32x64xbf16>
    %5 = vector.extract_strided_slice %1 {offsets = [0, 0, 0, 0], sizes = [4, 1, 5, 32], strides = [1, 1, 1, 1]} : vector<4x2x5x32xbf16> to vector<4x1x5x32xbf16>
    %6 = vector.shape_cast %5 : vector<4x1x5x32xbf16> to vector<4x5x32xbf16>
    %7 = vector.extract_strided_slice %1 {offsets = [0, 1, 0, 0], sizes = [4, 1, 5, 32], strides = [1, 1, 1, 1]} : vector<4x2x5x32xbf16> to vector<4x1x5x32xbf16>
    %8 = vector.shape_cast %7 : vector<4x1x5x32xbf16> to vector<4x5x32xbf16>
    %9 = vector.extract_strided_slice %1 {offsets = [1, 0, 0, 0], sizes = [3, 1, 5, 32], strides = [1, 1, 1, 1]} : vector<4x2x5x32xbf16> to vector<3x1x5x32xbf16>
    %10 = vector.shape_cast %9 : vector<3x1x5x32xbf16> to vector<3x5x32xbf16>
    %11 = vector.extract_strided_slice %3 {offsets = [0, 0, 0, 0], sizes = [1, 1, 5, 32], strides = [1, 1, 1, 1]} : vector<1x2x5x32xbf16> to vector<1x1x5x32xbf16>
    %12 = vector.shape_cast %11 : vector<1x1x5x32xbf16> to vector<1x5x32xbf16>
    %13 = tpu.concatenate %10, %12 in 0 : vector<3x5x32xbf16>, vector<1x5x32xbf16> -> vector<4x5x32xbf16>
    %cst = arith.constant 0.000000e+00 : f32
    %14 = vector.broadcast %cst : f32 to vector<4x4x32xf32>
    %15 = vector.shape_cast %6 : vector<4x5x32xbf16> to vector<20x32xbf16>
    %16 = vector.extract_strided_slice %4 {offsets = [0, 0, 0], sizes = [1, 32, 64], strides = [1, 1, 1]} : vector<3x32x64xbf16> to vector<1x32x64xbf16>
    %17 = vector.shape_cast %16 : vector<1x32x64xbf16> to vector<32x64xbf16>
    %cst_12 = arith.constant dense<0.000000e+00> : vector<20x64xf32>
    %18 = tpu.matmul %15, %17, %cst_12 {dimension_numbers = #tpu.dot_dimension_numbers<[1], [0], [0], [1], [0, 0, 1, 1], [], []>} : vector<20x32xbf16>, vector<32x64xbf16>, vector<20x64xf32> -> vector<20x64xf32>
    %19 = vector.shape_cast %18 : vector<20x64xf32> to vector<4x5x64xf32>
    %20 = vector.extract_strided_slice %19 {offsets = [0, 0, 0], sizes = [4, 4, 32], strides = [1, 1, 1]} : vector<4x5x64xf32> to vector<4x4x32xf32>
    %21 = arith.addf %14, %20 : vector<4x4x32xf32>
    %22 = vector.extract_strided_slice %19 {offsets = [0, 1, 32], sizes = [4, 4, 32], strides = [1, 1, 1]} : vector<4x5x64xf32> to vector<4x4x32xf32>
    %23 = arith.addf %21, %22 : vector<4x4x32xf32>
    %24 = vector.shape_cast %8 : vector<4x5x32xbf16> to vector<20x32xbf16>
    %25 = vector.extract_strided_slice %4 {offsets = [1, 0, 0], sizes = [1, 32, 64], strides = [1, 1, 1]} : vector<3x32x64xbf16> to vector<1x32x64xbf16>
    %26 = vector.shape_cast %25 : vector<1x32x64xbf16> to vector<32x64xbf16>
    %cst_13 = arith.constant dense<0.000000e+00> : vector<20x64xf32>
    %27 = tpu.matmul %24, %26, %cst_13 {dimension_numbers = #tpu.dot_dimension_numbers<[1], [0], [0], [1], [0, 0, 1, 1], [], []>} : vector<20x32xbf16>, vector<32x64xbf16>, vector<20x64xf32> -> vector<20x64xf32>
    %28 = vector.shape_cast %27 : vector<20x64xf32> to vector<4x5x64xf32>
    %29 = vector.extract_strided_slice %28 {offsets = [0, 0, 0], sizes = [4, 4, 32], strides = [1, 1, 1]} : vector<4x5x64xf32> to vector<4x4x32xf32>
    %30 = arith.addf %23, %29 : vector<4x4x32xf32>
    %31 = vector.extract_strided_slice %28 {offsets = [0, 1, 32], sizes = [4, 4, 32], strides = [1, 1, 1]} : vector<4x5x64xf32> to vector<4x4x32xf32>
    %32 = arith.addf %30, %31 : vector<4x4x32xf32>
    %33 = vector.shape_cast %13 : vector<4x5x32xbf16> to vector<20x32xbf16>
    %34 = vector.extract_strided_slice %4 {offsets = [2, 0, 0], sizes = [1, 32, 64], strides = [1, 1, 1]} : vector<3x32x64xbf16> to vector<1x32x64xbf16>
    %35 = vector.shape_cast %34 : vector<1x32x64xbf16> to vector<32x64xbf16>
    %cst_14 = arith.constant dense<0.000000e+00> : vector<20x64xf32>
    %36 = tpu.matmul %33, %35, %cst_14 {dimension_numbers = #tpu.dot_dimension_numbers<[1], [0], [0], [1], [0, 0, 1, 1], [], []>} : vector<20x32xbf16>, vector<32x64xbf16>, vector<20x64xf32> -> vector<20x64xf32>
    %37 = vector.shape_cast %36 : vector<20x64xf32> to vector<4x5x64xf32>
    %38 = vector.extract_strided_slice %37 {offsets = [0, 0, 0], sizes = [4, 4, 32], strides = [1, 1, 1]} : vector<4x5x64xf32> to vector<4x4x32xf32>
    %39 = arith.addf %32, %38 : vector<4x4x32xf32>
    %40 = vector.extract_strided_slice %37 {offsets = [0, 1, 32], sizes = [4, 4, 32], strides = [1, 1, 1]} : vector<4x5x64xf32> to vector<4x4x32xf32>
    %41 = arith.addf %39, %40 : vector<4x4x32xf32>
    %42 = vector.shape_cast %41 : vector<4x4x32xf32> to vector<16x32xf32>
    %c0_15 = arith.constant 0 : index
    %c0_16 = arith.constant 0 : index
    %43 = vector.load %arg5[%c0_15, %c0_16] : memref<1x32xf32, #tpu.memory_space<vmem>>, vector<1x32xf32>
    %44 = vector.broadcast %43 : vector<1x32xf32> to vector<16x32xf32>
    %45 = arith.addf %42, %44 : vector<16x32xf32>
    %46 = tpu.transpose %45, [1, 0] : vector<16x32xf32> -> vector<32x16xf32>
    %c0_17 = arith.constant 0 : index
    %c0_18 = arith.constant 0 : index
    %c0_19 = arith.constant 0 : index
    %47 = vector.load %arg6[%c0_17, %c0_18, %c0_19] : memref<1x32x16xf32, #tpu.memory_space<vmem>>, vector<1x32x16xf32>
    %48 = vector.shape_cast %47 : vector<1x32x16xf32> to vector<32x16xf32>
    %49 = vector.shape_cast %46 : vector<32x16xf32> to vector<1x32x16xf32>
    tpu.vector_store %arg6[%c0_17, %c0_18, %c0_19], %49 {strides = array<i32>} : memref<1x32x16xf32, #tpu.memory_space<vmem>>, vector<1x32x16xf32>,
    return
  }
  func.func @transform_0(%arg0: i32, %arg1: i32) -> (i32, i32, i32, i32, i32) {
    %c0_i32 = arith.constant 0 : i32
    %c0_i32_0 = arith.constant 0 : i32
    %c0_i32_1 = arith.constant 0 : i32
    %c0_i32_2 = arith.constant 0 : i32
    return %arg0, %arg1, %c0_i32, %c0_i32_0, %c0_i32_1 : i32, i32, i32, i32, i32
  }
  func.func @transform_1(%arg0: i32, %arg1: i32) -> (i32, i32, i32, i32, i32) {
    %c1_i32 = arith.constant 1 : i32
    %0 = arith.addi %arg1, %c1_i32 : i32
    %c4_i32 = arith.constant 4 : i32
    %1 = arith.muli %0, %c4_i32 : i32
    %c0_i32 = arith.constant 0 : i32
    %c0_i32_0 = arith.constant 0 : i32
    %c0_i32_1 = arith.constant 0 : i32
    %c0_i32_2 = arith.constant 0 : i32
    return %arg0, %1, %c0_i32, %c0_i32_0, %c0_i32_1 : i32, i32, i32, i32, i32
  }
  func.func @transform_2(%arg0: i32, %arg1: i32) -> (i32, i32, i32) {
    %c0_i32 = arith.constant 0 : i32
    %c0_i32_0 = arith.constant 0 : i32
    %c0_i32_1 = arith.constant 0 : i32
    %c0_i32_2 = arith.constant 0 : i32
    return %c0_i32, %c0_i32_0, %c0_i32_1 : i32, i32, i32
  }
  func.func @transform_3(%arg0: i32, %arg1: i32) -> (i32, i32) {
    %c0_i32 = arith.constant 0 : i32
    %c0_i32_0 = arith.constant 0 : i32
    %c0_i32_1 = arith.constant 0 : i32
    return %c0_i32, %c0_i32_0 : i32, i32
  }
  func.func @transform_4(%arg0: i32, %arg1: i32) -> (i32, i32, i32) {
    %c0_i32 = arith.constant 0 : i32
    %c0_i32_0 = arith.constant 0 : i32
    return %arg0, %c0_i32, %arg1 : i32, i32, i32
  }
}

</mosaic_0001>

<llo_original>
// kernel: patch_embed_forward.3
$region0: #{patch_embed_forward.3}
  #allocation0 [shape = 'u32[]', space=smem, size = 0x4, offset = 0x4, fixed_abs, tag = 'smem constant byte address 0x4 - core index']
  #allocation1 [shape = 'u32[144,128]{1,0:T(1,128)}', space=vmem, size = 0x12000, scoped, tag = 'internal scratch']
  %s0 = inlined_call_operand.vmem [shape: bf16[2,5,2,5,32], index: 0, kind: input, shape index: {}, may-alias: {0,1}]
  %s1 = inlined_call_operand.vmem [shape: bf16[2,5,2,5,32], index: 1, kind: input, shape index: {}, may-alias: {0,1}]
  %s2 = inlined_call_operand.vmem [shape: bf16[3,32,64], index: 2, kind: input, shape index: {}]
  %s3 = inlined_call_operand.vmem [shape: f32[1,32], index: 3, kind: input, shape index: {}]
  %s4 = inlined_call_operand.vmem [shape: f32[2,32,16], index: 4, kind: output, shape index: {}]
  %s5 = sld [smem:[#allocation0]]
  $region49: #{patch_embed_forward.3} parent=0
    _
  %s7 = ssub.s32 1, %s5
  %s8 = scalar_select 0, %s7, %s5
  loop: start=0, step=1, limit=4
  $region2: #{patch_embed_forward.3} parent=0 // loop_pre_header
    _
  $region3: #{patch_embed_forward.3} parent=0 // loop_header
    %s10 = sphi 0, %s14
    %p11 = scmp.ge.s32.totalorder %s10, 4
    %s17 = sphi 0, %s29
    %s18 = sphi 0, %s25
    %s19 = sphi 0, %s17
    %s20 = sphi 0, %s18
    %s21 = sphi 0, %s19
    %s22 = sphi 0, %s20
    %s34 = sphi 0, %s36
    %s37 = sphi 0, %s34
    %s38 = sphi 0, %s37
    %s54 = sphi 0, %s38
    %s66 = sphi 0, %s68
    %s69 = sphi 0, %s66
    %s70 = sphi 0, %s69
    %s86 = sphi 0, %s70
    %s90 = sphi 0, %s90
    %s92 = sphi 0, %s90
    %s93 = sphi 0, %s92
    %s107 = sphi 0, %s93
    %s111 = sphi 0, %s111
    %s113 = sphi 0, %s111
    %s114 = sphi 0, %s113
    %s128 = sphi 0, %s114
    %s136 = sphi 0, %s138
    %s139 = sphi 0, %s136
    %s140 = sphi 0, %s139
    %s156 = sphi 0, %s140
  $region4: #{patch_embed_forward.3} parent=0 // loop_header_branch
    %13 = sbr.rel (%p11) target = $region8
  $region5: #{patch_embed_forward.3} parent=0 // loop_body
    %s15 = ssub.s32 %s10, 1
    %s16 = ssub.s32 %s10, 2
    %s23 = sadd.s32 1, %s18
    %p24 = scmp.ge.s32.totalorder %s23, 1
    %s25 = scalar_select %p24, 0, %s23
    %s26 = sadd.s32 1, %s17
    %s27 = scalar_select %p24, %s26, %s17
    %p28 = scmp.ge.s32.totalorder %s27, 2
    %s29 = scalar_select %p28, 0, %s27
    %s30 = ssub.s32 %s17, %s29
    %s31 = ssub.s32 %s18, %s25
    %s32 = sor.u32 %s30, %s31
    %p33 = scmp.eq.s32.totalorder %s32, 0
    %s35 = sadd.s32 %s34, 1
    %s36 = scalar_select %p33, %s34, %s35
    %p39 = pneg %p33
    %p40 = scmp.eq.s32.totalorder %s10, 1
    %p41 = por %p39, %p40
    %p42 = scmp.ne.s32.totalorder %s34, %s37
    %p43 = scmp.eq.s32.totalorder %s10, 0
    %p44 = por %p42, %p43
    %p45 = scmp.ne.s32.totalorder %s34, %s37
    %p46 = scmp.eq.s32.totalorder %s15, 1
    %p47 = por %p45, %p46
    %p48 = scmp.ne.s32.totalorder %s37, %s38
    %p49 = scmp.eq.s32.totalorder %s15, 0
    %p50 = por %p48, %p49
    %p51 = scmp.ne.s32.totalorder %s37, %s38
    %p52 = scmp.eq.s32.totalorder %s16, 1
    %p53 = por %p51, %p52
    %p55 = scmp.ne.s32.totalorder %s38, %s54
    %p56 = scmp.eq.s32.totalorder %s16, 0
    %p57 = por %p55, %p56
    %s58 = sadd.s32 %s18, 1
    %s59 = smul.u32 %s58, 4
    %s60 = sadd.s32 %s25, 1
    %s61 = smul.u32 %s60, 4
    %s62 = ssub.s32 %s17, %s29
    %s63 = ssub.s32 %s59, %s61
    %s64 = sor.u32 %s62, %s63
    %p65 = scmp.eq.s32.totalorder %s64, 0
    %s67 = sadd.s32 %s66, 1
    %s68 = scalar_select %p65, %s66, %s67
    %p71 = pneg %p65
    %p72 = scmp.eq.s32.totalorder %s10, 1
    %p73 = por %p71, %p72
    %p74 = scmp.ne.s32.totalorder %s66, %s69
    %p75 = scmp.eq.s32.totalorder %s10, 0
    %p76 = por %p74, %p75
    %p77 = scmp.ne.s32.totalorder %s66, %s69
    %p78 = scmp.eq.s32.totalorder %s15, 1
    %p79 = por %p77, %p78
    %p80 = scmp.ne.s32.totalorder %s69, %s70
    %p81 = scmp.eq.s32.totalorder %s15, 0
    %p82 = por %p80, %p81
    %p83 = scmp.ne.s32.totalorder %s69, %s70
    %p84 = scmp.eq.s32.totalorder %s16, 1
    %p85 = por %p83, %p84
    %p87 = scmp.ne.s32.totalorder %s70, %s86
    %p88 = scmp.eq.s32.totalorder %s16, 0
    %p89 = por %p87, %p88
    %s91 = sadd.s32 %s90, 1
    %p94 = scmp.eq.s32.totalorder %s10, 1
    %p95 = scmp.ne.s32.totalorder %s90, %s92
    %p96 = scmp.eq.s32.totalorder %s10, 0
    %p97 = por %p95, %p96
    %p98 = scmp.ne.s32.totalorder %s90, %s92
    %p99 = scmp.eq.s32.totalorder %s15, 1
    %p100 = por %p98, %p99
    %p101 = scmp.ne.s32.totalorder %s92, %s93
    %p102 = scmp.eq.s32.totalorder %s15, 0
    %p103 = por %p101, %p102
    %p104 = scmp.ne.s32.totalorder %s92, %s93
    %p105 = scmp.eq.s32.totalorder %s16, 1
    %p106 = por %p104, %p105
    %p108 = scmp.ne.s32.totalorder %s93, %s107
    %p109 = scmp.eq.s32.totalorder %s16, 0
    %p110 = por %p108, %p109
    %s112 = sadd.s32 %s111, 1
    %p115 = scmp.eq.s32.totalorder %s10, 1
    %p116 = scmp.ne.s32.totalorder %s111, %s113
    %p117 = scmp.eq.s32.totalorder %s10, 0
    %p118 = por %p116, %p117
    %p119 = scmp.ne.s32.totalorder %s111, %s113
    %p120 = scmp.eq.s32.totalorder %s15, 1
    %p121 = por %p119, %p120
    %p122 = scmp.ne.s32.totalorder %s113, %s114
    %p123 = scmp.eq.s32.totalorder %s15, 0
    %p124 = por %p122, %p123
    %p125 = scmp.ne.s32.totalorder %s113, %s114
    %p126 = scmp.eq.s32.totalorder %s16, 1
    %p127 = por %p125, %p126
    %p129 = scmp.ne.s32.totalorder %s114, %s128
    %p130 = scmp.eq.s32.totalorder %s16, 0
    %p131 = por %p129, %p130
    %s132 = ssub.s32 %s17, %s29
    %s133 = ssub.s32 %s18, %s25
    %s134 = sor.u32 %s132, %s133
    %p135 = scmp.eq.s32.totalorder %s134, 0
    %s137 = sadd.s32 %s136, 1
    %s138 = scalar_select %p135, %s136, %s137
    %p141 = pneg %p135
    %p142 = scmp.eq.s32.totalorder %s10, 1
    %p143 = por %p141, %p142
    %p144 = scmp.ne.s32.totalorder %s136, %s139
    %p145 = scmp.eq.s32.totalorder %s10, 0
    %p146 = por %p144, %p145
    %p147 = scmp.ne.s32.totalorder %s136, %s139
    %p148 = scmp.eq.s32.totalorder %s15, 1
    %p149 = por %p147, %p148
    %p150 = scmp.ne.s32.totalorder %s139, %s140
    %p151 = scmp.eq.s32.totalorder %s15, 0
    %p152 = por %p150, %p151
    %p153 = scmp.ne.s32.totalorder %s139, %s140
    %p154 = scmp.eq.s32.totalorder %s16, 1
    %p155 = por %p153, %p154
    %p157 = scmp.ne.s32.totalorder %s140, %s156
    %p158 = scmp.eq.s32.totalorder %s16, 0
    %p159 = por %p157, %p158
    %p160 = scmp.le.s32.totalorder 1, %s10
    %p161 = scmp.lt.s32.totalorder %s10, 3
    %p162 = pnand %p160, %p161
    %p163 = pneg %p162
    // Predicated region
    $region9: #{patch_embed_forward.3} parent=5 // pred_check
      _
    $region10: #{patch_embed_forward.3} parent=5 // pred_check_branch
      %165 = sbr.rel (%p162) target = $region12
    $region11: #{patch_embed_forward.3} parent=5 // pred_region
      %s166 = ssub.s32 %s10, 1
      // Predicated region
      $region13: #{patch_embed_forward.3} parent=11 // pred_check
        %p167 = pneg %p103
      $region14: #{patch_embed_forward.3} parent=11 // pred_check_branch
        %169 = sbr.rel (%p167) target = $region16
      $region15: #{patch_embed_forward.3} parent=11 // pred_region
        _
      $region16: #{patch_embed_forward.3} parent=11 // pred_fallthru
        _
      // Predicated region
      $region17: #{patch_embed_forward.3} parent=11 // pred_check
        %p170 = pneg %p124
      $region18: #{patch_embed_forward.3} parent=11 // pred_check_branch
        %172 = sbr.rel (%p170) target = $region20
      $region19: #{patch_embed_forward.3} parent=11 // pred_region
        _
      $region20: #{patch_embed_forward.3} parent=11 // pred_fallthru
        _
    $region12: #{patch_embed_forward.3} parent=5 // pred_fallthru
      _
    %p173 = scmp.lt.s32.totalorder %s10, 2
    // Predicated region
    $region21: #{patch_embed_forward.3} parent=5 // pred_check
      %p174 = pneg %p173
    $region22: #{patch_embed_forward.3} parent=5 // pred_check_branch
      %176 = sbr.rel (%p174) target = $region24
    $region23: #{patch_embed_forward.3} parent=5 // pred_region
      // Predicated region
      $region25: #{patch_embed_forward.3} parent=23 // pred_check
        %p177 = pneg %p44
      $region26: #{patch_embed_forward.3} parent=23 // pred_check_branch
        %179 = sbr.rel (%p177) target = $region28
      $region27: #{patch_embed_forward.3} parent=23 // pred_region
        %s180 = smul.u32 4, %s18
        %s181 = ssub.s32 5, %s180
        %p182 = scmp.lt.s32.totalorder %s181, 4
        %s183 = scalar_select %p182, %s181, 4
        %s184 = smul.u32 64, %s183
        %s185 = smul.u32 %s184, 2
        %p186 = scmp.lt.s32.totalorder %s17, 1
        %s187 = scalar_select %p186, %s17, 1
        %p188 = scmp.lt.s32.totalorder %s180, 4
        %s189 = scalar_select %p188, %s180, 4
        %s190 = smul.addr %s189, 2
        %s191 = smul.addr %s187, 10
        %s192 = sadd.s32 %s190, %s191
        %s193 = smul.addr %s192, 4
        %s194 = scalar_lea.vmem %s0, %s193
        %s195 = smul.u32 4, %s18
        %s196 = ssub.s32 5, %s195
        %p197 = scmp.lt.s32.totalorder %s196, 4
        %s198 = scalar_select %p197, %s196, 4
        %s199 = smul.u32 64, %s198
        %s200 = smul.u32 %s199, 2
      $region28: #{patch_embed_forward.3} parent=23 // pred_fallthru
        _
      // Predicated region
      $region29: #{patch_embed_forward.3} parent=23 // pred_check
        %p201 = pneg %p76
      $region30: #{patch_embed_forward.3} parent=23 // pred_check_branch
        %203 = sbr.rel (%p201) target = $region32
      $region31: #{patch_embed_forward.3} parent=23 // pred_region
        %s204 = sadd.s32 %s18, 1
        %s205 = smul.u32 %s204, 4
        %p206 = scmp.lt.s32.totalorder %s17, 1
        %s207 = scalar_select %p206, %s17, 1
        %p208 = scmp.lt.s32.totalorder %s205, 4
        %s209 = scalar_select %p208, %s205, 4
        %s210 = smul.addr %s209, 2
        %s211 = smul.addr %s207, 10
        %s212 = sadd.s32 %s210, %s211
        %s213 = smul.addr %s212, 4
        %s214 = scalar_lea.vmem %s1, %s213
        %s215 = sadd.s32 %s18, 1
        %s216 = smul.u32 %s215, 4
      $region32: #{patch_embed_forward.3} parent=23 // pred_fallthru
        _
    $region24: #{patch_embed_forward.3} parent=5 // pred_fallthru
      _
    %p217 = scmp.le.s32.totalorder 1, %s10
    %p218 = scmp.lt.s32.totalorder %s10, 3
    %p219 = pnand %p217, %p218
    %p220 = pneg %p219
    // Predicated region
    $region33: #{patch_embed_forward.3} parent=5 // pred_check
      _
    $region34: #{patch_embed_forward.3} parent=5 // pred_check_branch
      %222 = sbr.rel (%p219) target = $region36
    $region35: #{patch_embed_forward.3} parent=5 // pred_region
      %s223 = ssub.s32 %s10, 1
      %s224 = smul.u32 4, %s20
      %s225 = ssub.s32 5, %s224
      %p226 = scmp.lt.s32.totalorder %s225, 4
      %s227 = scalar_select %p226, %s225, 4
      %s228 = smul.u32 64, %s227
      %s229 = smul.u32 %s228, 2
      %p230 = scmp.lt.s32.totalorder %s19, 1
      %s231 = scalar_select %p230, %s19, 1
      %p232 = scmp.lt.s32.totalorder %s224, 4
      %s233 = scalar_select %p232, %s224, 4
      %s234 = smul.addr %s233, 2
      %s235 = smul.addr %s231, 10
      %s236 = sadd.s32 %s234, %s235
      %s237 = smul.addr %s236, 4
      %s238 = scalar_lea.vmem %s0, %s237
      %p239 = pneg %p50
      %p240 = pneg %p47
      %s241 = sadd.s32 %s20, 1
      %s242 = smul.u32 %s241, 4
      %p243 = scmp.lt.s32.totalorder %s19, 1
      %s244 = scalar_select %p243, %s19, 1
      %p245 = scmp.lt.s32.totalorder %s242, 4
      %s246 = scalar_select %p245, %s242, 4
      %s247 = smul.addr %s246, 2
      %s248 = smul.addr %s244, 10
      %s249 = sadd.s32 %s247, %s248
      %s250 = smul.addr %s249, 4
      %s251 = scalar_lea.vmem %s1, %s250
      %p252 = pneg %p82
      %p253 = pneg %p79
      %p254 = pneg %p103
      %p255 = pneg %p100
      %p256 = pneg %p124
      %p257 = pneg %p121
      %p258 = pneg %p152
      %p259 = pneg %p149
      %p260 = scmp.lt.s32.totalorder %s19, 1
      %s261 = scalar_select %p260, %s19, 1
      %p262 = scmp.lt.s32.totalorder %s20, 0
      %s263 = scalar_select %p262, %s20, 0
      %s264 = smul.addr %s261, 4
      %s265 = sadd.s32 %s263, %s264
      %s266 = smul.addr %s265, 8
      %s267 = scalar_lea.vmem %s4, %s266
      %s268 = smul.u32 4, %s20
      %s269 = ssub.s32 5, %s268
      %p270 = scmp.lt.s32.totalorder %s269, 4
      %s271 = scalar_select %p270, %s269, 4
      %s272 = smul.u32 64, %s271
      %s273 = smul.u32 %s272, 2
      %p274 = scmp.lt.s32.totalorder %s19, 1
      %s275 = scalar_select %p274, %s19, 1
      %p276 = scmp.lt.s32.totalorder %s268, 4
      %s277 = scalar_select %p276, %s268, 4
      %s278 = smul.addr %s277, 2
      %s279 = smul.addr %s275, 10
      %s280 = sadd.s32 %s278, %s279
      %s281 = smul.addr %s280, 4
      %s282 = scalar_lea.vmem %s0, %s281
      %s283 = smul.u32 4, %s20
      %s284 = ssub.s32 5, %s283
      %p285 = scmp.lt.s32.totalorder %s284, 4
      %s286 = scalar_select %p285, %s284, 4
      %s287 = smul.u32 64, %s286
      %s288 = smul.u32 %s287, 2
      %s289 = sadd.s32 %s20, 1
      %s290 = smul.u32 %s289, 4
      %p291 = scmp.lt.s32.totalorder %s19, 1
      %s292 = scalar_select %p291, %s19, 1
      %p293 = scmp.lt.s32.totalorder %s290, 4
      %s294 = scalar_select %p293, %s290, 4
      %s295 = smul.addr %s294, 2
      %s296 = smul.addr %s292, 10
      %s297 = sadd.s32 %s295, %s296
      %s298 = smul.addr %s297, 4
      %s299 = scalar_lea.vmem %s1, %s298
      %s300 = sadd.s32 %s20, 1
      %s301 = smul.u32 %s300, 4
      %p302 = scmp.lt.s32.totalorder %s19, 1
      %s303 = scalar_select %p302, %s19, 1
      %p304 = scmp.lt.s32.totalorder %s20, 0
      %s305 = scalar_select %p304, %s20, 0
      %s306 = smul.addr %s303, 4
      %s307 = sadd.s32 %s305, %s306
      %s308 = smul.addr %s307, 8
      %s309 = scalar_lea.vmem %s4, %s308
      %v311 = vld [vmem:[%s282] sm:$0x7]
      %v312 = vld [vmem:[%s282 + $0x4] sm:$0x7]
      %v313 = vld [vmem:[%s282 + $0x8] sm:$0x7]
      %v314 = vld [vmem:[%s282 + $0xc] sm:$0x7]
      %v315 = vld [vmem:[%s282 + $0x10] sm:$0x7]
      %v316 = vld [vmem:[%s282 + $0x14] sm:$0x7]
      %v317 = vld [vmem:[%s282 + $0x18] sm:$0x7]
      %v318 = vld [vmem:[%s282 + $0x1c] sm:$0x7]
      %v319 = vld [vmem:[%s299] sm:$0x7]
      %v320 = vld [vmem:[%s2] sm:$0xf]
      %v321 = vld [vmem:[%s2 + $0x4] sm:$0xf]
      %v322 = vld [vmem:[%s2 + $0x8] sm:$0xf]
      %v323 = vld [vmem:[%s2 + $0xc] sm:$0xf]
      %v324 = vld [vmem:[%s2 + $0x10] sm:$0xf]
      %v325 = vld [vmem:[%s2 + $0x14] sm:$0xf]
      %v326 = vld [vmem:[%s2 + $0x18] sm:$0xf]
      %v327 = vld [vmem:[%s2 + $0x1c] sm:$0xf]
      %v328 = vld [vmem:[%s2 + $0x20] sm:$0xf]
      %v329 = vld [vmem:[%s2 + $0x24] sm:$0xf]
      %v330 = vld [vmem:[%s2 + $0x28] sm:$0xf]
      %v331 = vld [vmem:[%s2 + $0x2c] sm:$0xf]
      %v337 = vunpack.c.l.s4 1966171168
      %v338 = vunpack.c.0.s8 %v337
      %v339 = vlaneseq
      %v340 = vshrl.u32 %v339, 7
      %v341 = vsub.s32 %v338, %v340
      %v342 = vrot.slane %v311, %v341
      %v343 = vcombine.high %v342, %v342
      %v345 = vunpack.c.l.s4 1966171168
      %v346 = vunpack.c.0.s8 %v345
      %v347 = vlaneseq
      %v348 = vshrl.u32 %v347, 7
      %v349 = vsub.s32 %v346, %v348
      %v350 = vrot.slane %v342, %v349
      %v352 = vunpack.c.l.s4 1966171168
      %v353 = vunpack.c.0.s8 %v352
      %v354 = vlaneseq
      %v355 = vshrl.u32 %v354, 7
      %v356 = vsub.s32 %v353, %v355
      %v357 = vrot.slane %v343, %v356
      %v358 = vcombine.high %v350, %v350
      %v360 = vunpack.c.l.s4 1966171168
      %v361 = vunpack.c.0.s8 %v360
      %v362 = vlaneseq
      %v363 = vshrl.u32 %v362, 7
      %v364 = vsub.s32 %v361, %v363
      %v365 = vrot.slane %v313, %v364
      %v366 = vcombine.high %v365, %v365
      %v368 = vunpack.c.l.s4 1966171168
      %v369 = vunpack.c.0.s8 %v368
      %v370 = vlaneseq
      %v371 = vshrl.u32 %v370, 7
      %v372 = vsub.s32 %v369, %v371
      %v373 = vrot.slane %v365, %v372
      %v375 = vunpack.c.l.s4 1966171168
      %v376 = vunpack.c.0.s8 %v375
      %v377 = vlaneseq
      %v378 = vshrl.u32 %v377, 7
      %v379 = vsub.s32 %v376, %v378
      %v380 = vrot.slane %v366, %v379
      %v381 = vcombine.high %v373, %v373
      %v383 = vunpack.c.l.s4 1966171168
      %v384 = vunpack.c.0.s8 %v383
      %v385 = vlaneseq
      %v386 = vshrl.u32 %v385, 7
      %v387 = vsub.s32 %v384, %v386
      %v388 = vrot.slane %v315, %v387
      %v389 = vcombine.high %v388, %v388
      %v391 = vunpack.c.l.s4 1966171168
      %v392 = vunpack.c.0.s8 %v391
      %v393 = vlaneseq
      %v394 = vshrl.u32 %v393, 7
      %v395 = vsub.s32 %v392, %v394
      %v396 = vrot.slane %v388, %v395
      %v398 = vunpack.c.l.s4 1966171168
      %v399 = vunpack.c.0.s8 %v398
      %v400 = vlaneseq
      %v401 = vshrl.u32 %v400, 7
      %v402 = vsub.s32 %v399, %v401
      %v403 = vrot.slane %v389, %v402
      %v404 = vcombine.high %v396, %v396
      %v406 = vunpack.c.l.s4 1966171168
      %v407 = vunpack.c.0.s8 %v406
      %v408 = vlaneseq
      %v409 = vshrl.u32 %v408, 7
      %v410 = vsub.s32 %v407, %v409
      %v411 = vrot.slane %v317, %v410
      %v412 = vcombine.high %v411, %v411
      %v414 = vunpack.c.l.s4 1966171168
      %v415 = vunpack.c.0.s8 %v414
      %v416 = vlaneseq
      %v417 = vshrl.u32 %v416, 7
      %v418 = vsub.s32 %v415, %v417
      %v419 = vrot.slane %v411, %v418
      %v421 = vunpack.c.l.s4 1966171168
      %v422 = vunpack.c.0.s8 %v421
      %v423 = vlaneseq
      %v424 = vshrl.u32 %v423, 7
      %v425 = vsub.s32 %v422, %v424
      %v426 = vrot.slane %v412, %v425
      %v427 = vcombine.high %v419, %v419
      %v428 = vunpack.i.l.s16 %v350
      %v429 = vunpack.i.h.s16 %v350
      %v430 = vunpack.i.l.s16 %v357
      %v431 = vunpack.i.h.s16 %v357
      %v432 = vunpack.i.l.s16 %v358
      %v433 = vunpack.i.l.s16 %v373
      %v434 = vunpack.i.h.s16 %v373
      %v435 = vunpack.i.l.s16 %v380
      %v436 = vunpack.i.h.s16 %v380
      %v437 = vunpack.i.l.s16 %v381
      %v438 = vunpack.i.l.s16 %v396
      %v439 = vunpack.i.h.s16 %v396
      %v440 = vunpack.i.l.s16 %v403
      %v441 = vunpack.i.h.s16 %v403
      %v442 = vunpack.i.l.s16 %v404
      %v443 = vunpack.i.l.s16 %v419
      %v444 = vunpack.i.h.s16 %v419
      %v445 = vunpack.i.l.s16 %v426
      %v446 = vunpack.i.h.s16 %v426
      %v447 = vunpack.i.l.s16 %v427
      %v448 = vpack.i.b16 %v429, %v428
      %v449 = vpack.i.b16 %v431, %v430
      %v450 = vpack.i.b16 %v433, %v432
      %v451 = vpack.i.b16 %v435, %v434
      %v452 = vpack.i.b16 %v437, %v436
      %v453 = vpack.i.b16 %v439, %v438
      %v454 = vpack.i.b16 %v441, %v440
      %v455 = vpack.i.b16 %v443, %v442
      %v456 = vpack.i.b16 %v445, %v444
      %v457 = vpack.i.b16 %v447, %v446
      %v458 = vcombine.low %v448, %v449
      %v459 = vcombine.low %v450, %v451
      %v460 = vcombine.low %v452, %v453
      %v461 = vcombine.low %v454, %v455
      %v463 = vunpack.c.l.s4 1966171168
      %v464 = vunpack.c.0.s8 %v463
      %v465 = vlaneseq
      %v466 = vshrl.u32 %v465, 7
      %v467 = vsub.s32 %v464, %v466
      %v468 = vrot.slane %v458, %v467
      %v470 = vunpack.c.l.s4 1966171168
      %v471 = vunpack.c.0.s8 %v470
      %v472 = vlaneseq
      %v473 = vshrl.u32 %v472, 7
      %v474 = vsub.s32 %v471, %v473
      %v475 = vrot.slane %v459, %v474
      %v477 = vunpack.c.l.s4 1966171168
      %v478 = vunpack.c.0.s8 %v477
      %v479 = vlaneseq
      %v480 = vshrl.u32 %v479, 7
      %v481 = vsub.s32 %v478, %v480
      %v482 = vrot.slane %v460, %v481
      %v484 = vunpack.c.l.s4 1966171168
      %v485 = vunpack.c.0.s8 %v484
      %v486 = vlaneseq
      %v487 = vshrl.u32 %v486, 7
      %v488 = vsub.s32 %v485, %v487
      %v489 = vrot.slane %v461, %v488
      %v490 = vcombine.low %v468, %v475
      %v491 = vcombine.low %v482, %v489
      %v493 = vunpack.c.l.s4 1966171168
      %v494 = vunpack.c.0.s8 %v493
      %v495 = vlaneseq
      %v496 = vshrl.u32 %v495, 7
      %v497 = vsub.s32 %v494, %v496
      %v498 = vrot.slane %v490, %v497
      %v500 = vunpack.c.l.s4 1966171168
      %v501 = vunpack.c.0.s8 %v500
      %v502 = vlaneseq
      %v503 = vshrl.u32 %v502, 7
      %v504 = vsub.s32 %v501, %v503
      %v505 = vrot.slane %v491, %v504
      %v506 = vcombine.low %v498, %v505
      %v507 = vcombine.low %v456, %v457
      %v509 = vunpack.c.l.s4 1966171168
      %v510 = vunpack.c.0.s8 %v509
      %v511 = vlaneseq
      %v512 = vshrl.u32 %v511, 7
      %v513 = vsub.s32 %v510, %v512
      %v514 = vrot.slane %v507, %v513
      %v516 = vunpack.c.l.s4 1966171168
      %v517 = vunpack.c.0.s8 %v516
      %v518 = vlaneseq
      %v519 = vshrl.u32 %v518, 7
      %v520 = vsub.s32 %v517, %v519
      %v521 = vrot.slane %v514, %v520
      %v526 = vunpack.c.l.b16 %v320
      %v527 = vunpack.c.l.b16 %v321
      %v528 = vunpack.c.l.b16 %v322
      %v529 = vunpack.c.l.b16 %v323
      %v530 = vpack.c.b16 %v527, %v526
      %v531 = vpack.c.b16 %v529, %v528
      %vm534 = vcmask 261120
      %v536 = vsel %vm534, %v506, 0
      %v539 = vsel %vm534, %v521, 0
      %541 = vmatprep.subr.bf16.mxu0 0
      %542 = vmatpush1.bf16.msra.mxu0 %v530
      %543 = vmatprep.subr.bf16.mxu0 0
      %544 = vmatpush1.bf16.msra.mxu0 %v531
      %545 = vmatprep.subr.bf16.mxu0 0
      %546 = vmatpush1.bf16.msra.mxu0 0
      %547 = vmatprep.subr.bf16.mxu0 0
      %548 = vmatpush1.bf16.msra.mxu0 0
      %549 = vmatprep.subr.bf16.mxu0 0
      %550 = vmatpush1.bf16.msra.mxu0 0
      %551 = vmatprep.subr.bf16.mxu0 0
      %552 = vmatpush1.bf16.msra.mxu0 0
      %553 = vmatprep.subr.bf16.mxu0 0
      %554 = vmatpush1.bf16.msra.mxu0 0
      %555 = vmatprep.subr.bf16.mxu0 0
      %556 = vmatpush1.bf16.msra.mxu0 0
      %557 = vmatprep.subr.bf16.mxu0 0
      %558 = vmatpush1.bf16.msra.mxu0 0
      %559 = vmatprep.subr.bf16.mxu0 0
      %560 = vmatpush1.bf16.msra.mxu0 0
      %561 = vmatprep.subr.bf16.mxu0 0
      %562 = vmatpush1.bf16.msra.mxu0 0
      %563 = vmatprep.subr.bf16.mxu0 0
      %564 = vmatpush1.bf16.msra.mxu0 0
      %565 = vmatprep.subr.bf16.mxu0 0
      %566 = vmatpush1.bf16.msra.mxu0 0
      %567 = vmatprep.subr.bf16.mxu0 0
      %568 = vmatpush1.bf16.msra.mxu0 0
      %569 = vmatprep.subr.bf16.mxu0 0
      %570 = vmatpush1.bf16.msra.mxu0 0
      %571 = vmatprep.subr.bf16.mxu0 0
      %572 = vmatpush1.bf16.msra.mxu0 0
      %573 = vmatprep.mubr.bf16.mxu0 0
      %574 = vmatmul.mubr.bf16.gmra.mrb[0].mxu0 %v536
      %v575 = vpop.f32.mrb[0].mxu0
      %v576 = vadd.f32 0.0, %v575
      %v577 = vpop.f32.mrb[0].mxu0
      %v578 = vpop.f32.mrb[0].mxu0
      %v579 = vadd.f32 0.0, %v578
      %v580 = vpop.f32.mrb[0].mxu0
      %581 = vmatprep.mubr.bf16.mxu0 0
      %582 = vmatmul.mubr.bf16.gmra.mrb[0].mxu0 %v539
      %v583 = vpop.f32.mrb[0].mxu0
      %v584 = vadd.f32 0.0, %v583
      %v585 = vpop.f32.mrb[0].mxu0
      %v586 = vpop.f32.mrb[0].mxu0
      %v587 = vpop.f32.mrb[0].mxu0
      %588 = vdwg.mxu0
      %v592 = vcombine.high %v576, %v576
      %v594 = vunpack.c.l.s4 1966171168
      %v595 = vunpack.c.0.s8 %v594
      %v596 = vlaneseq
      %v597 = vshrl.u32 %v596, 7
      %v598 = vsub.s32 %v595, %v597
      %v599 = vrot.slane %v576, %v598
      %v601 = vunpack.c.l.s4 1966171168
      %v602 = vunpack.c.0.s8 %v601
      %v603 = vlaneseq
      %v604 = vshrl.u32 %v603, 7
      %v605 = vsub.s32 %v602, %v604
      %v606 = vrot.slane %v592, %v605
      %v607 = vcombine.high %v599, %v599
      %v608 = vcombine.high %v606, %v606
      %v610 = vunpack.c.l.s4 1966171168
      %v611 = vunpack.c.0.s8 %v610
      %v612 = vlaneseq
      %v613 = vshrl.u32 %v612, 7
      %v614 = vsub.s32 %v611, %v613
      %v615 = vrot.slane %v599, %v614
      %v617 = vunpack.c.l.s4 1966171168
      %v618 = vunpack.c.0.s8 %v617
      %v619 = vlaneseq
      %v620 = vshrl.u32 %v619, 7
      %v621 = vsub.s32 %v618, %v620
      %v622 = vrot.slane %v606, %v621
      %v624 = vunpack.c.l.s4 1966171168
      %v625 = vunpack.c.0.s8 %v624
      %v626 = vlaneseq
      %v627 = vshrl.u32 %v626, 7
      %v628 = vsub.s32 %v625, %v627
      %v629 = vrot.slane %v607, %v628
      %v631 = vunpack.c.l.s4 1966171168
      %v632 = vunpack.c.0.s8 %v631
      %v633 = vlaneseq
      %v634 = vshrl.u32 %v633, 7
      %v635 = vsub.s32 %v632, %v634
      %v636 = vrot.slane %v608, %v635
      %v637 = vcombine.high %v615, %v615
      %v638 = vcombine.high %v622, %v622
      %v639 = vcombine.high %v629, %v629
      %v640 = vcombine.high %v636, %v636
      %v641 = vcombine.high %v579, %v579
      %v643 = vunpack.c.l.s4 1966171168
      %v644 = vunpack.c.0.s8 %v643
      %v645 = vlaneseq
      %v646 = vshrl.u32 %v645, 7
      %v647 = vsub.s32 %v644, %v646
      %v648 = vrot.slane %v579, %v647
      %v650 = vunpack.c.l.s4 1966171168
      %v651 = vunpack.c.0.s8 %v650
      %v652 = vlaneseq
      %v653 = vshrl.u32 %v652, 7
      %v654 = vsub.s32 %v651, %v653
      %v655 = vrot.slane %v641, %v654
      %v656 = vcombine.high %v648, %v648
      %v657 = vcombine.high %v655, %v655
      %v659 = vunpack.c.l.s4 1966171168
      %v660 = vunpack.c.0.s8 %v659
      %v661 = vlaneseq
      %v662 = vshrl.u32 %v661, 7
      %v663 = vsub.s32 %v660, %v662
      %v664 = vrot.slane %v648, %v663
      %v666 = vunpack.c.l.s4 1966171168
      %v667 = vunpack.c.0.s8 %v666
      %v668 = vlaneseq
      %v669 = vshrl.u32 %v668, 7
      %v670 = vsub.s32 %v667, %v669
      %v671 = vrot.slane %v655, %v670
      %v673 = vunpack.c.l.s4 1966171168
      %v674 = vunpack.c.0.s8 %v673
      %v675 = vlaneseq
      %v676 = vshrl.u32 %v675, 7
      %v677 = vsub.s32 %v674, %v676
      %v678 = vrot.slane %v656, %v677
      %v680 = vunpack.c.l.s4 1966171168
      %v681 = vunpack.c.0.s8 %v680
      %v682 = vlaneseq
      %v683 = vshrl.u32 %v682, 7
      %v684 = vsub.s32 %v681, %v683
      %v685 = vrot.slane %v657, %v684
      %v686 = vcombine.high %v664, %v664
      %v687 = vcombine.high %v671, %v671
      %v688 = vcombine.high %v678, %v678
      %v689 = vcombine.high %v685, %v685
      %v691 = vunpack.c.l.s4 1966171168
      %v692 = vunpack.c.0.s8 %v691
      %v693 = vlaneseq
      %v694 = vshrl.u32 %v693, 7
      %v695 = vsub.s32 %v692, %v694
      %v696 = vrot.slane %v584, %v695
      %v697 = vcombine.high %v696, %v696
      %v699 = vunpack.c.l.s4 1966171168
      %v700 = vunpack.c.0.s8 %v699
      %v701 = vlaneseq
      %v702 = vshrl.u32 %v701, 7
      %v703 = vsub.s32 %v700, %v702
      %v704 = vrot.slane %v696, %v703
      %v706 = vunpack.c.l.s4 1966171168
      %v707 = vunpack.c.0.s8 %v706
      %v708 = vlaneseq
      %v709 = vshrl.u32 %v708, 7
      %v710 = vsub.s32 %v707, %v709
      %v711 = vrot.slane %v697, %v710
      %v712 = vcombine.high %v704, %v704
      %v713 = vcombine.high %v711, %v711
      %v730 = vadd.f32 %v615, 0.0
      %v731 = vadd.f32 %v629, 0.0
      %v732 = vadd.f32 %v637, 0.0
      %v733 = vadd.f32 %v639, 0.0
      %v734 = vadd.f32 %v636, 0.0
      %v735 = vadd.f32 %v638, 0.0
      %v736 = vadd.f32 %v640, 0.0
      %v737 = vadd.f32 %v664, 0.0
      %v738 = vadd.f32 %v686, 0.0
      %v739 = vadd.f32 %v688, 0.0
      %v740 = vadd.f32 %v671, 0.0
      %v741 = vadd.f32 %v685, 0.0
      %v742 = vadd.f32 %v689, 0.0
      %v743 = vadd.f32 %v704, 0.0
      %v744 = vadd.f32 %v711, 0.0
      %v745 = vadd.f32 %v712, 0.0
      %746 = vrot.lane.b32.xlu0 %v629, 96
      %v747 = vpop.permute.xlu0 %746
      %748 = vrot.lane.b32.xlu0 %v637, 96
      %v749 = vpop.permute.xlu0 %748
      %750 = vrot.lane.b32.xlu0 %v639, 96
      %v751 = vpop.permute.xlu0 %750
      %752 = vrot.lane.b32.xlu0 %v622, 96
      %v753 = vpop.permute.xlu0 %752
      %754 = vrot.lane.b32.xlu0 %v638, 96
      %v755 = vpop.permute.xlu0 %754
      %756 = vrot.lane.b32.xlu0 %v640, 96
      %v757 = vpop.permute.xlu0 %756
      %758 = vrot.lane.b32.xlu0 %v664, 96
      %v759 = vpop.permute.xlu0 %758
      %760 = vrot.lane.b32.xlu0 %v678, 96
      %v761 = vpop.permute.xlu0 %760
      %762 = vrot.lane.b32.xlu0 %v688, 96
      %v763 = vpop.permute.xlu0 %762
      %764 = vrot.lane.b32.xlu0 %v671, 96
      %v765 = vpop.permute.xlu0 %764
      %766 = vrot.lane.b32.xlu0 %v685, 96
      %v767 = vpop.permute.xlu0 %766
      %768 = vrot.lane.b32.xlu0 %v687, 96
      %v769 = vpop.permute.xlu0 %768
      %770 = vrot.lane.b32.xlu0 %v704, 96
      %v771 = vpop.permute.xlu0 %770
      %772 = vrot.lane.b32.xlu0 %v711, 96
      %v773 = vpop.permute.xlu0 %772
      %774 = vrot.lane.b32.xlu0 %v712, 96
      %v775 = vpop.permute.xlu0 %774
      %776 = vrot.lane.b32.xlu0 %v713, 96
      %v777 = vpop.permute.xlu0 %776
      %v794 = vadd.f32 %v730, %v747
      %v795 = vadd.f32 %v731, %v749
      %v796 = vadd.f32 %v732, %v751
      %v797 = vadd.f32 %v733, %v753
      %v798 = vadd.f32 %v734, %v755
      %v799 = vadd.f32 %v735, %v757
      %v800 = vadd.f32 %v736, %v759
      %v801 = vadd.f32 %v737, %v761
      %v802 = vadd.f32 %v738, %v763
      %v803 = vadd.f32 %v739, %v765
      %v804 = vadd.f32 %v740, %v767
      %v805 = vadd.f32 %v741, %v769
      %v806 = vadd.f32 %v742, %v771
      %v807 = vadd.f32 %v743, %v773
      %v808 = vadd.f32 %v744, %v775
      %v809 = vadd.f32 %v745, %v777
      %v815 = vunpack.c.l.s4 1966171168
      %v816 = vunpack.c.0.s8 %v815
      %v817 = vlaneseq
      %v818 = vshrl.u32 %v817, 7
      %v819 = vsub.s32 %v816, %v818
      %v820 = vrot.slane %v312, %v819
      %v821 = vcombine.high %v820, %v820
      %v823 = vunpack.c.l.s4 1966171168
      %v824 = vunpack.c.0.s8 %v823
      %v825 = vlaneseq
      %v826 = vshrl.u32 %v825, 7
      %v827 = vsub.s32 %v824, %v826
      %v828 = vrot.slane %v820, %v827
      %v830 = vunpack.c.l.s4 1966171168
      %v831 = vunpack.c.0.s8 %v830
      %v832 = vlaneseq
      %v833 = vshrl.u32 %v832, 7
      %v834 = vsub.s32 %v831, %v833
      %v835 = vrot.slane %v821, %v834
      %v836 = vcombine.high %v828, %v828
      %v838 = vunpack.c.l.s4 1966171168
      %v839 = vunpack.c.0.s8 %v838
      %v840 = vlaneseq
      %v841 = vshrl.u32 %v840, 7
      %v842 = vsub.s32 %v839, %v841
      %v843 = vrot.slane %v314, %v842
      %v844 = vcombine.high %v843, %v843
      %v846 = vunpack.c.l.s4 1966171168
      %v847 = vunpack.c.0.s8 %v846
      %v848 = vlaneseq
      %v849 = vshrl.u32 %v848, 7
      %v850 = vsub.s32 %v847, %v849
      %v851 = vrot.slane %v843, %v850
      %v853 = vunpack.c.l.s4 1966171168
      %v854 = vunpack.c.0.s8 %v853
      %v855 = vlaneseq
      %v856 = vshrl.u32 %v855, 7
      %v857 = vsub.s32 %v854, %v856
      %v858 = vrot.slane %v844, %v857
      %v859 = vcombine.high %v851, %v851
      %v861 = vunpack.c.l.s4 1966171168
      %v862 = vunpack.c.0.s8 %v861
      %v863 = vlaneseq
      %v864 = vshrl.u32 %v863, 7
      %v865 = vsub.s32 %v862, %v864
      %v866 = vrot.slane %v316, %v865
      %v867 = vcombine.high %v866, %v866
      %v869 = vunpack.c.l.s4 1966171168
      %v870 = vunpack.c.0.s8 %v869
      %v871 = vlaneseq
      %v872 = vshrl.u32 %v871, 7
      %v873 = vsub.s32 %v870, %v872
      %v874 = vrot.slane %v866, %v873
      %v876 = vunpack.c.l.s4 1966171168
      %v877 = vunpack.c.0.s8 %v876
      %v878 = vlaneseq
      %v879 = vshrl.u32 %v878, 7
      %v880 = vsub.s32 %v877, %v879
      %v881 = vrot.slane %v867, %v880
      %v882 = vcombine.high %v874, %v874
      %v884 = vunpack.c.l.s4 1966171168
      %v885 = vunpack.c.0.s8 %v884
      %v886 = vlaneseq
      %v887 = vshrl.u32 %v886, 7
      %v888 = vsub.s32 %v885, %v887
      %v889 = vrot.slane %v318, %v888
      %v890 = vcombine.high %v889, %v889
      %v892 = vunpack.c.l.s4 1966171168
      %v893 = vunpack.c.0.s8 %v892
      %v894 = vlaneseq
      %v895 = vshrl.u32 %v894, 7
      %v896 = vsub.s32 %v893, %v895
      %v897 = vrot.slane %v889, %v896
      %v899 = vunpack.c.l.s4 1966171168
      %v900 = vunpack.c.0.s8 %v899
      %v901 = vlaneseq
      %v902 = vshrl.u32 %v901, 7
      %v903 = vsub.s32 %v900, %v902
      %v904 = vrot.slane %v890, %v903
      %v905 = vcombine.high %v897, %v897
      %v906 = vunpack.i.l.s16 %v828
      %v907 = vunpack.i.h.s16 %v828
      %v908 = vunpack.i.l.s16 %v835
      %v909 = vunpack.i.h.s16 %v835
      %v910 = vunpack.i.l.s16 %v836
      %v911 = vunpack.i.l.s16 %v851
      %v912 = vunpack.i.h.s16 %v851
      %v913 = vunpack.i.l.s16 %v858
      %v914 = vunpack.i.h.s16 %v858
      %v915 = vunpack.i.l.s16 %v859
      %v916 = vunpack.i.l.s16 %v874
      %v917 = vunpack.i.h.s16 %v874
      %v918 = vunpack.i.l.s16 %v881
      %v919 = vunpack.i.h.s16 %v881
      %v920 = vunpack.i.l.s16 %v882
      %v921 = vunpack.i.l.s16 %v897
      %v922 = vunpack.i.h.s16 %v897
      %v923 = vunpack.i.l.s16 %v904
      %v924 = vunpack.i.h.s16 %v904
      %v925 = vunpack.i.l.s16 %v905
      %v926 = vpack.i.b16 %v907, %v906
      %v927 = vpack.i.b16 %v909, %v908
      %v928 = vpack.i.b16 %v911, %v910
      %v929 = vpack.i.b16 %v913, %v912
      %v930 = vpack.i.b16 %v915, %v914
      %v931 = vpack.i.b16 %v917, %v916
      %v932 = vpack.i.b16 %v919, %v918
      %v933 = vpack.i.b16 %v921, %v920
      %v934 = vpack.i.b16 %v923, %v922
      %v935 = vpack.i.b16 %v925, %v924
      %v936 = vcombine.low %v926, %v927
      %v937 = vcombine.low %v928, %v929
      %v938 = vcombine.low %v930, %v931
      %v939 = vcombine.low %v932, %v933
      %v941 = vunpack.c.l.s4 1966171168
      %v942 = vunpack.c.0.s8 %v941
      %v943 = vlaneseq
      %v944 = vshrl.u32 %v943, 7
      %v945 = vsub.s32 %v942, %v944
      %v946 = vrot.slane %v936, %v945
      %v948 = vunpack.c.l.s4 1966171168
      %v949 = vunpack.c.0.s8 %v948
      %v950 = vlaneseq
      %v951 = vshrl.u32 %v950, 7
      %v952 = vsub.s32 %v949, %v951
      %v953 = vrot.slane %v937, %v952
      %v955 = vunpack.c.l.s4 1966171168
      %v956 = vunpack.c.0.s8 %v955
      %v957 = vlaneseq
      %v958 = vshrl.u32 %v957, 7
      %v959 = vsub.s32 %v956, %v958
      %v960 = vrot.slane %v938, %v959
      %v962 = vunpack.c.l.s4 1966171168
      %v963 = vunpack.c.0.s8 %v962
      %v964 = vlaneseq
      %v965 = vshrl.u32 %v964, 7
      %v966 = vsub.s32 %v963, %v965
      %v967 = vrot.slane %v939, %v966
      %v968 = vcombine.low %v946, %v953
      %v969 = vcombine.low %v960, %v967
      %v971 = vunpack.c.l.s4 1966171168
      %v972 = vunpack.c.0.s8 %v971
      %v973 = vlaneseq
      %v974 = vshrl.u32 %v973, 7
      %v975 = vsub.s32 %v972, %v974
      %v976 = vrot.slane %v968, %v975
      %v978 = vunpack.c.l.s4 1966171168
      %v979 = vunpack.c.0.s8 %v978
      %v980 = vlaneseq
      %v981 = vshrl.u32 %v980, 7
      %v982 = vsub.s32 %v979, %v981
      %v983 = vrot.slane %v969, %v982
      %v984 = vcombine.low %v976, %v983
      %v985 = vcombine.low %v934, %v935
      %v987 = vunpack.c.l.s4 1966171168
      %v988 = vunpack.c.0.s8 %v987
      %v989 = vlaneseq
      %v990 = vshrl.u32 %v989, 7
      %v991 = vsub.s32 %v988, %v990
      %v992 = vrot.slane %v985, %v991
      %v994 = vunpack.c.l.s4 1966171168
      %v995 = vunpack.c.0.s8 %v994
      %v996 = vlaneseq
      %v997 = vshrl.u32 %v996, 7
      %v998 = vsub.s32 %v995, %v997
      %v999 = vrot.slane %v992, %v998
      %v1004 = vunpack.c.l.b16 %v324
      %v1005 = vunpack.c.l.b16 %v325
      %v1006 = vunpack.c.l.b16 %v326
      %v1007 = vunpack.c.l.b16 %v327
      %v1008 = vpack.c.b16 %v1005, %v1004
      %v1009 = vpack.c.b16 %v1007, %v1006
      %v1013 = vsel %vm534, %v984, 0
      %v1016 = vsel %vm534, %v999, 0
      %1018 = vmatprep.subr.bf16.mxu0 0
      %1019 = vmatpush1.bf16.msra.mxu0 %v1008
      %1020 = vmatprep.subr.bf16.mxu0 0
      %1021 = vmatpush1.bf16.msra.mxu0 %v1009
      %1022 = vmatprep.subr.bf16.mxu0 0
      %1023 = vmatpush1.bf16.msra.mxu0 0
      %1024 = vmatprep.subr.bf16.mxu0 0
      %1025 = vmatpush1.bf16.msra.mxu0 0
      %1026 = vmatprep.subr.bf16.mxu0 0
      %1027 = vmatpush1.bf16.msra.mxu0 0
      %1028 = vmatprep.subr.bf16.mxu0 0
      %1029 = vmatpush1.bf16.msra.mxu0 0
      %1030 = vmatprep.subr.bf16.mxu0 0
      %1031 = vmatpush1.bf16.msra.mxu0 0
      %1032 = vmatprep.subr.bf16.mxu0 0
      %1033 = vmatpush1.bf16.msra.mxu0 0
      %1034 = vmatprep.subr.bf16.mxu0 0
      %1035 = vmatpush1.bf16.msra.mxu0 0
      %1036 = vmatprep.subr.bf16.mxu0 0
      %1037 = vmatpush1.bf16.msra.mxu0 0
      %1038 = vmatprep.subr.bf16.mxu0 0
      %1039 = vmatpush1.bf16.msra.mxu0 0
      %1040 = vmatprep.subr.bf16.mxu0 0
      %1041 = vmatpush1.bf16.msra.mxu0 0
      %1042 = vmatprep.subr.bf16.mxu0 0
      %1043 = vmatpush1.bf16.msra.mxu0 0
      %1044 = vmatprep.subr.bf16.mxu0 0
      %1045 = vmatpush1.bf16.msra.mxu0 0
      %1046 = vmatprep.subr.bf16.mxu0 0
      %1047 = vmatpush1.bf16.msra.mxu0 0
      %1048 = vmatprep.subr.bf16.mxu0 0
      %1049 = vmatpush1.bf16.msra.mxu0 0
      %1050 = vmatprep.mubr.bf16.mxu0 0
      %1051 = vmatmul.mubr.bf16.gmra.mrb[0].mxu0 %v1013
      %v1052 = vpop.f32.mrb[0].mxu0
      %v1053 = vadd.f32 0.0, %v1052
      %v1054 = vpop.f32.mrb[0].mxu0
      %v1055 = vpop.f32.mrb[0].mxu0
      %v1056 = vadd.f32 0.0, %v1055
      %v1057 = vpop.f32.mrb[0].mxu0
      %1058 = vmatprep.mubr.bf16.mxu0 0
      %1059 = vmatmul.mubr.bf16.gmra.mrb[0].mxu0 %v1016
      %v1060 = vpop.f32.mrb[0].mxu0
      %v1061 = vadd.f32 0.0, %v1060
      %v1062 = vpop.f32.mrb[0].mxu0
      %v1063 = vpop.f32.mrb[0].mxu0
      %v1064 = vpop.f32.mrb[0].mxu0
      %1065 = vdwg.mxu0
      %v1069 = vcombine.high %v1053, %v1053
      %v1071 = vunpack.c.l.s4 1966171168
      %v1072 = vunpack.c.0.s8 %v1071
      %v1073 = vlaneseq
      %v1074 = vshrl.u32 %v1073, 7
      %v1075 = vsub.s32 %v1072, %v1074
      %v1076 = vrot.slane %v1053, %v1075
      %v1078 = vunpack.c.l.s4 1966171168
      %v1079 = vunpack.c.0.s8 %v1078
      %v1080 = vlaneseq
      %v1081 = vshrl.u32 %v1080, 7
      %v1082 = vsub.s32 %v1079, %v1081
      %v1083 = vrot.slane %v1069, %v1082
      %v1084 = vcombine.high %v1076, %v1076
      %v1085 = vcombine.high %v1083, %v1083
      %v1087 = vunpack.c.l.s4 1966171168
      %v1088 = vunpack.c.0.s8 %v1087
      %v1089 = vlaneseq
      %v1090 = vshrl.u32 %v1089, 7
      %v1091 = vsub.s32 %v1088, %v1090
      %v1092 = vrot.slane %v1076, %v1091
      %v1094 = vunpack.c.l.s4 1966171168
      %v1095 = vunpack.c.0.s8 %v1094
      %v1096 = vlaneseq
      %v1097 = vshrl.u32 %v1096, 7
      %v1098 = vsub.s32 %v1095, %v1097
      %v1099 = vrot.slane %v1083, %v1098
      %v1101 = vunpack.c.l.s4 1966171168
      %v1102 = vunpack.c.0.s8 %v1101
      %v1103 = vlaneseq
      %v1104 = vshrl.u32 %v1103, 7
      %v1105 = vsub.s32 %v1102, %v1104
      %v1106 = vrot.slane %v1084, %v1105
      %v1108 = vunpack.c.l.s4 1966171168
      %v1109 = vunpack.c.0.s8 %v1108
      %v1110 = vlaneseq
      %v1111 = vshrl.u32 %v1110, 7
      %v1112 = vsub.s32 %v1109, %v1111
      %v1113 = vrot.slane %v1085, %v1112
      %v1114 = vcombine.high %v1092, %v1092
      %v1115 = vcombine.high %v1099, %v1099
      %v1116 = vcombine.high %v1106, %v1106
      %v1117 = vcombine.high %v1113, %v1113
      %v1118 = vcombine.high %v1056, %v1056
      %v1120 = vunpack.c.l.s4 1966171168
      %v1121 = vunpack.c.0.s8 %v1120
      %v1122 = vlaneseq
      %v1123 = vshrl.u32 %v1122, 7
      %v1124 = vsub.s32 %v1121, %v1123
      %v1125 = vrot.slane %v1056, %v1124
      %v1127 = vunpack.c.l.s4 1966171168
      %v1128 = vunpack.c.0.s8 %v1127
      %v1129 = vlaneseq
      %v1130 = vshrl.u32 %v1129, 7
      %v1131 = vsub.s32 %v1128, %v1130
      %v1132 = vrot.slane %v1118, %v1131
      %v1133 = vcombine.high %v1125, %v1125
      %v1134 = vcombine.high %v1132, %v1132
      %v1136 = vunpack.c.l.s4 1966171168
      %v1137 = vunpack.c.0.s8 %v1136
      %v1138 = vlaneseq
      %v1139 = vshrl.u32 %v1138, 7
      %v1140 = vsub.s32 %v1137, %v1139
      %v1141 = vrot.slane %v1125, %v1140
      %v1143 = vunpack.c.l.s4 1966171168
      %v1144 = vunpack.c.0.s8 %v1143
      %v1145 = vlaneseq
      %v1146 = vshrl.u32 %v1145, 7
      %v1147 = vsub.s32 %v1144, %v1146
      %v1148 = vrot.slane %v1132, %v1147
      %v1150 = vunpack.c.l.s4 1966171168
      %v1151 = vunpack.c.0.s8 %v1150
      %v1152 = vlaneseq
      %v1153 = vshrl.u32 %v1152, 7
      %v1154 = vsub.s32 %v1151, %v1153
      %v1155 = vrot.slane %v1133, %v1154
      %v1157 = vunpack.c.l.s4 1966171168
      %v1158 = vunpack.c.0.s8 %v1157
      %v1159 = vlaneseq
      %v1160 = vshrl.u32 %v1159, 7
      %v1161 = vsub.s32 %v1158, %v1160
      %v1162 = vrot.slane %v1134, %v1161
      %v1163 = vcombine.high %v1141, %v1141
      %v1164 = vcombine.high %v1148, %v1148
      %v1165 = vcombine.high %v1155, %v1155
      %v1166 = vcombine.high %v1162, %v1162
      %v1168 = vunpack.c.l.s4 1966171168
      %v1169 = vunpack.c.0.s8 %v1168
      %v1170 = vlaneseq
      %v1171 = vshrl.u32 %v1170, 7
      %v1172 = vsub.s32 %v1169, %v1171
      %v1173 = vrot.slane %v1061, %v1172
      %v1174 = vcombine.high %v1173, %v1173
      %v1176 = vunpack.c.l.s4 1966171168
      %v1177 = vunpack.c.0.s8 %v1176
      %v1178 = vlaneseq
      %v1179 = vshrl.u32 %v1178, 7
      %v1180 = vsub.s32 %v1177, %v1179
      %v1181 = vrot.slane %v1173, %v1180
      %v1183 = vunpack.c.l.s4 1966171168
      %v1184 = vunpack.c.0.s8 %v1183
      %v1185 = vlaneseq
      %v1186 = vshrl.u32 %v1185, 7
      %v1187 = vsub.s32 %v1184, %v1186
      %v1188 = vrot.slane %v1174, %v1187
      %v1189 = vcombine.high %v1181, %v1181
      %v1190 = vcombine.high %v1188, %v1188
      %v1207 = vadd.f32 %v794, %v1092
      %v1208 = vadd.f32 %v795, %v1106
      %v1209 = vadd.f32 %v796, %v1114
      %v1210 = vadd.f32 %v797, %v1116
      %v1211 = vadd.f32 %v798, %v1113
      %v1212 = vadd.f32 %v799, %v1115
      %v1213 = vadd.f32 %v800, %v1117
      %v1214 = vadd.f32 %v801, %v1141
      %v1215 = vadd.f32 %v802, %v1163
      %v1216 = vadd.f32 %v803, %v1165
      %v1217 = vadd.f32 %v804, %v1148
      %v1218 = vadd.f32 %v805, %v1162
      %v1219 = vadd.f32 %v806, %v1166
      %v1220 = vadd.f32 %v807, %v1181
      %v1221 = vadd.f32 %v808, %v1188
      %v1222 = vadd.f32 %v809, %v1189
      %1223 = vrot.lane.b32.xlu0 %v1106, 96
      %v1224 = vpop.permute.xlu0 %1223
      %1225 = vrot.lane.b32.xlu0 %v1114, 96
      %v1226 = vpop.permute.xlu0 %1225
      %1227 = vrot.lane.b32.xlu0 %v1116, 96
      %v1228 = vpop.permute.xlu0 %1227
      %1229 = vrot.lane.b32.xlu0 %v1099, 96
      %v1230 = vpop.permute.xlu0 %1229
      %1231 = vrot.lane.b32.xlu0 %v1115, 96
      %v1232 = vpop.permute.xlu0 %1231
      %1233 = vrot.lane.b32.xlu0 %v1117, 96
      %v1234 = vpop.permute.xlu0 %1233
      %1235 = vrot.lane.b32.xlu0 %v1141, 96
      %v1236 = vpop.permute.xlu0 %1235
      %1237 = vrot.lane.b32.xlu0 %v1155, 96
      %v1238 = vpop.permute.xlu0 %1237
      %1239 = vrot.lane.b32.xlu0 %v1165, 96
      %v1240 = vpop.permute.xlu0 %1239
      %1241 = vrot.lane.b32.xlu0 %v1148, 96
      %v1242 = vpop.permute.xlu0 %1241
      %1243 = vrot.lane.b32.xlu0 %v1162, 96
      %v1244 = vpop.permute.xlu0 %1243
      %1245 = vrot.lane.b32.xlu0 %v1164, 96
      %v1246 = vpop.permute.xlu0 %1245
      %1247 = vrot.lane.b32.xlu0 %v1181, 96
      %v1248 = vpop.permute.xlu0 %1247
      %1249 = vrot.lane.b32.xlu0 %v1188, 96
      %v1250 = vpop.permute.xlu0 %1249
      %1251 = vrot.lane.b32.xlu0 %v1189, 96
      %v1252 = vpop.permute.xlu0 %1251
      %1253 = vrot.lane.b32.xlu0 %v1190, 96
      %v1254 = vpop.permute.xlu0 %1253
      %v1271 = vadd.f32 %v1207, %v1224
      %v1272 = vadd.f32 %v1208, %v1226
      %v1273 = vadd.f32 %v1209, %v1228
      %v1274 = vadd.f32 %v1210, %v1230
      %v1275 = vadd.f32 %v1211, %v1232
      %v1276 = vadd.f32 %v1212, %v1234
      %v1277 = vadd.f32 %v1213, %v1236
      %v1278 = vadd.f32 %v1214, %v1238
      %v1279 = vadd.f32 %v1215, %v1240
      %v1280 = vadd.f32 %v1216, %v1242
      %v1281 = vadd.f32 %v1217, %v1244
      %v1282 = vadd.f32 %v1218, %v1246
      %v1283 = vadd.f32 %v1219, %v1248
      %v1284 = vadd.f32 %v1220, %v1250
      %v1285 = vadd.f32 %v1221, %v1252
      %v1286 = vadd.f32 %v1222, %v1254
      %v1289 = vunpack.c.l.s4 1966171168
      %v1290 = vunpack.c.0.s8 %v1289
      %v1291 = vlaneseq
      %v1292 = vshrl.u32 %v1291, 7
      %v1293 = vsub.s32 %v1290, %v1292
      %v1294 = vrot.slane %v319, %v1293
      %v1295 = vcombine.high %v1294, %v1294
      %v1297 = vunpack.c.l.s4 1966171168
      %v1298 = vunpack.c.0.s8 %v1297
      %v1299 = vlaneseq
      %v1300 = vshrl.u32 %v1299, 7
      %v1301 = vsub.s32 %v1298, %v1300
      %v1302 = vrot.slane %v1294, %v1301
      %v1304 = vunpack.c.l.s4 1966171168
      %v1305 = vunpack.c.0.s8 %v1304
      %v1306 = vlaneseq
      %v1307 = vshrl.u32 %v1306, 7
      %v1308 = vsub.s32 %v1305, %v1307
      %v1309 = vrot.slane %v1295, %v1308
      %v1310 = vcombine.high %v1302, %v1302
      %v1311 = vunpack.i.l.s16 %v1302
      %v1312 = vunpack.i.h.s16 %v1302
      %v1313 = vunpack.i.l.s16 %v1309
      %v1314 = vunpack.i.h.s16 %v1309
      %v1315 = vunpack.i.l.s16 %v1310
      %v1316 = vpack.i.b16 %v434, %v433
      %v1317 = vpack.i.b16 %v436, %v435
      %v1318 = vpack.i.b16 %v438, %v437
      %v1319 = vpack.i.b16 %v440, %v439
      %v1320 = vpack.i.b16 %v442, %v441
      %v1321 = vpack.i.b16 %v444, %v443
      %v1322 = vpack.i.b16 %v446, %v445
      %v1323 = vpack.i.b16 %v1311, %v447
      %v1324 = vpack.i.b16 %v1313, %v1312
      %v1325 = vpack.i.b16 %v1315, %v1314
      %v1326 = vcombine.low %v1316, %v1317
      %v1327 = vcombine.low %v1318, %v1319
      %v1328 = vcombine.low %v1320, %v1321
      %v1329 = vcombine.low %v1322, %v1323
      %v1331 = vunpack.c.l.s4 1966171168
      %v1332 = vunpack.c.0.s8 %v1331
      %v1333 = vlaneseq
      %v1334 = vshrl.u32 %v1333, 7
      %v1335 = vsub.s32 %v1332, %v1334
      %v1336 = vrot.slane %v1326, %v1335
      %v1338 = vunpack.c.l.s4 1966171168
      %v1339 = vunpack.c.0.s8 %v1338
      %v1340 = vlaneseq
      %v1341 = vshrl.u32 %v1340, 7
      %v1342 = vsub.s32 %v1339, %v1341
      %v1343 = vrot.slane %v1327, %v1342
      %v1345 = vunpack.c.l.s4 1966171168
      %v1346 = vunpack.c.0.s8 %v1345
      %v1347 = vlaneseq
      %v1348 = vshrl.u32 %v1347, 7
      %v1349 = vsub.s32 %v1346, %v1348
      %v1350 = vrot.slane %v1328, %v1349
      %v1352 = vunpack.c.l.s4 1966171168
      %v1353 = vunpack.c.0.s8 %v1352
      %v1354 = vlaneseq
      %v1355 = vshrl.u32 %v1354, 7
      %v1356 = vsub.s32 %v1353, %v1355
      %v1357 = vrot.slane %v1329, %v1356
      %v1358 = vcombine.low %v1336, %v1343
      %v1359 = vcombine.low %v1350, %v1357
      %v1361 = vunpack.c.l.s4 1966171168
      %v1362 = vunpack.c.0.s8 %v1361
      %v1363 = vlaneseq
      %v1364 = vshrl.u32 %v1363, 7
      %v1365 = vsub.s32 %v1362, %v1364
      %v1366 = vrot.slane %v1358, %v1365
      %v1368 = vunpack.c.l.s4 1966171168
      %v1369 = vunpack.c.0.s8 %v1368
      %v1370 = vlaneseq
      %v1371 = vshrl.u32 %v1370, 7
      %v1372 = vsub.s32 %v1369, %v1371
      %v1373 = vrot.slane %v1359, %v1372
      %v1374 = vcombine.low %v1366, %v1373
      %v1375 = vcombine.low %v1324, %v1325
      %v1377 = vunpack.c.l.s4 1966171168
      %v1378 = vunpack.c.0.s8 %v1377
      %v1379 = vlaneseq
      %v1380 = vshrl.u32 %v1379, 7
      %v1381 = vsub.s32 %v1378, %v1380
      %v1382 = vrot.slane %v1375, %v1381
      %v1384 = vunpack.c.l.s4 1966171168
      %v1385 = vunpack.c.0.s8 %v1384
      %v1386 = vlaneseq
      %v1387 = vshrl.u32 %v1386, 7
      %v1388 = vsub.s32 %v1385, %v1387
      %v1389 = vrot.slane %v1382, %v1388
      %v1394 = vunpack.c.l.b16 %v328
      %v1395 = vunpack.c.l.b16 %v329
      %v1396 = vunpack.c.l.b16 %v330
      %v1397 = vunpack.c.l.b16 %v331
      %v1398 = vpack.c.b16 %v1395, %v1394
      %v1399 = vpack.c.b16 %v1397, %v1396
      %v1403 = vsel %vm534, %v1374, 0
      %v1406 = vsel %vm534, %v1389, 0
      %1408 = vmatprep.subr.bf16.mxu0 0
      %1409 = vmatpush1.bf16.msra.mxu0 %v1398
      %1410 = vmatprep.subr.bf16.mxu0 0
      %1411 = vmatpush1.bf16.msra.mxu0 %v1399
      %1412 = vmatprep.subr.bf16.mxu0 0
      %1413 = vmatpush1.bf16.msra.mxu0 0
      %1414 = vmatprep.subr.bf16.mxu0 0
      %1415 = vmatpush1.bf16.msra.mxu0 0
      %1416 = vmatprep.subr.bf16.mxu0 0
      %1417 = vmatpush1.bf16.msra.mxu0 0
      %1418 = vmatprep.subr.bf16.mxu0 0
      %1419 = vmatpush1.bf16.msra.mxu0 0
      %1420 = vmatprep.subr.bf16.mxu0 0
      %1421 = vmatpush1.bf16.msra.mxu0 0
      %1422 = vmatprep.subr.bf16.mxu0 0
      %1423 = vmatpush1.bf16.msra.mxu0 0
      %1424 = vmatprep.subr.bf16.mxu0 0
      %1425 = vmatpush1.bf16.msra.mxu0 0
      %1426 = vmatprep.subr.bf16.mxu0 0
      %1427 = vmatpush1.bf16.msra.mxu0 0
      %1428 = vmatprep.subr.bf16.mxu0 0
      %1429 = vmatpush1.bf16.msra.mxu0 0
      %1430 = vmatprep.subr.bf16.mxu0 0
      %1431 = vmatpush1.bf16.msra.mxu0 0
      %1432 = vmatprep.subr.bf16.mxu0 0
      %1433 = vmatpush1.bf16.msra.mxu0 0
      %1434 = vmatprep.subr.bf16.mxu0 0
      %1435 = vmatpush1.bf16.msra.mxu0 0
      %1436 = vmatprep.subr.bf16.mxu0 0
      %1437 = vmatpush1.bf16.msra.mxu0 0
      %1438 = vmatprep.subr.bf16.mxu0 0
      %1439 = vmatpush1.bf16.msra.mxu0 0
      %1440 = vmatprep.mubr.bf16.mxu0 0
      %1441 = vmatmul.mubr.bf16.gmra.mrb[0].mxu0 %v1403
      %v1442 = vpop.f32.mrb[0].mxu0
      %v1443 = vadd.f32 0.0, %v1442
      %v1444 = vpop.f32.mrb[0].mxu0
      %v1445 = vpop.f32.mrb[0].mxu0
      %v1446 = vadd.f32 0.0, %v1445
      %v1447 = vpop.f32.mrb[0].mxu0
      %1448 = vmatprep.mubr.bf16.mxu0 0
      %1449 = vmatmul.mubr.bf16.gmra.mrb[0].mxu0 %v1406
      %v1450 = vpop.f32.mrb[0].mxu0
      %v1451 = vadd.f32 0.0, %v1450
      %v1452 = vpop.f32.mrb[0].mxu0
      %v1453 = vpop.f32.mrb[0].mxu0
      %v1454 = vpop.f32.mrb[0].mxu0
      %1455 = vdwg.mxu0
      %v1459 = vcombine.high %v1443, %v1443
      %v1461 = vunpack.c.l.s4 1966171168
      %v1462 = vunpack.c.0.s8 %v1461
      %v1463 = vlaneseq
      %v1464 = vshrl.u32 %v1463, 7
      %v1465 = vsub.s32 %v1462, %v1464
      %v1466 = vrot.slane %v1443, %v1465
      %v1468 = vunpack.c.l.s4 1966171168
      %v1469 = vunpack.c.0.s8 %v1468
      %v1470 = vlaneseq
      %v1471 = vshrl.u32 %v1470, 7
      %v1472 = vsub.s32 %v1469, %v1471
      %v1473 = vrot.slane %v1459, %v1472
      %v1474 = vcombine.high %v1466, %v1466
      %v1475 = vcombine.high %v1473, %v1473
      %v1477 = vunpack.c.l.s4 1966171168
      %v1478 = vunpack.c.0.s8 %v1477
      %v1479 = vlaneseq
      %v1480 = vshrl.u32 %v1479, 7
      %v1481 = vsub.s32 %v1478, %v1480
      %v1482 = vrot.slane %v1466, %v1481
      %v1484 = vunpack.c.l.s4 1966171168
      %v1485 = vunpack.c.0.s8 %v1484
      %v1486 = vlaneseq
      %v1487 = vshrl.u32 %v1486, 7
      %v1488 = vsub.s32 %v1485, %v1487
      %v1489 = vrot.slane %v1473, %v1488
      %v1491 = vunpack.c.l.s4 1966171168
      %v1492 = vunpack.c.0.s8 %v1491
      %v1493 = vlaneseq
      %v1494 = vshrl.u32 %v1493, 7
      %v1495 = vsub.s32 %v1492, %v1494
      %v1496 = vrot.slane %v1474, %v1495
      %v1498 = vunpack.c.l.s4 1966171168
      %v1499 = vunpack.c.0.s8 %v1498
      %v1500 = vlaneseq
      %v1501 = vshrl.u32 %v1500, 7
      %v1502 = vsub.s32 %v1499, %v1501
      %v1503 = vrot.slane %v1475, %v1502
      %v1504 = vcombine.high %v1482, %v1482
      %v1505 = vcombine.high %v1489, %v1489
      %v1506 = vcombine.high %v1496, %v1496
      %v1507 = vcombine.high %v1503, %v1503
      %v1508 = vcombine.high %v1446, %v1446
      %v1510 = vunpack.c.l.s4 1966171168
      %v1511 = vunpack.c.0.s8 %v1510
      %v1512 = vlaneseq
      %v1513 = vshrl.u32 %v1512, 7
      %v1514 = vsub.s32 %v1511, %v1513
      %v1515 = vrot.slane %v1446, %v1514
      %v1517 = vunpack.c.l.s4 1966171168
      %v1518 = vunpack.c.0.s8 %v1517
      %v1519 = vlaneseq
      %v1520 = vshrl.u32 %v1519, 7
      %v1521 = vsub.s32 %v1518, %v1520
      %v1522 = vrot.slane %v1508, %v1521
      %v1523 = vcombine.high %v1515, %v1515
      %v1524 = vcombine.high %v1522, %v1522
      %v1526 = vunpack.c.l.s4 1966171168
      %v1527 = vunpack.c.0.s8 %v1526
      %v1528 = vlaneseq
      %v1529 = vshrl.u32 %v1528, 7
      %v1530 = vsub.s32 %v1527, %v1529
      %v1531 = vrot.slane %v1515, %v1530
      %v1533 = vunpack.c.l.s4 1966171168
      %v1534 = vunpack.c.0.s8 %v1533
      %v1535 = vlaneseq
      %v1536 = vshrl.u32 %v1535, 7
      %v1537 = vsub.s32 %v1534, %v1536
      %v1538 = vrot.slane %v1522, %v1537
      %v1540 = vunpack.c.l.s4 1966171168
      %v1541 = vunpack.c.0.s8 %v1540
      %v1542 = vlaneseq
      %v1543 = vshrl.u32 %v1542, 7
      %v1544 = vsub.s32 %v1541, %v1543
      %v1545 = vrot.slane %v1523, %v1544
      %v1547 = vunpack.c.l.s4 1966171168
      %v1548 = vunpack.c.0.s8 %v1547
      %v1549 = vlaneseq
      %v1550 = vshrl.u32 %v1549, 7
      %v1551 = vsub.s32 %v1548, %v1550
      %v1552 = vrot.slane %v1524, %v1551
      %v1553 = vcombine.high %v1531, %v1531
      %v1554 = vcombine.high %v1538, %v1538
      %v1555 = vcombine.high %v1545, %v1545
      %v1556 = vcombine.high %v1552, %v1552
      %v1558 = vunpack.c.l.s4 1966171168
      %v1559 = vunpack.c.0.s8 %v1558
      %v1560 = vlaneseq
      %v1561 = vshrl.u32 %v1560, 7
      %v1562 = vsub.s32 %v1559, %v1561
      %v1563 = vrot.slane %v1451, %v1562
      %v1564 = vcombine.high %v1563, %v1563
      %v1566 = vunpack.c.l.s4 1966171168
      %v1567 = vunpack.c.0.s8 %v1566
      %v1568 = vlaneseq
      %v1569 = vshrl.u32 %v1568, 7
      %v1570 = vsub.s32 %v1567, %v1569
      %v1571 = vrot.slane %v1563, %v1570
      %v1573 = vunpack.c.l.s4 1966171168
      %v1574 = vunpack.c.0.s8 %v1573
      %v1575 = vlaneseq
      %v1576 = vshrl.u32 %v1575, 7
      %v1577 = vsub.s32 %v1574, %v1576
      %v1578 = vrot.slane %v1564, %v1577
      %v1579 = vcombine.high %v1571, %v1571
      %v1580 = vcombine.high %v1578, %v1578
      %v1597 = vadd.f32 %v1271, %v1482
      %v1598 = vadd.f32 %v1272, %v1496
      %v1599 = vadd.f32 %v1273, %v1504
      %v1600 = vadd.f32 %v1274, %v1506
      %v1601 = vadd.f32 %v1275, %v1503
      %v1602 = vadd.f32 %v1276, %v1505
      %v1603 = vadd.f32 %v1277, %v1507
      %v1604 = vadd.f32 %v1278, %v1531
      %v1605 = vadd.f32 %v1279, %v1553
      %v1606 = vadd.f32 %v1280, %v1555
      %v1607 = vadd.f32 %v1281, %v1538
      %v1608 = vadd.f32 %v1282, %v1552
      %v1609 = vadd.f32 %v1283, %v1556
      %v1610 = vadd.f32 %v1284, %v1571
      %v1611 = vadd.f32 %v1285, %v1578
      %v1612 = vadd.f32 %v1286, %v1579
      %1613 = vrot.lane.b32.xlu0 %v1496, 96
      %v1614 = vpop.permute.xlu0 %1613
      %1615 = vrot.lane.b32.xlu0 %v1504, 96
      %v1616 = vpop.permute.xlu0 %1615
      %1617 = vrot.lane.b32.xlu0 %v1506, 96
      %v1618 = vpop.permute.xlu0 %1617
      %1619 = vrot.lane.b32.xlu0 %v1489, 96
      %v1620 = vpop.permute.xlu0 %1619
      %1621 = vrot.lane.b32.xlu0 %v1505, 96
      %v1622 = vpop.permute.xlu0 %1621
      %1623 = vrot.lane.b32.xlu0 %v1507, 96
      %v1624 = vpop.permute.xlu0 %1623
      %1625 = vrot.lane.b32.xlu0 %v1531, 96
      %v1626 = vpop.permute.xlu0 %1625
      %1627 = vrot.lane.b32.xlu0 %v1545, 96
      %v1628 = vpop.permute.xlu0 %1627
      %1629 = vrot.lane.b32.xlu0 %v1555, 96
      %v1630 = vpop.permute.xlu0 %1629
      %1631 = vrot.lane.b32.xlu0 %v1538, 96
      %v1632 = vpop.permute.xlu0 %1631
      %1633 = vrot.lane.b32.xlu0 %v1552, 96
      %v1634 = vpop.permute.xlu0 %1633
      %1635 = vrot.lane.b32.xlu0 %v1554, 96
      %v1636 = vpop.permute.xlu0 %1635
      %1637 = vrot.lane.b32.xlu0 %v1571, 96
      %v1638 = vpop.permute.xlu0 %1637
      %1639 = vrot.lane.b32.xlu0 %v1578, 96
      %v1640 = vpop.permute.xlu0 %1639
      %1641 = vrot.lane.b32.xlu0 %v1579, 96
      %v1642 = vpop.permute.xlu0 %1641
      %1643 = vrot.lane.b32.xlu0 %v1580, 96
      %v1644 = vpop.permute.xlu0 %1643
      %v1661 = vadd.f32 %v1597, %v1614
      %v1662 = vadd.f32 %v1598, %v1616
      %v1663 = vadd.f32 %v1599, %v1618
      %v1664 = vadd.f32 %v1600, %v1620
      %v1665 = vadd.f32 %v1601, %v1622
      %v1666 = vadd.f32 %v1602, %v1624
      %v1667 = vadd.f32 %v1603, %v1626
      %v1668 = vadd.f32 %v1604, %v1628
      %v1669 = vadd.f32 %v1605, %v1630
      %v1670 = vadd.f32 %v1606, %v1632
      %v1671 = vadd.f32 %v1607, %v1634
      %v1672 = vadd.f32 %v1608, %v1636
      %v1673 = vadd.f32 %v1609, %v1638
      %v1674 = vadd.f32 %v1610, %v1640
      %v1675 = vadd.f32 %v1611, %v1642
      %v1676 = vadd.f32 %v1612, %v1644
      %v1677 = vld [vmem:[%s3] sm:$0x1]
      %v1679 = vlaneseq
      %v1680 = vshrl.u32 %v1679, 7
      %v1681 = vsub.s32 0, %v1680
      %v1682 = vrot.slane %v1677, %v1681
      %v1683 = vcombine.high %v1682, %v1682
      %v1685 = vunpack.c.l.s4 1966171168
      %v1686 = vunpack.c.0.s8 %v1685
      %v1687 = vlaneseq
      %v1688 = vshrl.u32 %v1687, 7
      %v1689 = vsub.s32 %v1686, %v1688
      %v1690 = vrot.slane %v1682, %v1689
      %v1692 = vunpack.c.l.s4 1966171168
      %v1693 = vunpack.c.0.s8 %v1692
      %v1694 = vlaneseq
      %v1695 = vshrl.u32 %v1694, 7
      %v1696 = vsub.s32 %v1693, %v1695
      %v1697 = vrot.slane %v1683, %v1696
      %v1698 = vcombine.high %v1690, %v1690
      %v1699 = vcombine.high %v1697, %v1697
      %v1701 = vunpack.c.l.s4 1966171168
      %v1702 = vunpack.c.0.s8 %v1701
      %v1703 = vlaneseq
      %v1704 = vshrl.u32 %v1703, 7
      %v1705 = vsub.s32 %v1702, %v1704
      %v1706 = vrot.slane %v1690, %v1705
      %v1708 = vunpack.c.l.s4 1966171168
      %v1709 = vunpack.c.0.s8 %v1708
      %v1710 = vlaneseq
      %v1711 = vshrl.u32 %v1710, 7
      %v1712 = vsub.s32 %v1709, %v1711
      %v1713 = vrot.slane %v1697, %v1712
      %v1715 = vunpack.c.l.s4 1966171168
      %v1716 = vunpack.c.0.s8 %v1715
      %v1717 = vlaneseq
      %v1718 = vshrl.u32 %v1717, 7
      %v1719 = vsub.s32 %v1716, %v1718
      %v1720 = vrot.slane %v1698, %v1719
      %v1722 = vunpack.c.l.s4 1966171168
      %v1723 = vunpack.c.0.s8 %v1722
      %v1724 = vlaneseq
      %v1725 = vshrl.u32 %v1724, 7
      %v1726 = vsub.s32 %v1723, %v1725
      %v1727 = vrot.slane %v1699, %v1726
      %v1728 = vcombine.high %v1706, %v1706
      %v1729 = vcombine.high %v1713, %v1713
      %v1730 = vcombine.high %v1720, %v1720
      %v1731 = vcombine.high %v1727, %v1727
      %v1740 = vadd.f32 %v1661, %v1706
      %v1741 = vadd.f32 %v1662, %v1720
      %v1742 = vadd.f32 %v1663, %v1728
      %v1743 = vadd.f32 %v1664, %v1730
      %v1744 = vadd.f32 %v1665, %v1713
      %v1745 = vadd.f32 %v1666, %v1727
      %v1746 = vadd.f32 %v1667, %v1729
      %v1747 = vadd.f32 %v1668, %v1731
      %v1748 = vadd.f32 %v1669, %v1706
      %v1749 = vadd.f32 %v1670, %v1720
      %v1750 = vadd.f32 %v1671, %v1728
      %v1751 = vadd.f32 %v1672, %v1730
      %v1752 = vadd.f32 %v1673, %v1713
      %v1753 = vadd.f32 %v1674, %v1727
      %v1754 = vadd.f32 %v1675, %v1729
      %v1755 = vadd.f32 %v1676, %v1731
      %v1772 = vcombine.low %v1740, %v1741
      %v1773 = vcombine.low %v1742, %v1743
      %v1774 = vcombine.low %v1744, %v1745
      %v1775 = vcombine.low %v1746, %v1747
      %v1777 = vunpack.c.l.s4 1966171168
      %v1778 = vunpack.c.0.s8 %v1777
      %v1779 = vlaneseq
      %v1780 = vshrl.u32 %v1779, 7
      %v1781 = vsub.s32 %v1778, %v1780
      %v1782 = vrot.slane %v1772, %v1781
      %v1784 = vunpack.c.l.s4 1966171168
      %v1785 = vunpack.c.0.s8 %v1784
      %v1786 = vlaneseq
      %v1787 = vshrl.u32 %v1786, 7
      %v1788 = vsub.s32 %v1785, %v1787
      %v1789 = vrot.slane %v1773, %v1788
      %v1791 = vunpack.c.l.s4 1966171168
      %v1792 = vunpack.c.0.s8 %v1791
      %v1793 = vlaneseq
      %v1794 = vshrl.u32 %v1793, 7
      %v1795 = vsub.s32 %v1792, %v1794
      %v1796 = vrot.slane %v1774, %v1795
      %v1798 = vunpack.c.l.s4 1966171168
      %v1799 = vunpack.c.0.s8 %v1798
      %v1800 = vlaneseq
      %v1801 = vshrl.u32 %v1800, 7
      %v1802 = vsub.s32 %v1799, %v1801
      %v1803 = vrot.slane %v1775, %v1802
      %v1804 = vcombine.low %v1782, %v1789
      %v1805 = vcombine.low %v1796, %v1803
      %v1807 = vunpack.c.l.s4 1966171168
      %v1808 = vunpack.c.0.s8 %v1807
      %v1809 = vlaneseq
      %v1810 = vshrl.u32 %v1809, 7
      %v1811 = vsub.s32 %v1808, %v1810
      %v1812 = vrot.slane %v1804, %v1811
      %v1814 = vunpack.c.l.s4 1966171168
      %v1815 = vunpack.c.0.s8 %v1814
      %v1816 = vlaneseq
      %v1817 = vshrl.u32 %v1816, 7
      %v1818 = vsub.s32 %v1815, %v1817
      %v1819 = vrot.slane %v1805, %v1818
      %v1820 = vcombine.low %v1812, %v1819
      %v1821 = vcombine.low %v1748, %v1749
      %v1822 = vcombine.low %v1750, %v1751
      %v1823 = vcombine.low %v1752, %v1753
      %v1824 = vcombine.low %v1754, %v1755
      %v1826 = vunpack.c.l.s4 1966171168
      %v1827 = vunpack.c.0.s8 %v1826
      %v1828 = vlaneseq
      %v1829 = vshrl.u32 %v1828, 7
      %v1830 = vsub.s32 %v1827, %v1829
      %v1831 = vrot.slane %v1821, %v1830
      %v1833 = vunpack.c.l.s4 1966171168
      %v1834 = vunpack.c.0.s8 %v1833
      %v1835 = vlaneseq
      %v1836 = vshrl.u32 %v1835, 7
      %v1837 = vsub.s32 %v1834, %v1836
      %v1838 = vrot.slane %v1822, %v1837
      %v1840 = vunpack.c.l.s4 1966171168
      %v1841 = vunpack.c.0.s8 %v1840
      %v1842 = vlaneseq
      %v1843 = vshrl.u32 %v1842, 7
      %v1844 = vsub.s32 %v1841, %v1843
      %v1845 = vrot.slane %v1823, %v1844
      %v1847 = vunpack.c.l.s4 1966171168
      %v1848 = vunpack.c.0.s8 %v1847
      %v1849 = vlaneseq
      %v1850 = vshrl.u32 %v1849, 7
      %v1851 = vsub.s32 %v1848, %v1850
      %v1852 = vrot.slane %v1824, %v1851
      %v1853 = vcombine.low %v1831, %v1838
      %v1854 = vcombine.low %v1845, %v1852
      %v1856 = vunpack.c.l.s4 1966171168
      %v1857 = vunpack.c.0.s8 %v1856
      %v1858 = vlaneseq
      %v1859 = vshrl.u32 %v1858, 7
      %v1860 = vsub.s32 %v1857, %v1859
      %v1861 = vrot.slane %v1853, %v1860
      %v1863 = vunpack.c.l.s4 1966171168
      %v1864 = vunpack.c.0.s8 %v1863
      %v1865 = vlaneseq
      %v1866 = vshrl.u32 %v1865, 7
      %v1867 = vsub.s32 %v1864, %v1866
      %v1868 = vrot.slane %v1854, %v1867
      %v1869 = vcombine.low %v1861, %v1868
      %1872 = vxpose.xlu0.b32.start [1/16] %v1820, 128
      %1873 = vxpose.xlu0.b32.cont [2/16] %v1869, 128
      %1874 = vxpose.xlu0.b32.cont [3/16] 0.0, 128
      %1875 = vxpose.xlu0.b32.cont [4/16] 0.0, 128
      %1876 = vxpose.xlu0.b32.cont [5/16] 0.0, 128
      %1877 = vxpose.xlu0.b32.cont [6/16] 0.0, 128
      %1878 = vxpose.xlu0.b32.cont [7/16] 0.0, 128
      %1879 = vxpose.xlu0.b32.cont [8/16] 0.0, 128
      %1880 = vxpose.xlu0.b32.cont [9/16] 0.0, 128
      %1881 = vxpose.xlu0.b32.cont [10/16] 0.0, 128
      %1882 = vxpose.xlu0.b32.cont [11/16] 0.0, 128
      %1883 = vxpose.xlu0.b32.cont [12/16] 0.0, 128
      %1884 = vxpose.xlu0.b32.cont [13/16] 0.0, 128
      %1885 = vxpose.xlu0.b32.cont [14/16] 0.0, 128
      %1886 = vxpose.xlu0.b32.cont [15/16] 0.0, 128
      %1887 = vxpose.xlu0.b32.end [16/16] 0.0, 128
      %v1888 = vpop.trf.xlu0
      %v1889 = vpop.trf.xlu0
      %v1890 = vpop.trf.xlu0
      %v1891 = vpop.trf.xlu0
      %v1892 = vpop.trf.xlu0
      %v1893 = vpop.trf.xlu0
      %v1894 = vpop.trf.xlu0
      %v1895 = vpop.trf.xlu0
      %v1896 = vpop.trf.xlu0
      %v1897 = vpop.trf.xlu0
      %v1898 = vpop.trf.xlu0
      %v1899 = vpop.trf.xlu0
      %v1900 = vpop.trf.xlu0
      %v1901 = vpop.trf.xlu0
      %v1902 = vpop.trf.xlu0
      %v1903 = vpop.trf.xlu0
      %vm1904 = vcmask 130048
      %1905 = vst.msk [vmem:[%s309] sm:$0xff] %vm1904, %v1888
      %1906 = vst.msk [vmem:[%s309 + $0x8] sm:$0xff] %vm1904, %v1889
      %1907 = vst.msk [vmem:[%s309 + $0x10] sm:$0xff] %vm1904, %v1890
      %1908 = vst.msk [vmem:[%s309 + $0x18] sm:$0xff] %vm1904, %v1891
      %p1909 = scmp.lt.s32.totalorder %s19, 1
      %s1910 = scalar_select %p1909, %s19, 1
      %p1911 = scmp.lt.s32.totalorder %s20, 0
      %s1912 = scalar_select %p1911, %s20, 0
      %s1913 = smul.addr %s1910, 4
      %s1914 = sadd.s32 %s1912, %s1913
      %s1915 = smul.addr %s1914, 8
      %s1916 = scalar_lea.vmem %s4, %s1915
      // Predicated region
      $region37: #{patch_embed_forward.3} parent=35 // pred_check
        %p1917 = pneg %p149
      $region38: #{patch_embed_forward.3} parent=35 // pred_check_branch
        %1919 = sbr.rel (%p1917) target = $region40
      $region39: #{patch_embed_forward.3} parent=35 // pred_region
        _
      $region40: #{patch_embed_forward.3} parent=35 // pred_fallthru
        _
    $region36: #{patch_embed_forward.3} parent=5 // pred_fallthru
      _
    %p1920 = scmp.le.s32.totalorder 2, %s10
    // Predicated region
    $region41: #{patch_embed_forward.3} parent=5 // pred_check
      %p1921 = pneg %p1920
    $region42: #{patch_embed_forward.3} parent=5 // pred_check_branch
      %1923 = sbr.rel (%p1921) target = $region44
    $region43: #{patch_embed_forward.3} parent=5 // pred_region
      %s1924 = ssub.s32 %s10, 2
      // Predicated region
      $region45: #{patch_embed_forward.3} parent=43 // pred_check
        %p1925 = pneg %p155
      $region46: #{patch_embed_forward.3} parent=43 // pred_check_branch
        %1927 = sbr.rel (%p1925) target = $region48
      $region47: #{patch_embed_forward.3} parent=43 // pred_region
        %p1928 = scmp.lt.s32.totalorder %s21, 1
        %s1929 = scalar_select %p1928, %s21, 1
        %p1930 = scmp.lt.s32.totalorder %s22, 0
        %s1931 = scalar_select %p1930, %s22, 0
        %s1932 = smul.addr %s1929, 4
        %s1933 = sadd.s32 %s1931, %s1932
        %s1934 = smul.addr %s1933, 8
        %s1935 = scalar_lea.vmem %s4, %s1934
      $region48: #{patch_embed_forward.3} parent=43 // pred_fallthru
        _
    $region44: #{patch_embed_forward.3} parent=5 // pred_fallthru
      _
  $region6: #{patch_embed_forward.3} parent=0 // loop_footer
    %s14 = sadd.s32 1, %s10
  $region7: #{patch_embed_forward.3} parent=0 // loop_footer_branch
    %9 = sbr.rel target = $region3
  $region8: #{patch_embed_forward.3} parent=0 // loop_exit
    _

// kernel: patch_embed_forward.2
$region0: #{patch_embed_forward.2}
  #allocation0 [shape = 'u32[]', space=smem, size = 0x4, offset = 0x4, fixed_abs, tag = 'smem constant byte address 0x4 - core index']
  #allocation1 [shape = 'u32[144,128]{1,0:T(1,128)}', space=vmem, size = 0x12000, scoped, tag = 'internal scratch']
  %s0 = inlined_call_operand.vmem [shape: bf16[2,9,2,9,8], index: 0, kind: input, shape index: {}, may-alias: {0,1}]
  %s1 = inlined_call_operand.vmem [shape: bf16[2,9,2,9,8], index: 1, kind: input, shape index: {}, may-alias: {0,1}]
  %s2 = inlined_call_operand.vmem [shape: bf16[3,8,32], index: 2, kind: input, shape index: {}]
  %s3 = inlined_call_operand.vmem [shape: f32[1,16], index: 3, kind: input, shape index: {}]
  %s4 = inlined_call_operand.vmem [shape: bf16[2,64,16], index: 4, kind: output, shape index: {}]
  %s5 = sld [smem:[#allocation0]]
  $region49: #{patch_embed_forward.2} parent=0
    _
  %s7 = ssub.s32 1, %s5
  %s8 = scalar_select 0, %s7, %s5
  loop: start=0, step=1, limit=6
  $region2: #{patch_embed_forward.2} parent=0 // loop_pre_header
    _
  $region3: #{patch_embed_forward.2} parent=0 // loop_header
    %s10 = sphi 0, %s14
    %p11 = scmp.ge.s32.totalorder %s10, 6
    %s17 = sphi 0, %s29
    %s18 = sphi 0, %s25
    %s19 = sphi 0, %s17
    %s20 = sphi 0, %s18
    %s21 = sphi 0, %s19
    %s22 = sphi 0, %s20
    %s34 = sphi 0, %s36
    %s37 = sphi 0, %s34
    %s38 = sphi 0, %s37
    %s54 = sphi 0, %s38
    %s66 = sphi 0, %s68
    %s69 = sphi 0, %s66
    %s70 = sphi 0, %s69
    %s86 = sphi 0, %s70
    %s90 = sphi 0, %s90
    %s92 = sphi 0, %s90
    %s93 = sphi 0, %s92
    %s107 = sphi 0, %s93
    %s111 = sphi 0, %s111
    %s113 = sphi 0, %s111
    %s114 = sphi 0, %s113
    %s128 = sphi 0, %s114
    %s136 = sphi 0, %s138
    %s139 = sphi 0, %s136
    %s140 = sphi 0, %s139
    %s156 = sphi 0, %s140
  $region4: #{patch_embed_forward.2} parent=0 // loop_header_branch
    %13 = sbr.rel (%p11) target = $region8
  $region5: #{patch_embed_forward.2} parent=0 // loop_body
    %s15 = ssub.s32 %s10, 1
    %s16 = ssub.s32 %s10, 2
    %s23 = sadd.s32 1, %s18
    %p24 = scmp.ge.s32.totalorder %s23, 2
    %s25 = scalar_select %p24, 0, %s23
    %s26 = sadd.s32 1, %s17
    %s27 = scalar_select %p24, %s26, %s17
    %p28 = scmp.ge.s32.totalorder %s27, 2
    %s29 = scalar_select %p28, 0, %s27
    %s30 = ssub.s32 %s17, %s29
    %s31 = ssub.s32 %s18, %s25
    %s32 = sor.u32 %s30, %s31
    %p33 = scmp.eq.s32.totalorder %s32, 0
    %s35 = sadd.s32 %s34, 1
    %s36 = scalar_select %p33, %s34, %s35
    %p39 = pneg %p33
    %p40 = scmp.eq.s32.totalorder %s10, 3
    %p41 = por %p39, %p40
    %p42 = scmp.ne.s32.totalorder %s34, %s37
    %p43 = scmp.eq.s32.totalorder %s10, 0
    %p44 = por %p42, %p43
    %p45 = scmp.ne.s32.totalorder %s34, %s37
    %p46 = scmp.eq.s32.totalorder %s15, 3
    %p47 = por %p45, %p46
    %p48 = scmp.ne.s32.totalorder %s37, %s38
    %p49 = scmp.eq.s32.totalorder %s15, 0
    %p50 = por %p48, %p49
    %p51 = scmp.ne.s32.totalorder %s37, %s38
    %p52 = scmp.eq.s32.totalorder %s16, 3
    %p53 = por %p51, %p52
    %p55 = scmp.ne.s32.totalorder %s38, %s54
    %p56 = scmp.eq.s32.totalorder %s16, 0
    %p57 = por %p55, %p56
    %s58 = sadd.s32 %s18, 1
    %s59 = smul.u32 %s58, 4
    %s60 = sadd.s32 %s25, 1
    %s61 = smul.u32 %s60, 4
    %s62 = ssub.s32 %s17, %s29
    %s63 = ssub.s32 %s59, %s61
    %s64 = sor.u32 %s62, %s63
    %p65 = scmp.eq.s32.totalorder %s64, 0
    %s67 = sadd.s32 %s66, 1
    %s68 = scalar_select %p65, %s66, %s67
    %p71 = pneg %p65
    %p72 = scmp.eq.s32.totalorder %s10, 3
    %p73 = por %p71, %p72
    %p74 = scmp.ne.s32.totalorder %s66, %s69
    %p75 = scmp.eq.s32.totalorder %s10, 0
    %p76 = por %p74, %p75
    %p77 = scmp.ne.s32.totalorder %s66, %s69
    %p78 = scmp.eq.s32.totalorder %s15, 3
    %p79 = por %p77, %p78
    %p80 = scmp.ne.s32.totalorder %s69, %s70
    %p81 = scmp.eq.s32.totalorder %s15, 0
    %p82 = por %p80, %p81
    %p83 = scmp.ne.s32.totalorder %s69, %s70
    %p84 = scmp.eq.s32.totalorder %s16, 3
    %p85 = por %p83, %p84
    %p87 = scmp.ne.s32.totalorder %s70, %s86
    %p88 = scmp.eq.s32.totalorder %s16, 0
    %p89 = por %p87, %p88
    %s91 = sadd.s32 %s90, 1
    %p94 = scmp.eq.s32.totalorder %s10, 3
    %p95 = scmp.ne.s32.totalorder %s90, %s92
    %p96 = scmp.eq.s32.totalorder %s10, 0
    %p97 = por %p95, %p96
    %p98 = scmp.ne.s32.totalorder %s90, %s92
    %p99 = scmp.eq.s32.totalorder %s15, 3
    %p100 = por %p98, %p99
    %p101 = scmp.ne.s32.totalorder %s92, %s93
    %p102 = scmp.eq.s32.totalorder %s15, 0
    %p103 = por %p101, %p102
    %p104 = scmp.ne.s32.totalorder %s92, %s93
    %p105 = scmp.eq.s32.totalorder %s16, 3
    %p106 = por %p104, %p105
    %p108 = scmp.ne.s32.totalorder %s93, %s107
    %p109 = scmp.eq.s32.totalorder %s16, 0
    %p110 = por %p108, %p109
    %s112 = sadd.s32 %s111, 1
    %p115 = scmp.eq.s32.totalorder %s10, 3
    %p116 = scmp.ne.s32.totalorder %s111, %s113
    %p117 = scmp.eq.s32.totalorder %s10, 0
    %p118 = por %p116, %p117
    %p119 = scmp.ne.s32.totalorder %s111, %s113
    %p120 = scmp.eq.s32.totalorder %s15, 3
    %p121 = por %p119, %p120
    %p122 = scmp.ne.s32.totalorder %s113, %s114
    %p123 = scmp.eq.s32.totalorder %s15, 0
    %p124 = por %p122, %p123
    %p125 = scmp.ne.s32.totalorder %s113, %s114
    %p126 = scmp.eq.s32.totalorder %s16, 3
    %p127 = por %p125, %p126
    %p129 = scmp.ne.s32.totalorder %s114, %s128
    %p130 = scmp.eq.s32.totalorder %s16, 0
    %p131 = por %p129, %p130
    %s132 = ssub.s32 %s17, %s29
    %s133 = ssub.s32 %s18, %s25
    %s134 = sor.u32 %s132, %s133
    %p135 = scmp.eq.s32.totalorder %s134, 0
    %s137 = sadd.s32 %s136, 1
    %s138 = scalar_select %p135, %s136, %s137
    %p141 = pneg %p135
    %p142 = scmp.eq.s32.totalorder %s10, 3
    %p143 = por %p141, %p142
    %p144 = scmp.ne.s32.totalorder %s136, %s139
    %p145 = scmp.eq.s32.totalorder %s10, 0
    %p146 = por %p144, %p145
    %p147 = scmp.ne.s32.totalorder %s136, %s139
    %p148 = scmp.eq.s32.totalorder %s15, 3
    %p149 = por %p147, %p148
    %p150 = scmp.ne.s32.totalorder %s139, %s140
    %p151 = scmp.eq.s32.totalorder %s15, 0
    %p152 = por %p150, %p151
    %p153 = scmp.ne.s32.totalorder %s139, %s140
    %p154 = scmp.eq.s32.totalorder %s16, 3
    %p155 = por %p153, %p154
    %p157 = scmp.ne.s32.totalorder %s140, %s156
    %p158 = scmp.eq.s32.totalorder %s16, 0
    %p159 = por %p157, %p158
    %p160 = scmp.le.s32.totalorder 1, %s10
    %p161 = scmp.lt.s32.totalorder %s10, 5
    %p162 = pnand %p160, %p161
    %p163 = pneg %p162
    // Predicated region
    $region9: #{patch_embed_forward.2} parent=5 // pred_check
      _
    $region10: #{patch_embed_forward.2} parent=5 // pred_check_branch
      %165 = sbr.rel (%p162) target = $region12
    $region11: #{patch_embed_forward.2} parent=5 // pred_region
      %s166 = ssub.s32 %s10, 1
      // Predicated region
      $region13: #{patch_embed_forward.2} parent=11 // pred_check
        %p167 = pneg %p103
      $region14: #{patch_embed_forward.2} parent=11 // pred_check_branch
        %169 = sbr.rel (%p167) target = $region16
      $region15: #{patch_embed_forward.2} parent=11 // pred_region
        _
      $region16: #{patch_embed_forward.2} parent=11 // pred_fallthru
        _
      // Predicated region
      $region17: #{patch_embed_forward.2} parent=11 // pred_check
        %p170 = pneg %p124
      $region18: #{patch_embed_forward.2} parent=11 // pred_check_branch
        %172 = sbr.rel (%p170) target = $region20
      $region19: #{patch_embed_forward.2} parent=11 // pred_region
        _
      $region20: #{patch_embed_forward.2} parent=11 // pred_fallthru
        _
    $region12: #{patch_embed_forward.2} parent=5 // pred_fallthru
      _
    %p173 = scmp.lt.s32.totalorder %s10, 4
    // Predicated region
    $region21: #{patch_embed_forward.2} parent=5 // pred_check
      %p174 = pneg %p173
    $region22: #{patch_embed_forward.2} parent=5 // pred_check_branch
      %176 = sbr.rel (%p174) target = $region24
    $region23: #{patch_embed_forward.2} parent=5 // pred_region
      // Predicated region
      $region25: #{patch_embed_forward.2} parent=23 // pred_check
        %p177 = pneg %p44
      $region26: #{patch_embed_forward.2} parent=23 // pred_check_branch
        %179 = sbr.rel (%p177) target = $region28
      $region27: #{patch_embed_forward.2} parent=23 // pred_region
        %s180 = smul.u32 4, %s18
        %s181 = ssub.s32 9, %s180
        %p182 = scmp.lt.s32.totalorder %s181, 4
        %s183 = scalar_select %p182, %s181, 4
        %s184 = smul.u32 64, %s183
        %s185 = smul.u32 %s184, 2
        %s186 = smul.u32 %s185, 2
        %p187 = scmp.lt.s32.totalorder %s17, 1
        %s188 = scalar_select %p187, %s17, 1
        %p189 = scmp.lt.s32.totalorder %s180, 8
        %s190 = scalar_select %p189, %s180, 8
        %s191 = smul.addr %s190, 4
        %s192 = smul.addr %s188, 36
        %s193 = sadd.s32 %s191, %s192
        %s194 = smul.addr %s193, 4
        %s195 = scalar_lea.vmem %s0, %s194
        %s196 = smul.u32 4, %s18
        %s197 = ssub.s32 9, %s196
        %p198 = scmp.lt.s32.totalorder %s197, 4
        %s199 = scalar_select %p198, %s197, 4
        %s200 = smul.u32 64, %s199
        %s201 = smul.u32 %s200, 2
        %s202 = smul.u32 %s201, 2
      $region28: #{patch_embed_forward.2} parent=23 // pred_fallthru
        _
      // Predicated region
      $region29: #{patch_embed_forward.2} parent=23 // pred_check
        %p203 = pneg %p76
      $region30: #{patch_embed_forward.2} parent=23 // pred_check_branch
        %205 = sbr.rel (%p203) target = $region32
      $region31: #{patch_embed_forward.2} parent=23 // pred_region
        %s206 = sadd.s32 %s18, 1
        %s207 = smul.u32 %s206, 4
        %p208 = scmp.lt.s32.totalorder %s17, 1
        %s209 = scalar_select %p208, %s17, 1
        %p210 = scmp.lt.s32.totalorder %s207, 8
        %s211 = scalar_select %p210, %s207, 8
        %s212 = smul.addr %s211, 4
        %s213 = smul.addr %s209, 36
        %s214 = sadd.s32 %s212, %s213
        %s215 = smul.addr %s214, 4
        %s216 = scalar_lea.vmem %s1, %s215
        %s217 = sadd.s32 %s18, 1
        %s218 = smul.u32 %s217, 4
      $region32: #{patch_embed_forward.2} parent=23 // pred_fallthru
        _
    $region24: #{patch_embed_forward.2} parent=5 // pred_fallthru
      _
    %p219 = scmp.le.s32.totalorder 1, %s10
    %p220 = scmp.lt.s32.totalorder %s10, 5
    %p221 = pnand %p219, %p220
    %p222 = pneg %p221
    // Predicated region
    $region33: #{patch_embed_forward.2} parent=5 // pred_check
      _
    $region34: #{patch_embed_forward.2} parent=5 // pred_check_branch
      %224 = sbr.rel (%p221) target = $region36
    $region35: #{patch_embed_forward.2} parent=5 // pred_region
      %s225 = ssub.s32 %s10, 1
      %s226 = smul.u32 4, %s20
      %s227 = ssub.s32 9, %s226
      %p228 = scmp.lt.s32.totalorder %s227, 4
      %s229 = scalar_select %p228, %s227, 4
      %s230 = smul.u32 64, %s229
      %s231 = smul.u32 %s230, 2
      %s232 = smul.u32 %s231, 2
      %p233 = scmp.lt.s32.totalorder %s19, 1
      %s234 = scalar_select %p233, %s19, 1
      %p235 = scmp.lt.s32.totalorder %s226, 8
      %s236 = scalar_select %p235, %s226, 8
      %s237 = smul.addr %s236, 4
      %s238 = smul.addr %s234, 36
      %s239 = sadd.s32 %s237, %s238
      %s240 = smul.addr %s239, 4
      %s241 = scalar_lea.vmem %s0, %s240
      %p242 = pneg %p50
      %p243 = pneg %p47
      %s244 = sadd.s32 %s20, 1
      %s245 = smul.u32 %s244, 4
      %p246 = scmp.lt.s32.totalorder %s19, 1
      %s247 = scalar_select %p246, %s19, 1
      %p248 = scmp.lt.s32.totalorder %s245, 8
      %s249 = scalar_select %p248, %s245, 8
      %s250 = smul.addr %s249, 4
      %s251 = smul.addr %s247, 36
      %s252 = sadd.s32 %s250, %s251
      %s253 = smul.addr %s252, 4
      %s254 = scalar_lea.vmem %s1, %s253
      %p255 = pneg %p82
      %p256 = pneg %p79
      %p257 = pneg %p103
      %p258 = pneg %p100
      %p259 = pneg %p124
      %p260 = pneg %p121
      %p261 = pneg %p152
      %p262 = pneg %p149
      %s263 = smul.u32 4, %s20
      %p264 = scmp.lt.s32.totalorder %s19, 1
      %s265 = scalar_select %p264, %s19, 1
      %p266 = scmp.lt.s32.totalorder %s263, 7
      %s267 = scalar_select %p266, %s263, 7
      %s268 = smul.addr %s265, 8
      %s269 = sadd.s32 %s267, %s268
      %s270 = smul.addr %s269, 4
      %s271 = scalar_lea.vmem %s4, %s270
      %s272 = smul.u32 4, %s20
      %s273 = ssub.s32 9, %s272
      %p274 = scmp.lt.s32.totalorder %s273, 4
      %s275 = scalar_select %p274, %s273, 4
      %s276 = smul.u32 64, %s275
      %s277 = smul.u32 %s276, 2
      %s278 = smul.u32 %s277, 2
      %p279 = scmp.lt.s32.totalorder %s19, 1
      %s280 = scalar_select %p279, %s19, 1
      %p281 = scmp.lt.s32.totalorder %s272, 8
      %s282 = scalar_select %p281, %s272, 8
      %s283 = smul.addr %s282, 4
      %s284 = smul.addr %s280, 36
      %s285 = sadd.s32 %s283, %s284
      %s286 = smul.addr %s285, 4
      %s287 = scalar_lea.vmem %s0, %s286
      %s288 = smul.u32 4, %s20
      %s289 = ssub.s32 9, %s288
      %p290 = scmp.lt.s32.totalorder %s289, 4
      %s291 = scalar_select %p290, %s289, 4
      %s292 = smul.u32 64, %s291
      %s293 = smul.u32 %s292, 2
      %s294 = smul.u32 %s293, 2
      %s295 = sadd.s32 %s20, 1
      %s296 = smul.u32 %s295, 4
      %p297 = scmp.lt.s32.totalorder %s19, 1
      %s298 = scalar_select %p297, %s19, 1
      %p299 = scmp.lt.s32.totalorder %s296, 8
      %s300 = scalar_select %p299, %s296, 8
      %s301 = smul.addr %s300, 4
      %s302 = smul.addr %s298, 36
      %s303 = sadd.s32 %s301, %s302
      %s304 = smul.addr %s303, 4
      %s305 = scalar_lea.vmem %s1, %s304
      %s306 = sadd.s32 %s20, 1
      %s307 = smul.u32 %s306, 4
      %s308 = smul.u32 4, %s20
      %p309 = scmp.lt.s32.totalorder %s19, 1
      %s310 = scalar_select %p309, %s19, 1
      %p311 = scmp.lt.s32.totalorder %s308, 7
      %s312 = scalar_select %p311, %s308, 7
      %s313 = smul.addr %s310, 8
      %s314 = sadd.s32 %s312, %s313
      %s315 = smul.addr %s314, 4
      %s316 = scalar_lea.vmem %s4, %s315
      %s317 = smul.u32 4, %s20
      %v319 = vld [vmem:[%s287] sm:$0xf]
      %v320 = vld [vmem:[%s287 + $0x4] sm:$0x1]
      %v321 = vld [vmem:[%s287 + $0x8] sm:$0xf]
      %v322 = vld [vmem:[%s287 + $0xc] sm:$0x1]
      %v323 = vld [vmem:[%s287 + $0x10] sm:$0xf]
      %v324 = vld [vmem:[%s287 + $0x14] sm:$0x1]
      %v325 = vld [vmem:[%s287 + $0x18] sm:$0xf]
      %v326 = vld [vmem:[%s287 + $0x1c] sm:$0x1]
      %v327 = vld [vmem:[%s287 + $0x20] sm:$0xf]
      %v328 = vld [vmem:[%s287 + $0x24] sm:$0x1]
      %v329 = vld [vmem:[%s287 + $0x28] sm:$0xf]
      %v330 = vld [vmem:[%s287 + $0x2c] sm:$0x1]
      %v331 = vld [vmem:[%s287 + $0x30] sm:$0xf]
      %v332 = vld [vmem:[%s287 + $0x34] sm:$0x1]
      %v333 = vld [vmem:[%s287 + $0x38] sm:$0xf]
      %v334 = vld [vmem:[%s287 + $0x3c] sm:$0x1]
      %v335 = vld [vmem:[%s305] sm:$0xf]
      %v336 = vld [vmem:[%s305 + $0x4] sm:$0x1]
      %v337 = vld [vmem:[%s2] sm:$0xf]
      %v338 = vld [vmem:[%s2 + $0x4] sm:$0xf]
      %v339 = vld [vmem:[%s2 + $0x8] sm:$0xf]
      %v349 = vunpack.c.l.s4 1966171168
      %v350 = vunpack.c.0.s8 %v349
      %v351 = vlaneseq
      %v352 = vshrl.u32 %v351, 7
      %v353 = vsub.s32 %v350, %v352
      %v354 = vrot.slane %v319, %v353
      %v355 = vcombine.high %v354, %v354
      %v357 = vunpack.c.l.s4 1966171168
      %v358 = vunpack.c.0.s8 %v357
      %v359 = vlaneseq
      %v360 = vshrl.u32 %v359, 7
      %v361 = vsub.s32 %v358, %v360
      %v362 = vrot.slane %v354, %v361
      %v364 = vunpack.c.l.s4 1966171168
      %v365 = vunpack.c.0.s8 %v364
      %v366 = vlaneseq
      %v367 = vshrl.u32 %v366, 7
      %v368 = vsub.s32 %v365, %v367
      %v369 = vrot.slane %v355, %v368
      %v370 = vcombine.high %v362, %v362
      %v371 = vcombine.high %v369, %v369
      %v373 = vunpack.c.l.s4 1966171168
      %v374 = vunpack.c.0.s8 %v373
      %v375 = vlaneseq
      %v376 = vshrl.u32 %v375, 7
      %v377 = vsub.s32 %v374, %v376
      %v378 = vrot.slane %v320, %v377
      %v380 = vunpack.c.l.s4 1966171168
      %v381 = vunpack.c.0.s8 %v380
      %v382 = vlaneseq
      %v383 = vshrl.u32 %v382, 7
      %v384 = vsub.s32 %v381, %v383
      %v385 = vrot.slane %v378, %v384
      %v387 = vunpack.c.l.s4 1966171168
      %v388 = vunpack.c.0.s8 %v387
      %v389 = vlaneseq
      %v390 = vshrl.u32 %v389, 7
      %v391 = vsub.s32 %v388, %v390
      %v392 = vrot.slane %v323, %v391
      %v393 = vcombine.high %v392, %v392
      %v395 = vunpack.c.l.s4 1966171168
      %v396 = vunpack.c.0.s8 %v395
      %v397 = vlaneseq
      %v398 = vshrl.u32 %v397, 7
      %v399 = vsub.s32 %v396, %v398
      %v400 = vrot.slane %v392, %v399
      %v402 = vunpack.c.l.s4 1966171168
      %v403 = vunpack.c.0.s8 %v402
      %v404 = vlaneseq
      %v405 = vshrl.u32 %v404, 7
      %v406 = vsub.s32 %v403, %v405
      %v407 = vrot.slane %v393, %v406
      %v408 = vcombine.high %v400, %v400
      %v409 = vcombine.high %v407, %v407
      %v411 = vunpack.c.l.s4 1966171168
      %v412 = vunpack.c.0.s8 %v411
      %v413 = vlaneseq
      %v414 = vshrl.u32 %v413, 7
      %v415 = vsub.s32 %v412, %v414
      %v416 = vrot.slane %v324, %v415
      %v418 = vunpack.c.l.s4 1966171168
      %v419 = vunpack.c.0.s8 %v418
      %v420 = vlaneseq
      %v421 = vshrl.u32 %v420, 7
      %v422 = vsub.s32 %v419, %v421
      %v423 = vrot.slane %v416, %v422
      %v425 = vunpack.c.l.s4 1966171168
      %v426 = vunpack.c.0.s8 %v425
      %v427 = vlaneseq
      %v428 = vshrl.u32 %v427, 7
      %v429 = vsub.s32 %v426, %v428
      %v430 = vrot.slane %v327, %v429
      %v431 = vcombine.high %v430, %v430
      %v433 = vunpack.c.l.s4 1966171168
      %v434 = vunpack.c.0.s8 %v433
      %v435 = vlaneseq
      %v436 = vshrl.u32 %v435, 7
      %v437 = vsub.s32 %v434, %v436
      %v438 = vrot.slane %v430, %v437
      %v440 = vunpack.c.l.s4 1966171168
      %v441 = vunpack.c.0.s8 %v440
      %v442 = vlaneseq
      %v443 = vshrl.u32 %v442, 7
      %v444 = vsub.s32 %v441, %v443
      %v445 = vrot.slane %v431, %v444
      %v446 = vcombine.high %v438, %v438
      %v447 = vcombine.high %v445, %v445
      %v449 = vunpack.c.l.s4 1966171168
      %v450 = vunpack.c.0.s8 %v449
      %v451 = vlaneseq
      %v452 = vshrl.u32 %v451, 7
      %v453 = vsub.s32 %v450, %v452
      %v454 = vrot.slane %v328, %v453
      %v456 = vunpack.c.l.s4 1966171168
      %v457 = vunpack.c.0.s8 %v456
      %v458 = vlaneseq
      %v459 = vshrl.u32 %v458, 7
      %v460 = vsub.s32 %v457, %v459
      %v461 = vrot.slane %v454, %v460
      %v463 = vunpack.c.l.s4 1966171168
      %v464 = vunpack.c.0.s8 %v463
      %v465 = vlaneseq
      %v466 = vshrl.u32 %v465, 7
      %v467 = vsub.s32 %v464, %v466
      %v468 = vrot.slane %v331, %v467
      %v469 = vcombine.high %v468, %v468
      %v471 = vunpack.c.l.s4 1966171168
      %v472 = vunpack.c.0.s8 %v471
      %v473 = vlaneseq
      %v474 = vshrl.u32 %v473, 7
      %v475 = vsub.s32 %v472, %v474
      %v476 = vrot.slane %v468, %v475
      %v478 = vunpack.c.l.s4 1966171168
      %v479 = vunpack.c.0.s8 %v478
      %v480 = vlaneseq
      %v481 = vshrl.u32 %v480, 7
      %v482 = vsub.s32 %v479, %v481
      %v483 = vrot.slane %v469, %v482
      %v484 = vcombine.high %v476, %v476
      %v485 = vcombine.high %v483, %v483
      %v487 = vunpack.c.l.s4 1966171168
      %v488 = vunpack.c.0.s8 %v487
      %v489 = vlaneseq
      %v490 = vshrl.u32 %v489, 7
      %v491 = vsub.s32 %v488, %v490
      %v492 = vrot.slane %v332, %v491
      %v494 = vunpack.c.l.s4 1966171168
      %v495 = vunpack.c.0.s8 %v494
      %v496 = vlaneseq
      %v497 = vshrl.u32 %v496, 7
      %v498 = vsub.s32 %v495, %v497
      %v499 = vrot.slane %v492, %v498
      %v500 = vunpack.i.l.s16 %v362
      %v501 = vunpack.i.h.s16 %v362
      %v502 = vunpack.i.l.s16 %v369
      %v503 = vunpack.i.h.s16 %v369
      %v504 = vunpack.i.l.s16 %v370
      %v505 = vunpack.i.h.s16 %v370
      %v506 = vunpack.i.l.s16 %v371
      %v507 = vunpack.i.h.s16 %v371
      %v508 = vunpack.i.l.s16 %v385
      %v509 = vunpack.i.l.s16 %v400
      %v510 = vunpack.i.h.s16 %v400
      %v511 = vunpack.i.l.s16 %v407
      %v512 = vunpack.i.h.s16 %v407
      %v513 = vunpack.i.l.s16 %v408
      %v514 = vunpack.i.h.s16 %v408
      %v515 = vunpack.i.l.s16 %v409
      %v516 = vunpack.i.h.s16 %v409
      %v517 = vunpack.i.l.s16 %v423
      %v518 = vunpack.i.l.s16 %v438
      %v519 = vunpack.i.h.s16 %v438
      %v520 = vunpack.i.l.s16 %v445
      %v521 = vunpack.i.h.s16 %v445
      %v522 = vunpack.i.l.s16 %v446
      %v523 = vunpack.i.h.s16 %v446
      %v524 = vunpack.i.l.s16 %v447
      %v525 = vunpack.i.h.s16 %v447
      %v526 = vunpack.i.l.s16 %v461
      %v527 = vunpack.i.l.s16 %v476
      %v528 = vunpack.i.h.s16 %v476
      %v529 = vunpack.i.l.s16 %v483
      %v530 = vunpack.i.h.s16 %v483
      %v531 = vunpack.i.l.s16 %v484
      %v532 = vunpack.i.h.s16 %v484
      %v533 = vunpack.i.l.s16 %v485
      %v534 = vunpack.i.h.s16 %v485
      %v535 = vunpack.i.l.s16 %v499
      %v536 = vpack.i.b16 %v501, %v500
      %v537 = vpack.i.b16 %v503, %v502
      %v538 = vpack.i.b16 %v505, %v504
      %v539 = vpack.i.b16 %v507, %v506
      %v540 = vpack.i.b16 %v509, %v508
      %v541 = vpack.i.b16 %v511, %v510
      %v542 = vpack.i.b16 %v513, %v512
      %v543 = vpack.i.b16 %v515, %v514
      %v544 = vpack.i.b16 %v517, %v516
      %v545 = vpack.i.b16 %v519, %v518
      %v546 = vpack.i.b16 %v521, %v520
      %v547 = vpack.i.b16 %v523, %v522
      %v548 = vpack.i.b16 %v525, %v524
      %v549 = vpack.i.b16 %v527, %v526
      %v550 = vpack.i.b16 %v529, %v528
      %v551 = vpack.i.b16 %v531, %v530
      %v552 = vpack.i.b16 %v533, %v532
      %v553 = vpack.i.b16 %v535, %v534
      %v554 = vcombine.low %v536, %v537
      %v555 = vcombine.low %v538, %v539
      %v556 = vcombine.low %v540, %v541
      %v557 = vcombine.low %v542, %v543
      %v559 = vunpack.c.l.s4 1966171168
      %v560 = vunpack.c.0.s8 %v559
      %v561 = vlaneseq
      %v562 = vshrl.u32 %v561, 7
      %v563 = vsub.s32 %v560, %v562
      %v564 = vrot.slane %v554, %v563
      %v566 = vunpack.c.l.s4 1966171168
      %v567 = vunpack.c.0.s8 %v566
      %v568 = vlaneseq
      %v569 = vshrl.u32 %v568, 7
      %v570 = vsub.s32 %v567, %v569
      %v571 = vrot.slane %v555, %v570
      %v573 = vunpack.c.l.s4 1966171168
      %v574 = vunpack.c.0.s8 %v573
      %v575 = vlaneseq
      %v576 = vshrl.u32 %v575, 7
      %v577 = vsub.s32 %v574, %v576
      %v578 = vrot.slane %v556, %v577
      %v580 = vunpack.c.l.s4 1966171168
      %v581 = vunpack.c.0.s8 %v580
      %v582 = vlaneseq
      %v583 = vshrl.u32 %v582, 7
      %v584 = vsub.s32 %v581, %v583
      %v585 = vrot.slane %v557, %v584
      %v586 = vcombine.low %v564, %v571
      %v587 = vcombine.low %v578, %v585
      %v589 = vunpack.c.l.s4 1966171168
      %v590 = vunpack.c.0.s8 %v589
      %v591 = vlaneseq
      %v592 = vshrl.u32 %v591, 7
      %v593 = vsub.s32 %v590, %v592
      %v594 = vrot.slane %v586, %v593
      %v596 = vunpack.c.l.s4 1966171168
      %v597 = vunpack.c.0.s8 %v596
      %v598 = vlaneseq
      %v599 = vshrl.u32 %v598, 7
      %v600 = vsub.s32 %v597, %v599
      %v601 = vrot.slane %v587, %v600
      %v602 = vcombine.low %v594, %v601
      %v603 = vcombine.low %v544, %v545
      %v604 = vcombine.low %v546, %v547
      %v605 = vcombine.low %v548, %v549
      %v606 = vcombine.low %v550, %v551
      %v608 = vunpack.c.l.s4 1966171168
      %v609 = vunpack.c.0.s8 %v608
      %v610 = vlaneseq
      %v611 = vshrl.u32 %v610, 7
      %v612 = vsub.s32 %v609, %v611
      %v613 = vrot.slane %v603, %v612
      %v615 = vunpack.c.l.s4 1966171168
      %v616 = vunpack.c.0.s8 %v615
      %v617 = vlaneseq
      %v618 = vshrl.u32 %v617, 7
      %v619 = vsub.s32 %v616, %v618
      %v620 = vrot.slane %v604, %v619
      %v622 = vunpack.c.l.s4 1966171168
      %v623 = vunpack.c.0.s8 %v622
      %v624 = vlaneseq
      %v625 = vshrl.u32 %v624, 7
      %v626 = vsub.s32 %v623, %v625
      %v627 = vrot.slane %v605, %v626
      %v629 = vunpack.c.l.s4 1966171168
      %v630 = vunpack.c.0.s8 %v629
      %v631 = vlaneseq
      %v632 = vshrl.u32 %v631, 7
      %v633 = vsub.s32 %v630, %v632
      %v634 = vrot.slane %v606, %v633
      %v635 = vcombine.low %v613, %v620
      %v636 = vcombine.low %v627, %v634
      %v638 = vunpack.c.l.s4 1966171168
      %v639 = vunpack.c.0.s8 %v638
      %v640 = vlaneseq
      %v641 = vshrl.u32 %v640, 7
      %v642 = vsub.s32 %v639, %v641
      %v643 = vrot.slane %v635, %v642
      %v645 = vunpack.c.l.s4 1966171168
      %v646 = vunpack.c.0.s8 %v645
      %v647 = vlaneseq
      %v648 = vshrl.u32 %v647, 7
      %v649 = vsub.s32 %v646, %v648
      %v650 = vrot.slane %v636, %v649
      %v651 = vcombine.low %v643, %v650
      %v652 = vcombine.low %v552, %v553
      %v654 = vunpack.c.l.s4 1966171168
      %v655 = vunpack.c.0.s8 %v654
      %v656 = vlaneseq
      %v657 = vshrl.u32 %v656, 7
      %v658 = vsub.s32 %v655, %v657
      %v659 = vrot.slane %v652, %v658
      %v661 = vunpack.c.l.s4 1966171168
      %v662 = vunpack.c.0.s8 %v661
      %v663 = vlaneseq
      %v664 = vshrl.u32 %v663, 7
      %v665 = vsub.s32 %v662, %v664
      %v666 = vrot.slane %v659, %v665
      %vm667 = vcmask 64512
      %v669 = vsel %vm667, %v602, 0
      %v672 = vsel %vm667, %v651, 0
      %v675 = vsel %vm667, %v666, 0
      %vm677 = vcmask 1043456
      %v679 = vsel %vm677, %v337, 0
      %681 = vmatprep.subr.bf16.mxu0 0
      %682 = vmatpush1.bf16.msra.mxu0 %v679
      %683 = vmatprep.subr.bf16.mxu0 0
      %684 = vmatpush1.bf16.msra.mxu0 0
      %685 = vmatprep.subr.bf16.mxu0 0
      %686 = vmatpush1.bf16.msra.mxu0 0
      %687 = vmatprep.subr.bf16.mxu0 0
      %688 = vmatpush1.bf16.msra.mxu0 0
      %689 = vmatprep.subr.bf16.mxu0 0
      %690 = vmatpush1.bf16.msra.mxu0 0
      %691 = vmatprep.subr.bf16.mxu0 0
      %692 = vmatpush1.bf16.msra.mxu0 0
      %693 = vmatprep.subr.bf16.mxu0 0
      %694 = vmatpush1.bf16.msra.mxu0 0
      %695 = vmatprep.subr.bf16.mxu0 0
      %696 = vmatpush1.bf16.msra.mxu0 0
      %697 = vmatprep.subr.bf16.mxu0 0
      %698 = vmatpush1.bf16.msra.mxu0 0
      %699 = vmatprep.subr.bf16.mxu0 0
      %700 = vmatpush1.bf16.msra.mxu0 0
      %701 = vmatprep.subr.bf16.mxu0 0
      %702 = vmatpush1.bf16.msra.mxu0 0
      %703 = vmatprep.subr.bf16.mxu0 0
      %704 = vmatpush1.bf16.msra.mxu0 0
      %705 = vmatprep.subr.bf16.mxu0 0
      %706 = vmatpush1.bf16.msra.mxu0 0
      %707 = vmatprep.subr.bf16.mxu0 0
      %708 = vmatpush1.bf16.msra.mxu0 0
      %709 = vmatprep.subr.bf16.mxu0 0
      %710 = vmatpush1.bf16.msra.mxu0 0
      %711 = vmatprep.subr.bf16.mxu0 0
      %712 = vmatpush1.bf16.msra.mxu0 0
      %713 = vmatprep.mubr.bf16.mxu0 0
      %714 = vmatmul.mubr.bf16.gmra.mrb[0].mxu0 %v669
      %v715 = vpop.f32.mrb[0].mxu0
      %v716 = vadd.f32 0.0, %v715
      %v717 = vpop.f32.mrb[0].mxu0
      %v718 = vpop.f32.mrb[0].mxu0
      %v719 = vadd.f32 0.0, %v718
      %v720 = vpop.f32.mrb[0].mxu0
      %721 = vmatprep.mubr.bf16.mxu0 0
      %722 = vmatmul.mubr.bf16.gmra.mrb[0].mxu0 %v672
      %v723 = vpop.f32.mrb[0].mxu0
      %v724 = vadd.f32 0.0, %v723
      %v725 = vpop.f32.mrb[0].mxu0
      %v726 = vpop.f32.mrb[0].mxu0
      %v727 = vadd.f32 0.0, %v726
      %v728 = vpop.f32.mrb[0].mxu0
      %729 = vmatprep.mubr.bf16.mxu0 0
      %730 = vmatmul.mubr.bf16.gmra.mrb[0].mxu0 %v675
      %v731 = vpop.f32.mrb[0].mxu0
      %v732 = vadd.f32 0.0, %v731
      %v733 = vpop.f32.mrb[0].mxu0
      %v734 = vpop.f32.mrb[0].mxu0
      %v735 = vpop.f32.mrb[0].mxu0
      %736 = vdwg.mxu0
      %v742 = vcombine.high %v716, %v716
      %v744 = vunpack.c.l.s4 1966171168
      %v745 = vunpack.c.0.s8 %v744
      %v746 = vlaneseq
      %v747 = vshrl.u32 %v746, 7
      %v748 = vsub.s32 %v745, %v747
      %v749 = vrot.slane %v716, %v748
      %v751 = vunpack.c.l.s4 1966171168
      %v752 = vunpack.c.0.s8 %v751
      %v753 = vlaneseq
      %v754 = vshrl.u32 %v753, 7
      %v755 = vsub.s32 %v752, %v754
      %v756 = vrot.slane %v742, %v755
      %v757 = vcombine.high %v749, %v749
      %v758 = vcombine.high %v756, %v756
      %v760 = vunpack.c.l.s4 1966171168
      %v761 = vunpack.c.0.s8 %v760
      %v762 = vlaneseq
      %v763 = vshrl.u32 %v762, 7
      %v764 = vsub.s32 %v761, %v763
      %v765 = vrot.slane %v749, %v764
      %v767 = vunpack.c.l.s4 1966171168
      %v768 = vunpack.c.0.s8 %v767
      %v769 = vlaneseq
      %v770 = vshrl.u32 %v769, 7
      %v771 = vsub.s32 %v768, %v770
      %v772 = vrot.slane %v756, %v771
      %v774 = vunpack.c.l.s4 1966171168
      %v775 = vunpack.c.0.s8 %v774
      %v776 = vlaneseq
      %v777 = vshrl.u32 %v776, 7
      %v778 = vsub.s32 %v775, %v777
      %v779 = vrot.slane %v757, %v778
      %v781 = vunpack.c.l.s4 1966171168
      %v782 = vunpack.c.0.s8 %v781
      %v783 = vlaneseq
      %v784 = vshrl.u32 %v783, 7
      %v785 = vsub.s32 %v782, %v784
      %v786 = vrot.slane %v758, %v785
      %v787 = vcombine.high %v765, %v765
      %v788 = vcombine.high %v772, %v772
      %v789 = vcombine.high %v779, %v779
      %v790 = vcombine.high %v786, %v786
      %v791 = vcombine.high %v719, %v719
      %v793 = vunpack.c.l.s4 1966171168
      %v794 = vunpack.c.0.s8 %v793
      %v795 = vlaneseq
      %v796 = vshrl.u32 %v795, 7
      %v797 = vsub.s32 %v794, %v796
      %v798 = vrot.slane %v719, %v797
      %v800 = vunpack.c.l.s4 1966171168
      %v801 = vunpack.c.0.s8 %v800
      %v802 = vlaneseq
      %v803 = vshrl.u32 %v802, 7
      %v804 = vsub.s32 %v801, %v803
      %v805 = vrot.slane %v791, %v804
      %v806 = vcombine.high %v798, %v798
      %v807 = vcombine.high %v805, %v805
      %v809 = vunpack.c.l.s4 1966171168
      %v810 = vunpack.c.0.s8 %v809
      %v811 = vlaneseq
      %v812 = vshrl.u32 %v811, 7
      %v813 = vsub.s32 %v810, %v812
      %v814 = vrot.slane %v798, %v813
      %v816 = vunpack.c.l.s4 1966171168
      %v817 = vunpack.c.0.s8 %v816
      %v818 = vlaneseq
      %v819 = vshrl.u32 %v818, 7
      %v820 = vsub.s32 %v817, %v819
      %v821 = vrot.slane %v805, %v820
      %v823 = vunpack.c.l.s4 1966171168
      %v824 = vunpack.c.0.s8 %v823
      %v825 = vlaneseq
      %v826 = vshrl.u32 %v825, 7
      %v827 = vsub.s32 %v824, %v826
      %v828 = vrot.slane %v806, %v827
      %v830 = vunpack.c.l.s4 1966171168
      %v831 = vunpack.c.0.s8 %v830
      %v832 = vlaneseq
      %v833 = vshrl.u32 %v832, 7
      %v834 = vsub.s32 %v831, %v833
      %v835 = vrot.slane %v807, %v834
      %v836 = vcombine.high %v814, %v814
      %v837 = vcombine.high %v821, %v821
      %v838 = vcombine.high %v828, %v828
      %v839 = vcombine.high %v835, %v835
      %v840 = vcombine.high %v724, %v724
      %v842 = vunpack.c.l.s4 1966171168
      %v843 = vunpack.c.0.s8 %v842
      %v844 = vlaneseq
      %v845 = vshrl.u32 %v844, 7
      %v846 = vsub.s32 %v843, %v845
      %v847 = vrot.slane %v724, %v846
      %v849 = vunpack.c.l.s4 1966171168
      %v850 = vunpack.c.0.s8 %v849
      %v851 = vlaneseq
      %v852 = vshrl.u32 %v851, 7
      %v853 = vsub.s32 %v850, %v852
      %v854 = vrot.slane %v840, %v853
      %v855 = vcombine.high %v847, %v847
      %v856 = vcombine.high %v854, %v854
      %v858 = vunpack.c.l.s4 1966171168
      %v859 = vunpack.c.0.s8 %v858
      %v860 = vlaneseq
      %v861 = vshrl.u32 %v860, 7
      %v862 = vsub.s32 %v859, %v861
      %v863 = vrot.slane %v847, %v862
      %v865 = vunpack.c.l.s4 1966171168
      %v866 = vunpack.c.0.s8 %v865
      %v867 = vlaneseq
      %v868 = vshrl.u32 %v867, 7
      %v869 = vsub.s32 %v866, %v868
      %v870 = vrot.slane %v854, %v869
      %v872 = vunpack.c.l.s4 1966171168
      %v873 = vunpack.c.0.s8 %v872
      %v874 = vlaneseq
      %v875 = vshrl.u32 %v874, 7
      %v876 = vsub.s32 %v873, %v875
      %v877 = vrot.slane %v855, %v876
      %v879 = vunpack.c.l.s4 1966171168
      %v880 = vunpack.c.0.s8 %v879
      %v881 = vlaneseq
      %v882 = vshrl.u32 %v881, 7
      %v883 = vsub.s32 %v880, %v882
      %v884 = vrot.slane %v856, %v883
      %v885 = vcombine.high %v863, %v863
      %v886 = vcombine.high %v870, %v870
      %v887 = vcombine.high %v877, %v877
      %v888 = vcombine.high %v884, %v884
      %v889 = vcombine.high %v727, %v727
      %v891 = vunpack.c.l.s4 1966171168
      %v892 = vunpack.c.0.s8 %v891
      %v893 = vlaneseq
      %v894 = vshrl.u32 %v893, 7
      %v895 = vsub.s32 %v892, %v894
      %v896 = vrot.slane %v727, %v895
      %v898 = vunpack.c.l.s4 1966171168
      %v899 = vunpack.c.0.s8 %v898
      %v900 = vlaneseq
      %v901 = vshrl.u32 %v900, 7
      %v902 = vsub.s32 %v899, %v901
      %v903 = vrot.slane %v889, %v902
      %v904 = vcombine.high %v896, %v896
      %v905 = vcombine.high %v903, %v903
      %v907 = vunpack.c.l.s4 1966171168
      %v908 = vunpack.c.0.s8 %v907
      %v909 = vlaneseq
      %v910 = vshrl.u32 %v909, 7
      %v911 = vsub.s32 %v908, %v910
      %v912 = vrot.slane %v896, %v911
      %v914 = vunpack.c.l.s4 1966171168
      %v915 = vunpack.c.0.s8 %v914
      %v916 = vlaneseq
      %v917 = vshrl.u32 %v916, 7
      %v918 = vsub.s32 %v915, %v917
      %v919 = vrot.slane %v903, %v918
      %v921 = vunpack.c.l.s4 1966171168
      %v922 = vunpack.c.0.s8 %v921
      %v923 = vlaneseq
      %v924 = vshrl.u32 %v923, 7
      %v925 = vsub.s32 %v922, %v924
      %v926 = vrot.slane %v904, %v925
      %v928 = vunpack.c.l.s4 1966171168
      %v929 = vunpack.c.0.s8 %v928
      %v930 = vlaneseq
      %v931 = vshrl.u32 %v930, 7
      %v932 = vsub.s32 %v929, %v931
      %v933 = vrot.slane %v905, %v932
      %v934 = vcombine.high %v912, %v912
      %v935 = vcombine.high %v919, %v919
      %v936 = vcombine.high %v926, %v926
      %v937 = vcombine.high %v933, %v933
      %v939 = vunpack.c.l.s4 1966171168
      %v940 = vunpack.c.0.s8 %v939
      %v941 = vlaneseq
      %v942 = vshrl.u32 %v941, 7
      %v943 = vsub.s32 %v940, %v942
      %v944 = vrot.slane %v732, %v943
      %v945 = vcombine.high %v944, %v944
      %v947 = vunpack.c.l.s4 1966171168
      %v948 = vunpack.c.0.s8 %v947
      %v949 = vlaneseq
      %v950 = vshrl.u32 %v949, 7
      %v951 = vsub.s32 %v948, %v950
      %v952 = vrot.slane %v944, %v951
      %v954 = vunpack.c.l.s4 1966171168
      %v955 = vunpack.c.0.s8 %v954
      %v956 = vlaneseq
      %v957 = vshrl.u32 %v956, 7
      %v958 = vsub.s32 %v955, %v957
      %v959 = vrot.slane %v945, %v958
      %v960 = vcombine.high %v952, %v952
      %v961 = vcombine.high %v959, %v959
      %v994 = vadd.f32 %v765, 0.0
      %v995 = vadd.f32 %v779, 0.0
      %v996 = vadd.f32 %v787, 0.0
      %v997 = vadd.f32 %v789, 0.0
      %v998 = vadd.f32 %v772, 0.0
      %v999 = vadd.f32 %v786, 0.0
      %v1000 = vadd.f32 %v788, 0.0
      %v1001 = vadd.f32 %v790, 0.0
      %v1002 = vadd.f32 %v828, 0.0
      %v1003 = vadd.f32 %v836, 0.0
      %v1004 = vadd.f32 %v838, 0.0
      %v1005 = vadd.f32 %v821, 0.0
      %v1006 = vadd.f32 %v835, 0.0
      %v1007 = vadd.f32 %v837, 0.0
      %v1008 = vadd.f32 %v839, 0.0
      %v1009 = vadd.f32 %v863, 0.0
      %v1010 = vadd.f32 %v885, 0.0
      %v1011 = vadd.f32 %v887, 0.0
      %v1012 = vadd.f32 %v870, 0.0
      %v1013 = vadd.f32 %v884, 0.0
      %v1014 = vadd.f32 %v886, 0.0
      %v1015 = vadd.f32 %v888, 0.0
      %v1016 = vadd.f32 %v912, 0.0
      %v1017 = vadd.f32 %v926, 0.0
      %v1018 = vadd.f32 %v936, 0.0
      %v1019 = vadd.f32 %v919, 0.0
      %v1020 = vadd.f32 %v933, 0.0
      %v1021 = vadd.f32 %v935, 0.0
      %v1022 = vadd.f32 %v937, 0.0
      %v1023 = vadd.f32 %v952, 0.0
      %v1024 = vadd.f32 %v959, 0.0
      %v1025 = vadd.f32 %v960, 0.0
      %1026 = vrot.lane.b32.xlu0 %v779, 112
      %v1027 = vpop.permute.xlu0 %1026
      %1028 = vrot.lane.b32.xlu0 %v787, 112
      %v1029 = vpop.permute.xlu0 %1028
      %1030 = vrot.lane.b32.xlu0 %v789, 112
      %v1031 = vpop.permute.xlu0 %1030
      %1032 = vrot.lane.b32.xlu0 %v772, 112
      %v1033 = vpop.permute.xlu0 %1032
      %1034 = vrot.lane.b32.xlu0 %v786, 112
      %v1035 = vpop.permute.xlu0 %1034
      %1036 = vrot.lane.b32.xlu0 %v788, 112
      %v1037 = vpop.permute.xlu0 %1036
      %1038 = vrot.lane.b32.xlu0 %v790, 112
      %v1039 = vpop.permute.xlu0 %1038
      %1040 = vrot.lane.b32.xlu0 %v814, 112
      %v1041 = vpop.permute.xlu0 %1040
      %1042 = vrot.lane.b32.xlu0 %v836, 112
      %v1043 = vpop.permute.xlu0 %1042
      %1044 = vrot.lane.b32.xlu0 %v838, 112
      %v1045 = vpop.permute.xlu0 %1044
      %1046 = vrot.lane.b32.xlu0 %v821, 112
      %v1047 = vpop.permute.xlu0 %1046
      %1048 = vrot.lane.b32.xlu0 %v835, 112
      %v1049 = vpop.permute.xlu0 %1048
      %1050 = vrot.lane.b32.xlu0 %v837, 112
      %v1051 = vpop.permute.xlu0 %1050
      %1052 = vrot.lane.b32.xlu0 %v839, 112
      %v1053 = vpop.permute.xlu0 %1052
      %1054 = vrot.lane.b32.xlu0 %v863, 112
      %v1055 = vpop.permute.xlu0 %1054
      %1056 = vrot.lane.b32.xlu0 %v877, 112
      %v1057 = vpop.permute.xlu0 %1056
      %1058 = vrot.lane.b32.xlu0 %v887, 112
      %v1059 = vpop.permute.xlu0 %1058
      %1060 = vrot.lane.b32.xlu0 %v870, 112
      %v1061 = vpop.permute.xlu0 %1060
      %1062 = vrot.lane.b32.xlu0 %v884, 112
      %v1063 = vpop.permute.xlu0 %1062
      %1064 = vrot.lane.b32.xlu0 %v886, 112
      %v1065 = vpop.permute.xlu0 %1064
      %1066 = vrot.lane.b32.xlu0 %v888, 112
      %v1067 = vpop.permute.xlu0 %1066
      %1068 = vrot.lane.b32.xlu0 %v912, 112
      %v1069 = vpop.permute.xlu0 %1068
      %1070 = vrot.lane.b32.xlu0 %v926, 112
      %v1071 = vpop.permute.xlu0 %1070
      %1072 = vrot.lane.b32.xlu0 %v934, 112
      %v1073 = vpop.permute.xlu0 %1072
      %1074 = vrot.lane.b32.xlu0 %v919, 112
      %v1075 = vpop.permute.xlu0 %1074
      %1076 = vrot.lane.b32.xlu0 %v933, 112
      %v1077 = vpop.permute.xlu0 %1076
      %1078 = vrot.lane.b32.xlu0 %v935, 112
      %v1079 = vpop.permute.xlu0 %1078
      %1080 = vrot.lane.b32.xlu0 %v937, 112
      %v1081 = vpop.permute.xlu0 %1080
      %1082 = vrot.lane.b32.xlu0 %v952, 112
      %v1083 = vpop.permute.xlu0 %1082
      %1084 = vrot.lane.b32.xlu0 %v959, 112
      %v1085 = vpop.permute.xlu0 %1084
      %1086 = vrot.lane.b32.xlu0 %v960, 112
      %v1087 = vpop.permute.xlu0 %1086
      %1088 = vrot.lane.b32.xlu0 %v961, 112
      %v1089 = vpop.permute.xlu0 %1088
      %v1122 = vadd.f32 %v994, %v1027
      %v1123 = vadd.f32 %v995, %v1029
      %v1124 = vadd.f32 %v996, %v1031
      %v1125 = vadd.f32 %v997, %v1033
      %v1126 = vadd.f32 %v998, %v1035
      %v1127 = vadd.f32 %v999, %v1037
      %v1128 = vadd.f32 %v1000, %v1039
      %v1129 = vadd.f32 %v1001, %v1041
      %v1130 = vadd.f32 %v1002, %v1043
      %v1131 = vadd.f32 %v1003, %v1045
      %v1132 = vadd.f32 %v1004, %v1047
      %v1133 = vadd.f32 %v1005, %v1049
      %v1134 = vadd.f32 %v1006, %v1051
      %v1135 = vadd.f32 %v1007, %v1053
      %v1136 = vadd.f32 %v1008, %v1055
      %v1137 = vadd.f32 %v1009, %v1057
      %v1138 = vadd.f32 %v1010, %v1059
      %v1139 = vadd.f32 %v1011, %v1061
      %v1140 = vadd.f32 %v1012, %v1063
      %v1141 = vadd.f32 %v1013, %v1065
      %v1142 = vadd.f32 %v1014, %v1067
      %v1143 = vadd.f32 %v1015, %v1069
      %v1144 = vadd.f32 %v1016, %v1071
      %v1145 = vadd.f32 %v1017, %v1073
      %v1146 = vadd.f32 %v1018, %v1075
      %v1147 = vadd.f32 %v1019, %v1077
      %v1148 = vadd.f32 %v1020, %v1079
      %v1149 = vadd.f32 %v1021, %v1081
      %v1150 = vadd.f32 %v1022, %v1083
      %v1151 = vadd.f32 %v1023, %v1085
      %v1152 = vadd.f32 %v1024, %v1087
      %v1153 = vadd.f32 %v1025, %v1089
      %v1163 = vunpack.c.l.s4 1966171168
      %v1164 = vunpack.c.0.s8 %v1163
      %v1165 = vlaneseq
      %v1166 = vshrl.u32 %v1165, 7
      %v1167 = vsub.s32 %v1164, %v1166
      %v1168 = vrot.slane %v321, %v1167
      %v1169 = vcombine.high %v1168, %v1168
      %v1171 = vunpack.c.l.s4 1966171168
      %v1172 = vunpack.c.0.s8 %v1171
      %v1173 = vlaneseq
      %v1174 = vshrl.u32 %v1173, 7
      %v1175 = vsub.s32 %v1172, %v1174
      %v1176 = vrot.slane %v1168, %v1175
      %v1178 = vunpack.c.l.s4 1966171168
      %v1179 = vunpack.c.0.s8 %v1178
      %v1180 = vlaneseq
      %v1181 = vshrl.u32 %v1180, 7
      %v1182 = vsub.s32 %v1179, %v1181
      %v1183 = vrot.slane %v1169, %v1182
      %v1184 = vcombine.high %v1176, %v1176
      %v1185 = vcombine.high %v1183, %v1183
      %v1187 = vunpack.c.l.s4 1966171168
      %v1188 = vunpack.c.0.s8 %v1187
      %v1189 = vlaneseq
      %v1190 = vshrl.u32 %v1189, 7
      %v1191 = vsub.s32 %v1188, %v1190
      %v1192 = vrot.slane %v322, %v1191
      %v1194 = vunpack.c.l.s4 1966171168
      %v1195 = vunpack.c.0.s8 %v1194
      %v1196 = vlaneseq
      %v1197 = vshrl.u32 %v1196, 7
      %v1198 = vsub.s32 %v1195, %v1197
      %v1199 = vrot.slane %v1192, %v1198
      %v1201 = vunpack.c.l.s4 1966171168
      %v1202 = vunpack.c.0.s8 %v1201
      %v1203 = vlaneseq
      %v1204 = vshrl.u32 %v1203, 7
      %v1205 = vsub.s32 %v1202, %v1204
      %v1206 = vrot.slane %v325, %v1205
      %v1207 = vcombine.high %v1206, %v1206
      %v1209 = vunpack.c.l.s4 1966171168
      %v1210 = vunpack.c.0.s8 %v1209
      %v1211 = vlaneseq
      %v1212 = vshrl.u32 %v1211, 7
      %v1213 = vsub.s32 %v1210, %v1212
      %v1214 = vrot.slane %v1206, %v1213
      %v1216 = vunpack.c.l.s4 1966171168
      %v1217 = vunpack.c.0.s8 %v1216
      %v1218 = vlaneseq
      %v1219 = vshrl.u32 %v1218, 7
      %v1220 = vsub.s32 %v1217, %v1219
      %v1221 = vrot.slane %v1207, %v1220
      %v1222 = vcombine.high %v1214, %v1214
      %v1223 = vcombine.high %v1221, %v1221
      %v1225 = vunpack.c.l.s4 1966171168
      %v1226 = vunpack.c.0.s8 %v1225
      %v1227 = vlaneseq
      %v1228 = vshrl.u32 %v1227, 7
      %v1229 = vsub.s32 %v1226, %v1228
      %v1230 = vrot.slane %v326, %v1229
      %v1232 = vunpack.c.l.s4 1966171168
      %v1233 = vunpack.c.0.s8 %v1232
      %v1234 = vlaneseq
      %v1235 = vshrl.u32 %v1234, 7
      %v1236 = vsub.s32 %v1233, %v1235
      %v1237 = vrot.slane %v1230, %v1236
      %v1239 = vunpack.c.l.s4 1966171168
      %v1240 = vunpack.c.0.s8 %v1239
      %v1241 = vlaneseq
      %v1242 = vshrl.u32 %v1241, 7
      %v1243 = vsub.s32 %v1240, %v1242
      %v1244 = vrot.slane %v329, %v1243
      %v1245 = vcombine.high %v1244, %v1244
      %v1247 = vunpack.c.l.s4 1966171168
      %v1248 = vunpack.c.0.s8 %v1247
      %v1249 = vlaneseq
      %v1250 = vshrl.u32 %v1249, 7
      %v1251 = vsub.s32 %v1248, %v1250
      %v1252 = vrot.slane %v1244, %v1251
      %v1254 = vunpack.c.l.s4 1966171168
      %v1255 = vunpack.c.0.s8 %v1254
      %v1256 = vlaneseq
      %v1257 = vshrl.u32 %v1256, 7
      %v1258 = vsub.s32 %v1255, %v1257
      %v1259 = vrot.slane %v1245, %v1258
      %v1260 = vcombine.high %v1252, %v1252
      %v1261 = vcombine.high %v1259, %v1259
      %v1263 = vunpack.c.l.s4 1966171168
      %v1264 = vunpack.c.0.s8 %v1263
      %v1265 = vlaneseq
      %v1266 = vshrl.u32 %v1265, 7
      %v1267 = vsub.s32 %v1264, %v1266
      %v1268 = vrot.slane %v330, %v1267
      %v1270 = vunpack.c.l.s4 1966171168
      %v1271 = vunpack.c.0.s8 %v1270
      %v1272 = vlaneseq
      %v1273 = vshrl.u32 %v1272, 7
      %v1274 = vsub.s32 %v1271, %v1273
      %v1275 = vrot.slane %v1268, %v1274
      %v1277 = vunpack.c.l.s4 1966171168
      %v1278 = vunpack.c.0.s8 %v1277
      %v1279 = vlaneseq
      %v1280 = vshrl.u32 %v1279, 7
      %v1281 = vsub.s32 %v1278, %v1280
      %v1282 = vrot.slane %v333, %v1281
      %v1283 = vcombine.high %v1282, %v1282
      %v1285 = vunpack.c.l.s4 1966171168
      %v1286 = vunpack.c.0.s8 %v1285
      %v1287 = vlaneseq
      %v1288 = vshrl.u32 %v1287, 7
      %v1289 = vsub.s32 %v1286, %v1288
      %v1290 = vrot.slane %v1282, %v1289
      %v1292 = vunpack.c.l.s4 1966171168
      %v1293 = vunpack.c.0.s8 %v1292
      %v1294 = vlaneseq
      %v1295 = vshrl.u32 %v1294, 7
      %v1296 = vsub.s32 %v1293, %v1295
      %v1297 = vrot.slane %v1283, %v1296
      %v1298 = vcombine.high %v1290, %v1290
      %v1299 = vcombine.high %v1297, %v1297
      %v1301 = vunpack.c.l.s4 1966171168
      %v1302 = vunpack.c.0.s8 %v1301
      %v1303 = vlaneseq
      %v1304 = vshrl.u32 %v1303, 7
      %v1305 = vsub.s32 %v1302, %v1304
      %v1306 = vrot.slane %v334, %v1305
      %v1308 = vunpack.c.l.s4 1966171168
      %v1309 = vunpack.c.0.s8 %v1308
      %v1310 = vlaneseq
      %v1311 = vshrl.u32 %v1310, 7
      %v1312 = vsub.s32 %v1309, %v1311
      %v1313 = vrot.slane %v1306, %v1312
      %v1314 = vunpack.i.l.s16 %v1176
      %v1315 = vunpack.i.h.s16 %v1176
      %v1316 = vunpack.i.l.s16 %v1183
      %v1317 = vunpack.i.h.s16 %v1183
      %v1318 = vunpack.i.l.s16 %v1184
      %v1319 = vunpack.i.h.s16 %v1184
      %v1320 = vunpack.i.l.s16 %v1185
      %v1321 = vunpack.i.h.s16 %v1185
      %v1322 = vunpack.i.l.s16 %v1199
      %v1323 = vunpack.i.l.s16 %v1214
      %v1324 = vunpack.i.h.s16 %v1214
      %v1325 = vunpack.i.l.s16 %v1221
      %v1326 = vunpack.i.h.s16 %v1221
      %v1327 = vunpack.i.l.s16 %v1222
      %v1328 = vunpack.i.h.s16 %v1222
      %v1329 = vunpack.i.l.s16 %v1223
      %v1330 = vunpack.i.h.s16 %v1223
      %v1331 = vunpack.i.l.s16 %v1237
      %v1332 = vunpack.i.l.s16 %v1252
      %v1333 = vunpack.i.h.s16 %v1252
      %v1334 = vunpack.i.l.s16 %v1259
      %v1335 = vunpack.i.h.s16 %v1259
      %v1336 = vunpack.i.l.s16 %v1260
      %v1337 = vunpack.i.h.s16 %v1260
      %v1338 = vunpack.i.l.s16 %v1261
      %v1339 = vunpack.i.h.s16 %v1261
      %v1340 = vunpack.i.l.s16 %v1275
      %v1341 = vunpack.i.l.s16 %v1290
      %v1342 = vunpack.i.h.s16 %v1290
      %v1343 = vunpack.i.l.s16 %v1297
      %v1344 = vunpack.i.h.s16 %v1297
      %v1345 = vunpack.i.l.s16 %v1298
      %v1346 = vunpack.i.h.s16 %v1298
      %v1347 = vunpack.i.l.s16 %v1299
      %v1348 = vunpack.i.h.s16 %v1299
      %v1349 = vunpack.i.l.s16 %v1313
      %v1350 = vpack.i.b16 %v1315, %v1314
      %v1351 = vpack.i.b16 %v1317, %v1316
      %v1352 = vpack.i.b16 %v1319, %v1318
      %v1353 = vpack.i.b16 %v1321, %v1320
      %v1354 = vpack.i.b16 %v1323, %v1322
      %v1355 = vpack.i.b16 %v1325, %v1324
      %v1356 = vpack.i.b16 %v1327, %v1326
      %v1357 = vpack.i.b16 %v1329, %v1328
      %v1358 = vpack.i.b16 %v1331, %v1330
      %v1359 = vpack.i.b16 %v1333, %v1332
      %v1360 = vpack.i.b16 %v1335, %v1334
      %v1361 = vpack.i.b16 %v1337, %v1336
      %v1362 = vpack.i.b16 %v1339, %v1338
      %v1363 = vpack.i.b16 %v1341, %v1340
      %v1364 = vpack.i.b16 %v1343, %v1342
      %v1365 = vpack.i.b16 %v1345, %v1344
      %v1366 = vpack.i.b16 %v1347, %v1346
      %v1367 = vpack.i.b16 %v1349, %v1348
      %v1368 = vcombine.low %v1350, %v1351
      %v1369 = vcombine.low %v1352, %v1353
      %v1370 = vcombine.low %v1354, %v1355
      %v1371 = vcombine.low %v1356, %v1357
      %v1373 = vunpack.c.l.s4 1966171168
      %v1374 = vunpack.c.0.s8 %v1373
      %v1375 = vlaneseq
      %v1376 = vshrl.u32 %v1375, 7
      %v1377 = vsub.s32 %v1374, %v1376
      %v1378 = vrot.slane %v1368, %v1377
      %v1380 = vunpack.c.l.s4 1966171168
      %v1381 = vunpack.c.0.s8 %v1380
      %v1382 = vlaneseq
      %v1383 = vshrl.u32 %v1382, 7
      %v1384 = vsub.s32 %v1381, %v1383
      %v1385 = vrot.slane %v1369, %v1384
      %v1387 = vunpack.c.l.s4 1966171168
      %v1388 = vunpack.c.0.s8 %v1387
      %v1389 = vlaneseq
      %v1390 = vshrl.u32 %v1389, 7
      %v1391 = vsub.s32 %v1388, %v1390
      %v1392 = vrot.slane %v1370, %v1391
      %v1394 = vunpack.c.l.s4 1966171168
      %v1395 = vunpack.c.0.s8 %v1394
      %v1396 = vlaneseq
      %v1397 = vshrl.u32 %v1396, 7
      %v1398 = vsub.s32 %v1395, %v1397
      %v1399 = vrot.slane %v1371, %v1398
      %v1400 = vcombine.low %v1378, %v1385
      %v1401 = vcombine.low %v1392, %v1399
      %v1403 = vunpack.c.l.s4 1966171168
      %v1404 = vunpack.c.0.s8 %v1403
      %v1405 = vlaneseq
      %v1406 = vshrl.u32 %v1405, 7
      %v1407 = vsub.s32 %v1404, %v1406
      %v1408 = vrot.slane %v1400, %v1407
      %v1410 = vunpack.c.l.s4 1966171168
      %v1411 = vunpack.c.0.s8 %v1410
      %v1412 = vlaneseq
      %v1413 = vshrl.u32 %v1412, 7
      %v1414 = vsub.s32 %v1411, %v1413
      %v1415 = vrot.slane %v1401, %v1414
      %v1416 = vcombine.low %v1408, %v1415
      %v1417 = vcombine.low %v1358, %v1359
      %v1418 = vcombine.low %v1360, %v1361
      %v1419 = vcombine.low %v1362, %v1363
      %v1420 = vcombine.low %v1364, %v1365
      %v1422 = vunpack.c.l.s4 1966171168
      %v1423 = vunpack.c.0.s8 %v1422
      %v1424 = vlaneseq
      %v1425 = vshrl.u32 %v1424, 7
      %v1426 = vsub.s32 %v1423, %v1425
      %v1427 = vrot.slane %v1417, %v1426
      %v1429 = vunpack.c.l.s4 1966171168
      %v1430 = vunpack.c.0.s8 %v1429
      %v1431 = vlaneseq
      %v1432 = vshrl.u32 %v1431, 7
      %v1433 = vsub.s32 %v1430, %v1432
      %v1434 = vrot.slane %v1418, %v1433
      %v1436 = vunpack.c.l.s4 1966171168
      %v1437 = vunpack.c.0.s8 %v1436
      %v1438 = vlaneseq
      %v1439 = vshrl.u32 %v1438, 7
      %v1440 = vsub.s32 %v1437, %v1439
      %v1441 = vrot.slane %v1419, %v1440
      %v1443 = vunpack.c.l.s4 1966171168
      %v1444 = vunpack.c.0.s8 %v1443
      %v1445 = vlaneseq
      %v1446 = vshrl.u32 %v1445, 7
      %v1447 = vsub.s32 %v1444, %v1446
      %v1448 = vrot.slane %v1420, %v1447
      %v1449 = vcombine.low %v1427, %v1434
      %v1450 = vcombine.low %v1441, %v1448
      %v1452 = vunpack.c.l.s4 1966171168
      %v1453 = vunpack.c.0.s8 %v1452
      %v1454 = vlaneseq
      %v1455 = vshrl.u32 %v1454, 7
      %v1456 = vsub.s32 %v1453, %v1455
      %v1457 = vrot.slane %v1449, %v1456
      %v1459 = vunpack.c.l.s4 1966171168
      %v1460 = vunpack.c.0.s8 %v1459
      %v1461 = vlaneseq
      %v1462 = vshrl.u32 %v1461, 7
      %v1463 = vsub.s32 %v1460, %v1462
      %v1464 = vrot.slane %v1450, %v1463
      %v1465 = vcombine.low %v1457, %v1464
      %v1466 = vcombine.low %v1366, %v1367
      %v1468 = vunpack.c.l.s4 1966171168
      %v1469 = vunpack.c.0.s8 %v1468
      %v1470 = vlaneseq
      %v1471 = vshrl.u32 %v1470, 7
      %v1472 = vsub.s32 %v1469, %v1471
      %v1473 = vrot.slane %v1466, %v1472
      %v1475 = vunpack.c.l.s4 1966171168
      %v1476 = vunpack.c.0.s8 %v1475
      %v1477 = vlaneseq
      %v1478 = vshrl.u32 %v1477, 7
      %v1479 = vsub.s32 %v1476, %v1478
      %v1480 = vrot.slane %v1473, %v1479
      %v1482 = vsel %vm667, %v1416, 0
      %v1485 = vsel %vm667, %v1465, 0
      %v1488 = vsel %vm667, %v1480, 0
      %v1491 = vsel %vm677, %v338, 0
      %1493 = vmatprep.subr.bf16.mxu0 0
      %1494 = vmatpush1.bf16.msra.mxu0 %v1491
      %1495 = vmatprep.subr.bf16.mxu0 0
      %1496 = vmatpush1.bf16.msra.mxu0 0
      %1497 = vmatprep.subr.bf16.mxu0 0
      %1498 = vmatpush1.bf16.msra.mxu0 0
      %1499 = vmatprep.subr.bf16.mxu0 0
      %1500 = vmatpush1.bf16.msra.mxu0 0
      %1501 = vmatprep.subr.bf16.mxu0 0
      %1502 = vmatpush1.bf16.msra.mxu0 0
      %1503 = vmatprep.subr.bf16.mxu0 0
      %1504 = vmatpush1.bf16.msra.mxu0 0
      %1505 = vmatprep.subr.bf16.mxu0 0
      %1506 = vmatpush1.bf16.msra.mxu0 0
      %1507 = vmatprep.subr.bf16.mxu0 0
      %1508 = vmatpush1.bf16.msra.mxu0 0
      %1509 = vmatprep.subr.bf16.mxu0 0
      %1510 = vmatpush1.bf16.msra.mxu0 0
      %1511 = vmatprep.subr.bf16.mxu0 0
      %1512 = vmatpush1.bf16.msra.mxu0 0
      %1513 = vmatprep.subr.bf16.mxu0 0
      %1514 = vmatpush1.bf16.msra.mxu0 0
      %1515 = vmatprep.subr.bf16.mxu0 0
      %1516 = vmatpush1.bf16.msra.mxu0 0
      %1517 = vmatprep.subr.bf16.mxu0 0
      %1518 = vmatpush1.bf16.msra.mxu0 0
      %1519 = vmatprep.subr.bf16.mxu0 0
      %1520 = vmatpush1.bf16.msra.mxu0 0
      %1521 = vmatprep.subr.bf16.mxu0 0
      %1522 = vmatpush1.bf16.msra.mxu0 0
      %1523 = vmatprep.subr.bf16.mxu0 0
      %1524 = vmatpush1.bf16.msra.mxu0 0
      %1525 = vmatprep.mubr.bf16.mxu0 0
      %1526 = vmatmul.mubr.bf16.gmra.mrb[0].mxu0 %v1482
      %v1527 = vpop.f32.mrb[0].mxu0
      %v1528 = vadd.f32 0.0, %v1527
      %v1529 = vpop.f32.mrb[0].mxu0
      %v1530 = vpop.f32.mrb[0].mxu0
      %v1531 = vadd.f32 0.0, %v1530
      %v1532 = vpop.f32.mrb[0].mxu0
      %1533 = vmatprep.mubr.bf16.mxu0 0
      %1534 = vmatmul.mubr.bf16.gmra.mrb[0].mxu0 %v1485
      %v1535 = vpop.f32.mrb[0].mxu0
      %v1536 = vadd.f32 0.0, %v1535
      %v1537 = vpop.f32.mrb[0].mxu0
      %v1538 = vpop.f32.mrb[0].mxu0
      %v1539 = vadd.f32 0.0, %v1538
      %v1540 = vpop.f32.mrb[0].mxu0
      %1541 = vmatprep.mubr.bf16.mxu0 0
      %1542 = vmatmul.mubr.bf16.gmra.mrb[0].mxu0 %v1488
      %v1543 = vpop.f32.mrb[0].mxu0
      %v1544 = vadd.f32 0.0, %v1543
      %v1545 = vpop.f32.mrb[0].mxu0
      %v1546 = vpop.f32.mrb[0].mxu0
      %v1547 = vpop.f32.mrb[0].mxu0
      %1548 = vdwg.mxu0
      %v1554 = vcombine.high %v1528, %v1528
      %v1556 = vunpack.c.l.s4 1966171168
      %v1557 = vunpack.c.0.s8 %v1556
      %v1558 = vlaneseq
      %v1559 = vshrl.u32 %v1558, 7
      %v1560 = vsub.s32 %v1557, %v1559
      %v1561 = vrot.slane %v1528, %v1560
      %v1563 = vunpack.c.l.s4 1966171168
      %v1564 = vunpack.c.0.s8 %v1563
      %v1565 = vlaneseq
      %v1566 = vshrl.u32 %v1565, 7
      %v1567 = vsub.s32 %v1564, %v1566
      %v1568 = vrot.slane %v1554, %v1567
      %v1569 = vcombine.high %v1561, %v1561
      %v1570 = vcombine.high %v1568, %v1568
      %v1572 = vunpack.c.l.s4 1966171168
      %v1573 = vunpack.c.0.s8 %v1572
      %v1574 = vlaneseq
      %v1575 = vshrl.u32 %v1574, 7
      %v1576 = vsub.s32 %v1573, %v1575
      %v1577 = vrot.slane %v1561, %v1576
      %v1579 = vunpack.c.l.s4 1966171168
      %v1580 = vunpack.c.0.s8 %v1579
      %v1581 = vlaneseq
      %v1582 = vshrl.u32 %v1581, 7
      %v1583 = vsub.s32 %v1580, %v1582
      %v1584 = vrot.slane %v1568, %v1583
      %v1586 = vunpack.c.l.s4 1966171168
      %v1587 = vunpack.c.0.s8 %v1586
      %v1588 = vlaneseq
      %v1589 = vshrl.u32 %v1588, 7
      %v1590 = vsub.s32 %v1587, %v1589
      %v1591 = vrot.slane %v1569, %v1590
      %v1593 = vunpack.c.l.s4 1966171168
      %v1594 = vunpack.c.0.s8 %v1593
      %v1595 = vlaneseq
      %v1596 = vshrl.u32 %v1595, 7
      %v1597 = vsub.s32 %v1594, %v1596
      %v1598 = vrot.slane %v1570, %v1597
      %v1599 = vcombine.high %v1577, %v1577
      %v1600 = vcombine.high %v1584, %v1584
      %v1601 = vcombine.high %v1591, %v1591
      %v1602 = vcombine.high %v1598, %v1598
      %v1603 = vcombine.high %v1531, %v1531
      %v1605 = vunpack.c.l.s4 1966171168
      %v1606 = vunpack.c.0.s8 %v1605
      %v1607 = vlaneseq
      %v1608 = vshrl.u32 %v1607, 7
      %v1609 = vsub.s32 %v1606, %v1608
      %v1610 = vrot.slane %v1531, %v1609
      %v1612 = vunpack.c.l.s4 1966171168
      %v1613 = vunpack.c.0.s8 %v1612
      %v1614 = vlaneseq
      %v1615 = vshrl.u32 %v1614, 7
      %v1616 = vsub.s32 %v1613, %v1615
      %v1617 = vrot.slane %v1603, %v1616
      %v1618 = vcombine.high %v1610, %v1610
      %v1619 = vcombine.high %v1617, %v1617
      %v1621 = vunpack.c.l.s4 1966171168
      %v1622 = vunpack.c.0.s8 %v1621
      %v1623 = vlaneseq
      %v1624 = vshrl.u32 %v1623, 7
      %v1625 = vsub.s32 %v1622, %v1624
      %v1626 = vrot.slane %v1610, %v1625
      %v1628 = vunpack.c.l.s4 1966171168
      %v1629 = vunpack.c.0.s8 %v1628
      %v1630 = vlaneseq
      %v1631 = vshrl.u32 %v1630, 7
      %v1632 = vsub.s32 %v1629, %v1631
      %v1633 = vrot.slane %v1617, %v1632
      %v1635 = vunpack.c.l.s4 1966171168
      %v1636 = vunpack.c.0.s8 %v1635
      %v1637 = vlaneseq
      %v1638 = vshrl.u32 %v1637, 7
      %v1639 = vsub.s32 %v1636, %v1638
      %v1640 = vrot.slane %v1618, %v1639
      %v1642 = vunpack.c.l.s4 1966171168
      %v1643 = vunpack.c.0.s8 %v1642
      %v1644 = vlaneseq
      %v1645 = vshrl.u32 %v1644, 7
      %v1646 = vsub.s32 %v1643, %v1645
      %v1647 = vrot.slane %v1619, %v1646
      %v1648 = vcombine.high %v1626, %v1626
      %v1649 = vcombine.high %v1633, %v1633
      %v1650 = vcombine.high %v1640, %v1640
      %v1651 = vcombine.high %v1647, %v1647
      %v1652 = vcombine.high %v1536, %v1536
      %v1654 = vunpack.c.l.s4 1966171168
      %v1655 = vunpack.c.0.s8 %v1654
      %v1656 = vlaneseq
      %v1657 = vshrl.u32 %v1656, 7
      %v1658 = vsub.s32 %v1655, %v1657
      %v1659 = vrot.slane %v1536, %v1658
      %v1661 = vunpack.c.l.s4 1966171168
      %v1662 = vunpack.c.0.s8 %v1661
      %v1663 = vlaneseq
      %v1664 = vshrl.u32 %v1663, 7
      %v1665 = vsub.s32 %v1662, %v1664
      %v1666 = vrot.slane %v1652, %v1665
      %v1667 = vcombine.high %v1659, %v1659
      %v1668 = vcombine.high %v1666, %v1666
      %v1670 = vunpack.c.l.s4 1966171168
      %v1671 = vunpack.c.0.s8 %v1670
      %v1672 = vlaneseq
      %v1673 = vshrl.u32 %v1672, 7
      %v1674 = vsub.s32 %v1671, %v1673
      %v1675 = vrot.slane %v1659, %v1674
      %v1677 = vunpack.c.l.s4 1966171168
      %v1678 = vunpack.c.0.s8 %v1677
      %v1679 = vlaneseq
      %v1680 = vshrl.u32 %v1679, 7
      %v1681 = vsub.s32 %v1678, %v1680
      %v1682 = vrot.slane %v1666, %v1681
      %v1684 = vunpack.c.l.s4 1966171168
      %v1685 = vunpack.c.0.s8 %v1684
      %v1686 = vlaneseq
      %v1687 = vshrl.u32 %v1686, 7
      %v1688 = vsub.s32 %v1685, %v1687
      %v1689 = vrot.slane %v1667, %v1688
      %v1691 = vunpack.c.l.s4 1966171168
      %v1692 = vunpack.c.0.s8 %v1691
      %v1693 = vlaneseq
      %v1694 = vshrl.u32 %v1693, 7
      %v1695 = vsub.s32 %v1692, %v1694
      %v1696 = vrot.slane %v1668, %v1695
      %v1697 = vcombine.high %v1675, %v1675
      %v1698 = vcombine.high %v1682, %v1682
      %v1699 = vcombine.high %v1689, %v1689
      %v1700 = vcombine.high %v1696, %v1696
      %v1701 = vcombine.high %v1539, %v1539
      %v1703 = vunpack.c.l.s4 1966171168
      %v1704 = vunpack.c.0.s8 %v1703
      %v1705 = vlaneseq
      %v1706 = vshrl.u32 %v1705, 7
      %v1707 = vsub.s32 %v1704, %v1706
      %v1708 = vrot.slane %v1539, %v1707
      %v1710 = vunpack.c.l.s4 1966171168
      %v1711 = vunpack.c.0.s8 %v1710
      %v1712 = vlaneseq
      %v1713 = vshrl.u32 %v1712, 7
      %v1714 = vsub.s32 %v1711, %v1713
      %v1715 = vrot.slane %v1701, %v1714
      %v1716 = vcombine.high %v1708, %v1708
      %v1717 = vcombine.high %v1715, %v1715
      %v1719 = vunpack.c.l.s4 1966171168
      %v1720 = vunpack.c.0.s8 %v1719
      %v1721 = vlaneseq
      %v1722 = vshrl.u32 %v1721, 7
      %v1723 = vsub.s32 %v1720, %v1722
      %v1724 = vrot.slane %v1708, %v1723
      %v1726 = vunpack.c.l.s4 1966171168
      %v1727 = vunpack.c.0.s8 %v1726
      %v1728 = vlaneseq
      %v1729 = vshrl.u32 %v1728, 7
      %v1730 = vsub.s32 %v1727, %v1729
      %v1731 = vrot.slane %v1715, %v1730
      %v1733 = vunpack.c.l.s4 1966171168
      %v1734 = vunpack.c.0.s8 %v1733
      %v1735 = vlaneseq
      %v1736 = vshrl.u32 %v1735, 7
      %v1737 = vsub.s32 %v1734, %v1736
      %v1738 = vrot.slane %v1716, %v1737
      %v1740 = vunpack.c.l.s4 1966171168
      %v1741 = vunpack.c.0.s8 %v1740
      %v1742 = vlaneseq
      %v1743 = vshrl.u32 %v1742, 7
      %v1744 = vsub.s32 %v1741, %v1743
      %v1745 = vrot.slane %v1717, %v1744
      %v1746 = vcombine.high %v1724, %v1724
      %v1747 = vcombine.high %v1731, %v1731
      %v1748 = vcombine.high %v1738, %v1738
      %v1749 = vcombine.high %v1745, %v1745
      %v1751 = vunpack.c.l.s4 1966171168
      %v1752 = vunpack.c.0.s8 %v1751
      %v1753 = vlaneseq
      %v1754 = vshrl.u32 %v1753, 7
      %v1755 = vsub.s32 %v1752, %v1754
      %v1756 = vrot.slane %v1544, %v1755
      %v1757 = vcombine.high %v1756, %v1756
      %v1759 = vunpack.c.l.s4 1966171168
      %v1760 = vunpack.c.0.s8 %v1759
      %v1761 = vlaneseq
      %v1762 = vshrl.u32 %v1761, 7
      %v1763 = vsub.s32 %v1760, %v1762
      %v1764 = vrot.slane %v1756, %v1763
      %v1766 = vunpack.c.l.s4 1966171168
      %v1767 = vunpack.c.0.s8 %v1766
      %v1768 = vlaneseq
      %v1769 = vshrl.u32 %v1768, 7
      %v1770 = vsub.s32 %v1767, %v1769
      %v1771 = vrot.slane %v1757, %v1770
      %v1772 = vcombine.high %v1764, %v1764
      %v1773 = vcombine.high %v1771, %v1771
      %v1806 = vadd.f32 %v1122, %v1577
      %v1807 = vadd.f32 %v1123, %v1591
      %v1808 = vadd.f32 %v1124, %v1599
      %v1809 = vadd.f32 %v1125, %v1601
      %v1810 = vadd.f32 %v1126, %v1584
      %v1811 = vadd.f32 %v1127, %v1598
      %v1812 = vadd.f32 %v1128, %v1600
      %v1813 = vadd.f32 %v1129, %v1602
      %v1814 = vadd.f32 %v1130, %v1640
      %v1815 = vadd.f32 %v1131, %v1648
      %v1816 = vadd.f32 %v1132, %v1650
      %v1817 = vadd.f32 %v1133, %v1633
      %v1818 = vadd.f32 %v1134, %v1647
      %v1819 = vadd.f32 %v1135, %v1649
      %v1820 = vadd.f32 %v1136, %v1651
      %v1821 = vadd.f32 %v1137, %v1675
      %v1822 = vadd.f32 %v1138, %v1697
      %v1823 = vadd.f32 %v1139, %v1699
      %v1824 = vadd.f32 %v1140, %v1682
      %v1825 = vadd.f32 %v1141, %v1696
      %v1826 = vadd.f32 %v1142, %v1698
      %v1827 = vadd.f32 %v1143, %v1700
      %v1828 = vadd.f32 %v1144, %v1724
      %v1829 = vadd.f32 %v1145, %v1738
      %v1830 = vadd.f32 %v1146, %v1748
      %v1831 = vadd.f32 %v1147, %v1731
      %v1832 = vadd.f32 %v1148, %v1745
      %v1833 = vadd.f32 %v1149, %v1747
      %v1834 = vadd.f32 %v1150, %v1749
      %v1835 = vadd.f32 %v1151, %v1764
      %v1836 = vadd.f32 %v1152, %v1771
      %v1837 = vadd.f32 %v1153, %v1772
      %1838 = vrot.lane.b32.xlu0 %v1591, 112
      %v1839 = vpop.permute.xlu0 %1838
      %1840 = vrot.lane.b32.xlu0 %v1599, 112
      %v1841 = vpop.permute.xlu0 %1840
      %1842 = vrot.lane.b32.xlu0 %v1601, 112
      %v1843 = vpop.permute.xlu0 %1842
      %1844 = vrot.lane.b32.xlu0 %v1584, 112
      %v1845 = vpop.permute.xlu0 %1844
      %1846 = vrot.lane.b32.xlu0 %v1598, 112
      %v1847 = vpop.permute.xlu0 %1846
      %1848 = vrot.lane.b32.xlu0 %v1600, 112
      %v1849 = vpop.permute.xlu0 %1848
      %1850 = vrot.lane.b32.xlu0 %v1602, 112
      %v1851 = vpop.permute.xlu0 %1850
      %1852 = vrot.lane.b32.xlu0 %v1626, 112
      %v1853 = vpop.permute.xlu0 %1852
      %1854 = vrot.lane.b32.xlu0 %v1648, 112
      %v1855 = vpop.permute.xlu0 %1854
      %1856 = vrot.lane.b32.xlu0 %v1650, 112
      %v1857 = vpop.permute.xlu0 %1856
      %1858 = vrot.lane.b32.xlu0 %v1633, 112
      %v1859 = vpop.permute.xlu0 %1858
      %1860 = vrot.lane.b32.xlu0 %v1647, 112
      %v1861 = vpop.permute.xlu0 %1860
      %1862 = vrot.lane.b32.xlu0 %v1649, 112
      %v1863 = vpop.permute.xlu0 %1862
      %1864 = vrot.lane.b32.xlu0 %v1651, 112
      %v1865 = vpop.permute.xlu0 %1864
      %1866 = vrot.lane.b32.xlu0 %v1675, 112
      %v1867 = vpop.permute.xlu0 %1866
      %1868 = vrot.lane.b32.xlu0 %v1689, 112
      %v1869 = vpop.permute.xlu0 %1868
      %1870 = vrot.lane.b32.xlu0 %v1699, 112
      %v1871 = vpop.permute.xlu0 %1870
      %1872 = vrot.lane.b32.xlu0 %v1682, 112
      %v1873 = vpop.permute.xlu0 %1872
      %1874 = vrot.lane.b32.xlu0 %v1696, 112
      %v1875 = vpop.permute.xlu0 %1874
      %1876 = vrot.lane.b32.xlu0 %v1698, 112
      %v1877 = vpop.permute.xlu0 %1876
      %1878 = vrot.lane.b32.xlu0 %v1700, 112
      %v1879 = vpop.permute.xlu0 %1878
      %1880 = vrot.lane.b32.xlu0 %v1724, 112
      %v1881 = vpop.permute.xlu0 %1880
      %1882 = vrot.lane.b32.xlu0 %v1738, 112
      %v1883 = vpop.permute.xlu0 %1882
      %1884 = vrot.lane.b32.xlu0 %v1746, 112
      %v1885 = vpop.permute.xlu0 %1884
      %1886 = vrot.lane.b32.xlu0 %v1731, 112
      %v1887 = vpop.permute.xlu0 %1886
      %1888 = vrot.lane.b32.xlu0 %v1745, 112
      %v1889 = vpop.permute.xlu0 %1888
      %1890 = vrot.lane.b32.xlu0 %v1747, 112
      %v1891 = vpop.permute.xlu0 %1890
      %1892 = vrot.lane.b32.xlu0 %v1749, 112
      %v1893 = vpop.permute.xlu0 %1892
      %1894 = vrot.lane.b32.xlu0 %v1764, 112
      %v1895 = vpop.permute.xlu0 %1894
      %1896 = vrot.lane.b32.xlu0 %v1771, 112
      %v1897 = vpop.permute.xlu0 %1896
      %1898 = vrot.lane.b32.xlu0 %v1772, 112
      %v1899 = vpop.permute.xlu0 %1898
      %1900 = vrot.lane.b32.xlu0 %v1773, 112
      %v1901 = vpop.permute.xlu0 %1900
      %v1934 = vadd.f32 %v1806, %v1839
      %v1935 = vadd.f32 %v1807, %v1841
      %v1936 = vadd.f32 %v1808, %v1843
      %v1937 = vadd.f32 %v1809, %v1845
      %v1938 = vadd.f32 %v1810, %v1847
      %v1939 = vadd.f32 %v1811, %v1849
      %v1940 = vadd.f32 %v1812, %v1851
      %v1941 = vadd.f32 %v1813, %v1853
      %v1942 = vadd.f32 %v1814, %v1855
      %v1943 = vadd.f32 %v1815, %v1857
      %v1944 = vadd.f32 %v1816, %v1859
      %v1945 = vadd.f32 %v1817, %v1861
      %v1946 = vadd.f32 %v1818, %v1863
      %v1947 = vadd.f32 %v1819, %v1865
      %v1948 = vadd.f32 %v1820, %v1867
      %v1949 = vadd.f32 %v1821, %v1869
      %v1950 = vadd.f32 %v1822, %v1871
      %v1951 = vadd.f32 %v1823, %v1873
      %v1952 = vadd.f32 %v1824, %v1875
      %v1953 = vadd.f32 %v1825, %v1877
      %v1954 = vadd.f32 %v1826, %v1879
      %v1955 = vadd.f32 %v1827, %v1881
      %v1956 = vadd.f32 %v1828, %v1883
      %v1957 = vadd.f32 %v1829, %v1885
      %v1958 = vadd.f32 %v1830, %v1887
      %v1959 = vadd.f32 %v1831, %v1889
      %v1960 = vadd.f32 %v1832, %v1891
      %v1961 = vadd.f32 %v1833, %v1893
      %v1962 = vadd.f32 %v1834, %v1895
      %v1963 = vadd.f32 %v1835, %v1897
      %v1964 = vadd.f32 %v1836, %v1899
      %v1965 = vadd.f32 %v1837, %v1901
      %v1969 = vunpack.c.l.s4 1966171168
      %v1970 = vunpack.c.0.s8 %v1969
      %v1971 = vlaneseq
      %v1972 = vshrl.u32 %v1971, 7
      %v1973 = vsub.s32 %v1970, %v1972
      %v1974 = vrot.slane %v335, %v1973
      %v1975 = vcombine.high %v1974, %v1974
      %v1977 = vunpack.c.l.s4 1966171168
      %v1978 = vunpack.c.0.s8 %v1977
      %v1979 = vlaneseq
      %v1980 = vshrl.u32 %v1979, 7
      %v1981 = vsub.s32 %v1978, %v1980
      %v1982 = vrot.slane %v1974, %v1981
      %v1984 = vunpack.c.l.s4 1966171168
      %v1985 = vunpack.c.0.s8 %v1984
      %v1986 = vlaneseq
      %v1987 = vshrl.u32 %v1986, 7
      %v1988 = vsub.s32 %v1985, %v1987
      %v1989 = vrot.slane %v1975, %v1988
      %v1990 = vcombine.high %v1982, %v1982
      %v1991 = vcombine.high %v1989, %v1989
      %v1993 = vunpack.c.l.s4 1966171168
      %v1994 = vunpack.c.0.s8 %v1993
      %v1995 = vlaneseq
      %v1996 = vshrl.u32 %v1995, 7
      %v1997 = vsub.s32 %v1994, %v1996
      %v1998 = vrot.slane %v336, %v1997
      %v2000 = vunpack.c.l.s4 1966171168
      %v2001 = vunpack.c.0.s8 %v2000
      %v2002 = vlaneseq
      %v2003 = vshrl.u32 %v2002, 7
      %v2004 = vsub.s32 %v2001, %v2003
      %v2005 = vrot.slane %v1998, %v2004
      %v2006 = vunpack.i.l.s16 %v1982
      %v2007 = vunpack.i.h.s16 %v1982
      %v2008 = vunpack.i.l.s16 %v1989
      %v2009 = vunpack.i.h.s16 %v1989
      %v2010 = vunpack.i.l.s16 %v1990
      %v2011 = vunpack.i.h.s16 %v1990
      %v2012 = vunpack.i.l.s16 %v1991
      %v2013 = vunpack.i.h.s16 %v1991
      %v2014 = vunpack.i.l.s16 %v2005
      %v2015 = vpack.i.b16 %v510, %v509
      %v2016 = vpack.i.b16 %v512, %v511
      %v2017 = vpack.i.b16 %v514, %v513
      %v2018 = vpack.i.b16 %v516, %v515
      %v2019 = vpack.i.b16 %v518, %v517
      %v2020 = vpack.i.b16 %v520, %v519
      %v2021 = vpack.i.b16 %v522, %v521
      %v2022 = vpack.i.b16 %v524, %v523
      %v2023 = vpack.i.b16 %v526, %v525
      %v2024 = vpack.i.b16 %v528, %v527
      %v2025 = vpack.i.b16 %v530, %v529
      %v2026 = vpack.i.b16 %v532, %v531
      %v2027 = vpack.i.b16 %v534, %v533
      %v2028 = vpack.i.b16 %v2006, %v535
      %v2029 = vpack.i.b16 %v2008, %v2007
      %v2030 = vpack.i.b16 %v2010, %v2009
      %v2031 = vpack.i.b16 %v2012, %v2011
      %v2032 = vpack.i.b16 %v2014, %v2013
      %v2033 = vcombine.low %v2015, %v2016
      %v2034 = vcombine.low %v2017, %v2018
      %v2035 = vcombine.low %v2019, %v2020
      %v2036 = vcombine.low %v2021, %v2022
      %v2038 = vunpack.c.l.s4 1966171168
      %v2039 = vunpack.c.0.s8 %v2038
      %v2040 = vlaneseq
      %v2041 = vshrl.u32 %v2040, 7
      %v2042 = vsub.s32 %v2039, %v2041
      %v2043 = vrot.slane %v2033, %v2042
      %v2045 = vunpack.c.l.s4 1966171168
      %v2046 = vunpack.c.0.s8 %v2045
      %v2047 = vlaneseq
      %v2048 = vshrl.u32 %v2047, 7
      %v2049 = vsub.s32 %v2046, %v2048
      %v2050 = vrot.slane %v2034, %v2049
      %v2052 = vunpack.c.l.s4 1966171168
      %v2053 = vunpack.c.0.s8 %v2052
      %v2054 = vlaneseq
      %v2055 = vshrl.u32 %v2054, 7
      %v2056 = vsub.s32 %v2053, %v2055
      %v2057 = vrot.slane %v2035, %v2056
      %v2059 = vunpack.c.l.s4 1966171168
      %v2060 = vunpack.c.0.s8 %v2059
      %v2061 = vlaneseq
      %v2062 = vshrl.u32 %v2061, 7
      %v2063 = vsub.s32 %v2060, %v2062
      %v2064 = vrot.slane %v2036, %v2063
      %v2065 = vcombine.low %v2043, %v2050
      %v2066 = vcombine.low %v2057, %v2064
      %v2068 = vunpack.c.l.s4 1966171168
      %v2069 = vunpack.c.0.s8 %v2068
      %v2070 = vlaneseq
      %v2071 = vshrl.u32 %v2070, 7
      %v2072 = vsub.s32 %v2069, %v2071
      %v2073 = vrot.slane %v2065, %v2072
      %v2075 = vunpack.c.l.s4 1966171168
      %v2076 = vunpack.c.0.s8 %v2075
      %v2077 = vlaneseq
      %v2078 = vshrl.u32 %v2077, 7
      %v2079 = vsub.s32 %v2076, %v2078
      %v2080 = vrot.slane %v2066, %v2079
      %v2081 = vcombine.low %v2073, %v2080
      %v2082 = vcombine.low %v2023, %v2024
      %v2083 = vcombine.low %v2025, %v2026
      %v2084 = vcombine.low %v2027, %v2028
      %v2085 = vcombine.low %v2029, %v2030
      %v2087 = vunpack.c.l.s4 1966171168
      %v2088 = vunpack.c.0.s8 %v2087
      %v2089 = vlaneseq
      %v2090 = vshrl.u32 %v2089, 7
      %v2091 = vsub.s32 %v2088, %v2090
      %v2092 = vrot.slane %v2082, %v2091
      %v2094 = vunpack.c.l.s4 1966171168
      %v2095 = vunpack.c.0.s8 %v2094
      %v2096 = vlaneseq
      %v2097 = vshrl.u32 %v2096, 7
      %v2098 = vsub.s32 %v2095, %v2097
      %v2099 = vrot.slane %v2083, %v2098
      %v2101 = vunpack.c.l.s4 1966171168
      %v2102 = vunpack.c.0.s8 %v2101
      %v2103 = vlaneseq
      %v2104 = vshrl.u32 %v2103, 7
      %v2105 = vsub.s32 %v2102, %v2104
      %v2106 = vrot.slane %v2084, %v2105
      %v2108 = vunpack.c.l.s4 1966171168
      %v2109 = vunpack.c.0.s8 %v2108
      %v2110 = vlaneseq
      %v2111 = vshrl.u32 %v2110, 7
      %v2112 = vsub.s32 %v2109, %v2111
      %v2113 = vrot.slane %v2085, %v2112
      %v2114 = vcombine.low %v2092, %v2099
      %v2115 = vcombine.low %v2106, %v2113
      %v2117 = vunpack.c.l.s4 1966171168
      %v2118 = vunpack.c.0.s8 %v2117
      %v2119 = vlaneseq
      %v2120 = vshrl.u32 %v2119, 7
      %v2121 = vsub.s32 %v2118, %v2120
      %v2122 = vrot.slane %v2114, %v2121
      %v2124 = vunpack.c.l.s4 1966171168
      %v2125 = vunpack.c.0.s8 %v2124
      %v2126 = vlaneseq
      %v2127 = vshrl.u32 %v2126, 7
      %v2128 = vsub.s32 %v2125, %v2127
      %v2129 = vrot.slane %v2115, %v2128
      %v2130 = vcombine.low %v2122, %v2129
      %v2131 = vcombine.low %v2031, %v2032
      %v2133 = vunpack.c.l.s4 1966171168
      %v2134 = vunpack.c.0.s8 %v2133
      %v2135 = vlaneseq
      %v2136 = vshrl.u32 %v2135, 7
      %v2137 = vsub.s32 %v2134, %v2136
      %v2138 = vrot.slane %v2131, %v2137
      %v2140 = vunpack.c.l.s4 1966171168
      %v2141 = vunpack.c.0.s8 %v2140
      %v2142 = vlaneseq
      %v2143 = vshrl.u32 %v2142, 7
      %v2144 = vsub.s32 %v2141, %v2143
      %v2145 = vrot.slane %v2138, %v2144
      %v2147 = vsel %vm667, %v2081, 0
      %v2150 = vsel %vm667, %v2130, 0
      %v2153 = vsel %vm667, %v2145, 0
      %v2156 = vsel %vm677, %v339, 0
      %2158 = vmatprep.subr.bf16.mxu0 0
      %2159 = vmatpush1.bf16.msra.mxu0 %v2156
      %2160 = vmatprep.subr.bf16.mxu0 0
      %2161 = vmatpush1.bf16.msra.mxu0 0
      %2162 = vmatprep.subr.bf16.mxu0 0
      %2163 = vmatpush1.bf16.msra.mxu0 0
      %2164 = vmatprep.subr.bf16.mxu0 0
      %2165 = vmatpush1.bf16.msra.mxu0 0
      %2166 = vmatprep.subr.bf16.mxu0 0
      %2167 = vmatpush1.bf16.msra.mxu0 0
      %2168 = vmatprep.subr.bf16.mxu0 0
      %2169 = vmatpush1.bf16.msra.mxu0 0
      %2170 = vmatprep.subr.bf16.mxu0 0
      %2171 = vmatpush1.bf16.msra.mxu0 0
      %2172 = vmatprep.subr.bf16.mxu0 0
      %2173 = vmatpush1.bf16.msra.mxu0 0
      %2174 = vmatprep.subr.bf16.mxu0 0
      %2175 = vmatpush1.bf16.msra.mxu0 0
      %2176 = vmatprep.subr.bf16.mxu0 0
      %2177 = vmatpush1.bf16.msra.mxu0 0
      %2178 = vmatprep.subr.bf16.mxu0 0
      %2179 = vmatpush1.bf16.msra.mxu0 0
      %2180 = vmatprep.subr.bf16.mxu0 0
      %2181 = vmatpush1.bf16.msra.mxu0 0
      %2182 = vmatprep.subr.bf16.mxu0 0
      %2183 = vmatpush1.bf16.msra.mxu0 0
      %2184 = vmatprep.subr.bf16.mxu0 0
      %2185 = vmatpush1.bf16.msra.mxu0 0
      %2186 = vmatprep.subr.bf16.mxu0 0
      %2187 = vmatpush1.bf16.msra.mxu0 0
      %2188 = vmatprep.subr.bf16.mxu0 0
      %2189 = vmatpush1.bf16.msra.mxu0 0
      %2190 = vmatprep.mubr.bf16.mxu0 0
      %2191 = vmatmul.mubr.bf16.gmra.mrb[0].mxu0 %v2147
      %v2192 = vpop.f32.mrb[0].mxu0
      %v2193 = vadd.f32 0.0, %v2192
      %v2194 = vpop.f32.mrb[0].mxu0
      %v2195 = vpop.f32.mrb[0].mxu0
      %v2196 = vadd.f32 0.0, %v2195
      %v2197 = vpop.f32.mrb[0].mxu0
      %2198 = vmatprep.mubr.bf16.mxu0 0
      %2199 = vmatmul.mubr.bf16.gmra.mrb[0].mxu0 %v2150
      %v2200 = vpop.f32.mrb[0].mxu0
      %v2201 = vadd.f32 0.0, %v2200
      %v2202 = vpop.f32.mrb[0].mxu0
      %v2203 = vpop.f32.mrb[0].mxu0
      %v2204 = vadd.f32 0.0, %v2203
      %v2205 = vpop.f32.mrb[0].mxu0
      %2206 = vmatprep.mubr.bf16.mxu0 0
      %2207 = vmatmul.mubr.bf16.gmra.mrb[0].mxu0 %v2153
      %v2208 = vpop.f32.mrb[0].mxu0
      %v2209 = vadd.f32 0.0, %v2208
      %v2210 = vpop.f32.mrb[0].mxu0
      %v2211 = vpop.f32.mrb[0].mxu0
      %v2212 = vpop.f32.mrb[0].mxu0
      %2213 = vdwg.mxu0
      %v2219 = vcombine.high %v2193, %v2193
      %v2221 = vunpack.c.l.s4 1966171168
      %v2222 = vunpack.c.0.s8 %v2221
      %v2223 = vlaneseq
      %v2224 = vshrl.u32 %v2223, 7
      %v2225 = vsub.s32 %v2222, %v2224
      %v2226 = vrot.slane %v2193, %v2225
      %v2228 = vunpack.c.l.s4 1966171168
      %v2229 = vunpack.c.0.s8 %v2228
      %v2230 = vlaneseq
      %v2231 = vshrl.u32 %v2230, 7
      %v2232 = vsub.s32 %v2229, %v2231
      %v2233 = vrot.slane %v2219, %v2232
      %v2234 = vcombine.high %v2226, %v2226
      %v2235 = vcombine.high %v2233, %v2233
      %v2237 = vunpack.c.l.s4 1966171168
      %v2238 = vunpack.c.0.s8 %v2237
      %v2239 = vlaneseq
      %v2240 = vshrl.u32 %v2239, 7
      %v2241 = vsub.s32 %v2238, %v2240
      %v2242 = vrot.slane %v2226, %v2241
      %v2244 = vunpack.c.l.s4 1966171168
      %v2245 = vunpack.c.0.s8 %v2244
      %v2246 = vlaneseq
      %v2247 = vshrl.u32 %v2246, 7
      %v2248 = vsub.s32 %v2245, %v2247
      %v2249 = vrot.slane %v2233, %v2248
      %v2251 = vunpack.c.l.s4 1966171168
      %v2252 = vunpack.c.0.s8 %v2251
      %v2253 = vlaneseq
      %v2254 = vshrl.u32 %v2253, 7
      %v2255 = vsub.s32 %v2252, %v2254
      %v2256 = vrot.slane %v2234, %v2255
      %v2258 = vunpack.c.l.s4 1966171168
      %v2259 = vunpack.c.0.s8 %v2258
      %v2260 = vlaneseq
      %v2261 = vshrl.u32 %v2260, 7
      %v2262 = vsub.s32 %v2259, %v2261
      %v2263 = vrot.slane %v2235, %v2262
      %v2264 = vcombine.high %v2242, %v2242
      %v2265 = vcombine.high %v2249, %v2249
      %v2266 = vcombine.high %v2256, %v2256
      %v2267 = vcombine.high %v2263, %v2263
      %v2268 = vcombine.high %v2196, %v2196
      %v2270 = vunpack.c.l.s4 1966171168
      %v2271 = vunpack.c.0.s8 %v2270
      %v2272 = vlaneseq
      %v2273 = vshrl.u32 %v2272, 7
      %v2274 = vsub.s32 %v2271, %v2273
      %v2275 = vrot.slane %v2196, %v2274
      %v2277 = vunpack.c.l.s4 1966171168
      %v2278 = vunpack.c.0.s8 %v2277
      %v2279 = vlaneseq
      %v2280 = vshrl.u32 %v2279, 7
      %v2281 = vsub.s32 %v2278, %v2280
      %v2282 = vrot.slane %v2268, %v2281
      %v2283 = vcombine.high %v2275, %v2275
      %v2284 = vcombine.high %v2282, %v2282
      %v2286 = vunpack.c.l.s4 1966171168
      %v2287 = vunpack.c.0.s8 %v2286
      %v2288 = vlaneseq
      %v2289 = vshrl.u32 %v2288, 7
      %v2290 = vsub.s32 %v2287, %v2289
      %v2291 = vrot.slane %v2275, %v2290
      %v2293 = vunpack.c.l.s4 1966171168
      %v2294 = vunpack.c.0.s8 %v2293
      %v2295 = vlaneseq
      %v2296 = vshrl.u32 %v2295, 7
      %v2297 = vsub.s32 %v2294, %v2296
      %v2298 = vrot.slane %v2282, %v2297
      %v2300 = vunpack.c.l.s4 1966171168
      %v2301 = vunpack.c.0.s8 %v2300
      %v2302 = vlaneseq
      %v2303 = vshrl.u32 %v2302, 7
      %v2304 = vsub.s32 %v2301, %v2303
      %v2305 = vrot.slane %v2283, %v2304
      %v2307 = vunpack.c.l.s4 1966171168
      %v2308 = vunpack.c.0.s8 %v2307
      %v2309 = vlaneseq
      %v2310 = vshrl.u32 %v2309, 7
      %v2311 = vsub.s32 %v2308, %v2310
      %v2312 = vrot.slane %v2284, %v2311
      %v2313 = vcombine.high %v2291, %v2291
      %v2314 = vcombine.high %v2298, %v2298
      %v2315 = vcombine.high %v2305, %v2305
      %v2316 = vcombine.high %v2312, %v2312
      %v2317 = vcombine.high %v2201, %v2201
      %v2319 = vunpack.c.l.s4 1966171168
      %v2320 = vunpack.c.0.s8 %v2319
      %v2321 = vlaneseq
      %v2322 = vshrl.u32 %v2321, 7
      %v2323 = vsub.s32 %v2320, %v2322
      %v2324 = vrot.slane %v2201, %v2323
      %v2326 = vunpack.c.l.s4 1966171168
      %v2327 = vunpack.c.0.s8 %v2326
      %v2328 = vlaneseq
      %v2329 = vshrl.u32 %v2328, 7
      %v2330 = vsub.s32 %v2327, %v2329
      %v2331 = vrot.slane %v2317, %v2330
      %v2332 = vcombine.high %v2324, %v2324
      %v2333 = vcombine.high %v2331, %v2331
      %v2335 = vunpack.c.l.s4 1966171168
      %v2336 = vunpack.c.0.s8 %v2335
      %v2337 = vlaneseq
      %v2338 = vshrl.u32 %v2337, 7
      %v2339 = vsub.s32 %v2336, %v2338
      %v2340 = vrot.slane %v2324, %v2339
      %v2342 = vunpack.c.l.s4 1966171168
      %v2343 = vunpack.c.0.s8 %v2342
      %v2344 = vlaneseq
      %v2345 = vshrl.u32 %v2344, 7
      %v2346 = vsub.s32 %v2343, %v2345
      %v2347 = vrot.slane %v2331, %v2346
      %v2349 = vunpack.c.l.s4 1966171168
      %v2350 = vunpack.c.0.s8 %v2349
      %v2351 = vlaneseq
      %v2352 = vshrl.u32 %v2351, 7
      %v2353 = vsub.s32 %v2350, %v2352
      %v2354 = vrot.slane %v2332, %v2353
      %v2356 = vunpack.c.l.s4 1966171168
      %v2357 = vunpack.c.0.s8 %v2356
      %v2358 = vlaneseq
      %v2359 = vshrl.u32 %v2358, 7
      %v2360 = vsub.s32 %v2357, %v2359
      %v2361 = vrot.slane %v2333, %v2360
      %v2362 = vcombine.high %v2340, %v2340
      %v2363 = vcombine.high %v2347, %v2347
      %v2364 = vcombine.high %v2354, %v2354
      %v2365 = vcombine.high %v2361, %v2361
      %v2366 = vcombine.high %v2204, %v2204
      %v2368 = vunpack.c.l.s4 1966171168
      %v2369 = vunpack.c.0.s8 %v2368
      %v2370 = vlaneseq
      %v2371 = vshrl.u32 %v2370, 7
      %v2372 = vsub.s32 %v2369, %v2371
      %v2373 = vrot.slane %v2204, %v2372
      %v2375 = vunpack.c.l.s4 1966171168
      %v2376 = vunpack.c.0.s8 %v2375
      %v2377 = vlaneseq
      %v2378 = vshrl.u32 %v2377, 7
      %v2379 = vsub.s32 %v2376, %v2378
      %v2380 = vrot.slane %v2366, %v2379
      %v2381 = vcombine.high %v2373, %v2373
      %v2382 = vcombine.high %v2380, %v2380
      %v2384 = vunpack.c.l.s4 1966171168
      %v2385 = vunpack.c.0.s8 %v2384
      %v2386 = vlaneseq
      %v2387 = vshrl.u32 %v2386, 7
      %v2388 = vsub.s32 %v2385, %v2387
      %v2389 = vrot.slane %v2373, %v2388
      %v2391 = vunpack.c.l.s4 1966171168
      %v2392 = vunpack.c.0.s8 %v2391
      %v2393 = vlaneseq
      %v2394 = vshrl.u32 %v2393, 7
      %v2395 = vsub.s32 %v2392, %v2394
      %v2396 = vrot.slane %v2380, %v2395
      %v2398 = vunpack.c.l.s4 1966171168
      %v2399 = vunpack.c.0.s8 %v2398
      %v2400 = vlaneseq
      %v2401 = vshrl.u32 %v2400, 7
      %v2402 = vsub.s32 %v2399, %v2401
      %v2403 = vrot.slane %v2381, %v2402
      %v2405 = vunpack.c.l.s4 1966171168
      %v2406 = vunpack.c.0.s8 %v2405
      %v2407 = vlaneseq
      %v2408 = vshrl.u32 %v2407, 7
      %v2409 = vsub.s32 %v2406, %v2408
      %v2410 = vrot.slane %v2382, %v2409
      %v2411 = vcombine.high %v2389, %v2389
      %v2412 = vcombine.high %v2396, %v2396
      %v2413 = vcombine.high %v2403, %v2403
      %v2414 = vcombine.high %v2410, %v2410
      %v2416 = vunpack.c.l.s4 1966171168
      %v2417 = vunpack.c.0.s8 %v2416
      %v2418 = vlaneseq
      %v2419 = vshrl.u32 %v2418, 7
      %v2420 = vsub.s32 %v2417, %v2419
      %v2421 = vrot.slane %v2209, %v2420
      %v2422 = vcombine.high %v2421, %v2421
      %v2424 = vunpack.c.l.s4 1966171168
      %v2425 = vunpack.c.0.s8 %v2424
      %v2426 = vlaneseq
      %v2427 = vshrl.u32 %v2426, 7
      %v2428 = vsub.s32 %v2425, %v2427
      %v2429 = vrot.slane %v2421, %v2428
      %v2431 = vunpack.c.l.s4 1966171168
      %v2432 = vunpack.c.0.s8 %v2431
      %v2433 = vlaneseq
      %v2434 = vshrl.u32 %v2433, 7
      %v2435 = vsub.s32 %v2432, %v2434
      %v2436 = vrot.slane %v2422, %v2435
      %v2437 = vcombine.high %v2429, %v2429
      %v2438 = vcombine.high %v2436, %v2436
      %v2471 = vadd.f32 %v1934, %v2242
      %v2472 = vadd.f32 %v1935, %v2256
      %v2473 = vadd.f32 %v1936, %v2264
      %v2474 = vadd.f32 %v1937, %v2266
      %v2475 = vadd.f32 %v1938, %v2249
      %v2476 = vadd.f32 %v1939, %v2263
      %v2477 = vadd.f32 %v1940, %v2265
      %v2478 = vadd.f32 %v1941, %v2267
      %v2479 = vadd.f32 %v1942, %v2305
      %v2480 = vadd.f32 %v1943, %v2313
      %v2481 = vadd.f32 %v1944, %v2315
      %v2482 = vadd.f32 %v1945, %v2298
      %v2483 = vadd.f32 %v1946, %v2312
      %v2484 = vadd.f32 %v1947, %v2314
      %v2485 = vadd.f32 %v1948, %v2316
      %v2486 = vadd.f32 %v1949, %v2340
      %v2487 = vadd.f32 %v1950, %v2362
      %v2488 = vadd.f32 %v1951, %v2364
      %v2489 = vadd.f32 %v1952, %v2347
      %v2490 = vadd.f32 %v1953, %v2361
      %v2491 = vadd.f32 %v1954, %v2363
      %v2492 = vadd.f32 %v1955, %v2365
      %v2493 = vadd.f32 %v1956, %v2389
      %v2494 = vadd.f32 %v1957, %v2403
      %v2495 = vadd.f32 %v1958, %v2413
      %v2496 = vadd.f32 %v1959, %v2396
      %v2497 = vadd.f32 %v1960, %v2410
      %v2498 = vadd.f32 %v1961, %v2412
      %v2499 = vadd.f32 %v1962, %v2414
      %v2500 = vadd.f32 %v1963, %v2429
      %v2501 = vadd.f32 %v1964, %v2436
      %v2502 = vadd.f32 %v1965, %v2437
      %2503 = vrot.lane.b32.xlu0 %v2256, 112
      %v2504 = vpop.permute.xlu0 %2503
      %2505 = vrot.lane.b32.xlu0 %v2264, 112
      %v2506 = vpop.permute.xlu0 %2505
      %2507 = vrot.lane.b32.xlu0 %v2266, 112
      %v2508 = vpop.permute.xlu0 %2507
      %2509 = vrot.lane.b32.xlu0 %v2249, 112
      %v2510 = vpop.permute.xlu0 %2509
      %2511 = vrot.lane.b32.xlu0 %v2263, 112
      %v2512 = vpop.permute.xlu0 %2511
      %2513 = vrot.lane.b32.xlu0 %v2265, 112
      %v2514 = vpop.permute.xlu0 %2513
      %2515 = vrot.lane.b32.xlu0 %v2267, 112
      %v2516 = vpop.permute.xlu0 %2515
      %2517 = vrot.lane.b32.xlu0 %v2291, 112
      %v2518 = vpop.permute.xlu0 %2517
      %2519 = vrot.lane.b32.xlu0 %v2313, 112
      %v2520 = vpop.permute.xlu0 %2519
      %2521 = vrot.lane.b32.xlu0 %v2315, 112
      %v2522 = vpop.permute.xlu0 %2521
      %2523 = vrot.lane.b32.xlu0 %v2298, 112
      %v2524 = vpop.permute.xlu0 %2523
      %2525 = vrot.lane.b32.xlu0 %v2312, 112
      %v2526 = vpop.permute.xlu0 %2525
      %2527 = vrot.lane.b32.xlu0 %v2314, 112
      %v2528 = vpop.permute.xlu0 %2527
      %2529 = vrot.lane.b32.xlu0 %v2316, 112
      %v2530 = vpop.permute.xlu0 %2529
      %2531 = vrot.lane.b32.xlu0 %v2340, 112
      %v2532 = vpop.permute.xlu0 %2531
      %2533 = vrot.lane.b32.xlu0 %v2354, 112
      %v2534 = vpop.permute.xlu0 %2533
      %2535 = vrot.lane.b32.xlu0 %v2364, 112
      %v2536 = vpop.permute.xlu0 %2535
      %2537 = vrot.lane.b32.xlu0 %v2347, 112
      %v2538 = vpop.permute.xlu0 %2537
      %2539 = vrot.lane.b32.xlu0 %v2361, 112
      %v2540 = vpop.permute.xlu0 %2539
      %2541 = vrot.lane.b32.xlu0 %v2363, 112
      %v2542 = vpop.permute.xlu0 %2541
      %2543 = vrot.lane.b32.xlu0 %v2365, 112
      %v2544 = vpop.permute.xlu0 %2543
      %2545 = vrot.lane.b32.xlu0 %v2389, 112
      %v2546 = vpop.permute.xlu0 %2545
      %2547 = vrot.lane.b32.xlu0 %v2403, 112
      %v2548 = vpop.permute.xlu0 %2547
      %2549 = vrot.lane.b32.xlu0 %v2411, 112
      %v2550 = vpop.permute.xlu0 %2549
      %2551 = vrot.lane.b32.xlu0 %v2396, 112
      %v2552 = vpop.permute.xlu0 %2551
      %2553 = vrot.lane.b32.xlu0 %v2410, 112
      %v2554 = vpop.permute.xlu0 %2553
      %2555 = vrot.lane.b32.xlu0 %v2412, 112
      %v2556 = vpop.permute.xlu0 %2555
      %2557 = vrot.lane.b32.xlu0 %v2414, 112
      %v2558 = vpop.permute.xlu0 %2557
      %2559 = vrot.lane.b32.xlu0 %v2429, 112
      %v2560 = vpop.permute.xlu0 %2559
      %2561 = vrot.lane.b32.xlu0 %v2436, 112
      %v2562 = vpop.permute.xlu0 %2561
      %2563 = vrot.lane.b32.xlu0 %v2437, 112
      %v2564 = vpop.permute.xlu0 %2563
      %2565 = vrot.lane.b32.xlu0 %v2438, 112
      %v2566 = vpop.permute.xlu0 %2565
      %v2599 = vadd.f32 %v2471, %v2504
      %v2600 = vadd.f32 %v2472, %v2506
      %v2601 = vadd.f32 %v2473, %v2508
      %v2602 = vadd.f32 %v2474, %v2510
      %v2603 = vadd.f32 %v2475, %v2512
      %v2604 = vadd.f32 %v2476, %v2514
      %v2605 = vadd.f32 %v2477, %v2516
      %v2606 = vadd.f32 %v2478, %v2518
      %v2607 = vadd.f32 %v2479, %v2520
      %v2608 = vadd.f32 %v2480, %v2522
      %v2609 = vadd.f32 %v2481, %v2524
      %v2610 = vadd.f32 %v2482, %v2526
      %v2611 = vadd.f32 %v2483, %v2528
      %v2612 = vadd.f32 %v2484, %v2530
      %v2613 = vadd.f32 %v2485, %v2532
      %v2614 = vadd.f32 %v2486, %v2534
      %v2615 = vadd.f32 %v2487, %v2536
      %v2616 = vadd.f32 %v2488, %v2538
      %v2617 = vadd.f32 %v2489, %v2540
      %v2618 = vadd.f32 %v2490, %v2542
      %v2619 = vadd.f32 %v2491, %v2544
      %v2620 = vadd.f32 %v2492, %v2546
      %v2621 = vadd.f32 %v2493, %v2548
      %v2622 = vadd.f32 %v2494, %v2550
      %v2623 = vadd.f32 %v2495, %v2552
      %v2624 = vadd.f32 %v2496, %v2554
      %v2625 = vadd.f32 %v2497, %v2556
      %v2626 = vadd.f32 %v2498, %v2558
      %v2627 = vadd.f32 %v2499, %v2560
      %v2628 = vadd.f32 %v2500, %v2562
      %v2629 = vadd.f32 %v2501, %v2564
      %v2630 = vadd.f32 %v2502, %v2566
      %v2631 = vld [vmem:[%s3] sm:$0x1]
      %v2633 = vlaneseq
      %v2634 = vshrl.u32 %v2633, 7
      %v2635 = vsub.s32 0, %v2634
      %v2636 = vrot.slane %v2631, %v2635
      %v2637 = vcombine.high %v2636, %v2636
      %v2639 = vunpack.c.l.s4 1966171168
      %v2640 = vunpack.c.0.s8 %v2639
      %v2641 = vlaneseq
      %v2642 = vshrl.u32 %v2641, 7
      %v2643 = vsub.s32 %v2640, %v2642
      %v2644 = vrot.slane %v2636, %v2643
      %v2646 = vunpack.c.l.s4 1966171168
      %v2647 = vunpack.c.0.s8 %v2646
      %v2648 = vlaneseq
      %v2649 = vshrl.u32 %v2648, 7
      %v2650 = vsub.s32 %v2647, %v2649
      %v2651 = vrot.slane %v2637, %v2650
      %v2652 = vcombine.high %v2644, %v2644
      %v2653 = vcombine.high %v2651, %v2651
      %v2655 = vunpack.c.l.s4 1966171168
      %v2656 = vunpack.c.0.s8 %v2655
      %v2657 = vlaneseq
      %v2658 = vshrl.u32 %v2657, 7
      %v2659 = vsub.s32 %v2656, %v2658
      %v2660 = vrot.slane %v2644, %v2659
      %v2662 = vunpack.c.l.s4 1966171168
      %v2663 = vunpack.c.0.s8 %v2662
      %v2664 = vlaneseq
      %v2665 = vshrl.u32 %v2664, 7
      %v2666 = vsub.s32 %v2663, %v2665
      %v2667 = vrot.slane %v2651, %v2666
      %v2669 = vunpack.c.l.s4 1966171168
      %v2670 = vunpack.c.0.s8 %v2669
      %v2671 = vlaneseq
      %v2672 = vshrl.u32 %v2671, 7
      %v2673 = vsub.s32 %v2670, %v2672
      %v2674 = vrot.slane %v2652, %v2673
      %v2676 = vunpack.c.l.s4 1966171168
      %v2677 = vunpack.c.0.s8 %v2676
      %v2678 = vlaneseq
      %v2679 = vshrl.u32 %v2678, 7
      %v2680 = vsub.s32 %v2677, %v2679
      %v2681 = vrot.slane %v2653, %v2680
      %v2682 = vcombine.high %v2660, %v2660
      %v2683 = vcombine.high %v2667, %v2667
      %v2684 = vcombine.high %v2674, %v2674
      %v2685 = vcombine.high %v2681, %v2681
      %v2694 = vadd.f32 %v2599, %v2660
      %v2695 = vadd.f32 %v2600, %v2674
      %v2696 = vadd.f32 %v2601, %v2682
      %v2697 = vadd.f32 %v2602, %v2684
      %v2698 = vadd.f32 %v2603, %v2667
      %v2699 = vadd.f32 %v2604, %v2681
      %v2700 = vadd.f32 %v2605, %v2683
      %v2701 = vadd.f32 %v2606, %v2685
      %v2702 = vadd.f32 %v2607, %v2660
      %v2703 = vadd.f32 %v2608, %v2674
      %v2704 = vadd.f32 %v2609, %v2682
      %v2705 = vadd.f32 %v2610, %v2684
      %v2706 = vadd.f32 %v2611, %v2667
      %v2707 = vadd.f32 %v2612, %v2681
      %v2708 = vadd.f32 %v2613, %v2683
      %v2709 = vadd.f32 %v2614, %v2685
      %v2710 = vadd.f32 %v2615, %v2660
      %v2711 = vadd.f32 %v2616, %v2674
      %v2712 = vadd.f32 %v2617, %v2682
      %v2713 = vadd.f32 %v2618, %v2684
      %v2714 = vadd.f32 %v2619, %v2667
      %v2715 = vadd.f32 %v2620, %v2681
      %v2716 = vadd.f32 %v2621, %v2683
      %v2717 = vadd.f32 %v2622, %v2685
      %v2718 = vadd.f32 %v2623, %v2660
      %v2719 = vadd.f32 %v2624, %v2674
      %v2720 = vadd.f32 %v2625, %v2682
      %v2721 = vadd.f32 %v2626, %v2684
      %v2722 = vadd.f32 %v2627, %v2667
      %v2723 = vadd.f32 %v2628, %v2681
      %v2724 = vadd.f32 %v2629, %v2683
      %v2725 = vadd.f32 %v2630, %v2685
      %v2726 = vmul.f32 %v2694, 0.5
      %v2727 = vmul.f32 %v2695, 0.5
      %v2728 = vmul.f32 %v2696, 0.5
      %v2729 = vmul.f32 %v2697, 0.5
      %v2730 = vmul.f32 %v2698, 0.5
      %v2731 = vmul.f32 %v2699, 0.5
      %v2732 = vmul.f32 %v2700, 0.5
      %v2733 = vmul.f32 %v2701, 0.5
      %v2734 = vmul.f32 %v2702, 0.5
      %v2735 = vmul.f32 %v2703, 0.5
      %v2736 = vmul.f32 %v2704, 0.5
      %v2737 = vmul.f32 %v2705, 0.5
      %v2738 = vmul.f32 %v2706, 0.5
      %v2739 = vmul.f32 %v2707, 0.5
      %v2740 = vmul.f32 %v2708, 0.5
      %v2741 = vmul.f32 %v2709, 0.5
      %v2742 = vmul.f32 %v2710, 0.5
      %v2743 = vmul.f32 %v2711, 0.5
      %v2744 = vmul.f32 %v2712, 0.5
      %v2745 = vmul.f32 %v2713, 0.5
      %v2746 = vmul.f32 %v2714, 0.5
      %v2747 = vmul.f32 %v2715, 0.5
      %v2748 = vmul.f32 %v2716, 0.5
      %v2749 = vmul.f32 %v2717, 0.5
      %v2750 = vmul.f32 %v2718, 0.5
      %v2751 = vmul.f32 %v2719, 0.5
      %v2752 = vmul.f32 %v2720, 0.5
      %v2753 = vmul.f32 %v2721, 0.5
      %v2754 = vmul.f32 %v2722, 0.5
      %v2755 = vmul.f32 %v2723, 0.5
      %v2756 = vmul.f32 %v2724, 0.5
      %v2757 = vmul.f32 %v2725, 0.5
      %v2758 = vmul.f32 %v2694, 0.70710677
      %v2759 = vmul.f32 %v2695, 0.70710677
      %v2760 = vmul.f32 %v2696, 0.70710677
      %v2761 = vmul.f32 %v2697, 0.70710677
      %v2762 = vmul.f32 %v2698, 0.70710677
      %v2763 = vmul.f32 %v2699, 0.70710677
      %v2764 = vmul.f32 %v2700, 0.70710677
      %v2765 = vmul.f32 %v2701, 0.70710677
      %v2766 = vmul.f32 %v2702, 0.70710677
      %v2767 = vmul.f32 %v2703, 0.70710677
      %v2768 = vmul.f32 %v2704, 0.70710677
      %v2769 = vmul.f32 %v2705, 0.70710677
      %v2770 = vmul.f32 %v2706, 0.70710677
      %v2771 = vmul.f32 %v2707, 0.70710677
      %v2772 = vmul.f32 %v2708, 0.70710677
      %v2773 = vmul.f32 %v2709, 0.70710677
      %v2774 = vmul.f32 %v2710, 0.70710677
      %v2775 = vmul.f32 %v2711, 0.70710677
      %v2776 = vmul.f32 %v2712, 0.70710677
      %v2777 = vmul.f32 %v2713, 0.70710677
      %v2778 = vmul.f32 %v2714, 0.70710677
      %v2779 = vmul.f32 %v2715, 0.70710677
      %v2780 = vmul.f32 %v2716, 0.70710677
      %v2781 = vmul.f32 %v2717, 0.70710677
      %v2782 = vmul.f32 %v2718, 0.70710677
      %v2783 = vmul.f32 %v2719, 0.70710677
      %v2784 = vmul.f32 %v2720, 0.70710677
      %v2785 = vmul.f32 %v2721, 0.70710677
      %v2786 = vmul.f32 %v2722, 0.70710677
      %v2787 = vmul.f32 %v2723, 0.70710677
      %v2788 = vmul.f32 %v2724, 0.70710677
      %v2789 = vmul.f32 %v2725, 0.70710677
      %v2790 = verf.f32.pop %v2758
      %v2791 = verf.f32.pop %v2759
      %v2792 = verf.f32.pop %v2760
      %v2793 = verf.f32.pop %v2761
      %v2794 = verf.f32.pop %v2762
      %v2795 = verf.f32.pop %v2763
      %v2796 = verf.f32.pop %v2764
      %v2797 = verf.f32.pop %v2765
      %v2798 = verf.f32.pop %v2766
      %v2799 = verf.f32.pop %v2767
      %v2800 = verf.f32.pop %v2768
      %v2801 = verf.f32.pop %v2769
      %v2802 = verf.f32.pop %v2770
      %v2803 = verf.f32.pop %v2771
      %v2804 = verf.f32.pop %v2772
      %v2805 = verf.f32.pop %v2773
      %v2806 = verf.f32.pop %v2774
      %v2807 = verf.f32.pop %v2775
      %v2808 = verf.f32.pop %v2776
      %v2809 = verf.f32.pop %v2777
      %v2810 = verf.f32.pop %v2778
      %v2811 = verf.f32.pop %v2779
      %v2812 = verf.f32.pop %v2780
      %v2813 = verf.f32.pop %v2781
      %v2814 = verf.f32.pop %v2782
      %v2815 = verf.f32.pop %v2783
      %v2816 = verf.f32.pop %v2784
      %v2817 = verf.f32.pop %v2785
      %v2818 = verf.f32.pop %v2786
      %v2819 = verf.f32.pop %v2787
      %v2820 = verf.f32.pop %v2788
      %v2821 = verf.f32.pop %v2789
      %v2822 = vadd.f32 %v2790, 1.0
      %v2823 = vadd.f32 %v2791, 1.0
      %v2824 = vadd.f32 %v2792, 1.0
      %v2825 = vadd.f32 %v2793, 1.0
      %v2826 = vadd.f32 %v2794, 1.0
      %v2827 = vadd.f32 %v2795, 1.0
      %v2828 = vadd.f32 %v2796, 1.0
      %v2829 = vadd.f32 %v2797, 1.0
      %v2830 = vadd.f32 %v2798, 1.0
      %v2831 = vadd.f32 %v2799, 1.0
      %v2832 = vadd.f32 %v2800, 1.0
      %v2833 = vadd.f32 %v2801, 1.0
      %v2834 = vadd.f32 %v2802, 1.0
      %v2835 = vadd.f32 %v2803, 1.0
      %v2836 = vadd.f32 %v2804, 1.0
      %v2837 = vadd.f32 %v2805, 1.0
      %v2838 = vadd.f32 %v2806, 1.0
      %v2839 = vadd.f32 %v2807, 1.0
      %v2840 = vadd.f32 %v2808, 1.0
      %v2841 = vadd.f32 %v2809, 1.0
      %v2842 = vadd.f32 %v2810, 1.0
      %v2843 = vadd.f32 %v2811, 1.0
      %v2844 = vadd.f32 %v2812, 1.0
      %v2845 = vadd.f32 %v2813, 1.0
      %v2846 = vadd.f32 %v2814, 1.0
      %v2847 = vadd.f32 %v2815, 1.0
      %v2848 = vadd.f32 %v2816, 1.0
      %v2849 = vadd.f32 %v2817, 1.0
      %v2850 = vadd.f32 %v2818, 1.0
      %v2851 = vadd.f32 %v2819, 1.0
      %v2852 = vadd.f32 %v2820, 1.0
      %v2853 = vadd.f32 %v2821, 1.0
      %v2854 = vmul.f32 %v2726, %v2822
      %v2855 = vmul.f32 %v2727, %v2823
      %v2856 = vmul.f32 %v2728, %v2824
      %v2857 = vmul.f32 %v2729, %v2825
      %v2858 = vmul.f32 %v2730, %v2826
      %v2859 = vmul.f32 %v2731, %v2827
      %v2860 = vmul.f32 %v2732, %v2828
      %v2861 = vmul.f32 %v2733, %v2829
      %v2862 = vmul.f32 %v2734, %v2830
      %v2863 = vmul.f32 %v2735, %v2831
      %v2864 = vmul.f32 %v2736, %v2832
      %v2865 = vmul.f32 %v2737, %v2833
      %v2866 = vmul.f32 %v2738, %v2834
      %v2867 = vmul.f32 %v2739, %v2835
      %v2868 = vmul.f32 %v2740, %v2836
      %v2869 = vmul.f32 %v2741, %v2837
      %v2870 = vmul.f32 %v2742, %v2838
      %v2871 = vmul.f32 %v2743, %v2839
      %v2872 = vmul.f32 %v2744, %v2840
      %v2873 = vmul.f32 %v2745, %v2841
      %v2874 = vmul.f32 %v2746, %v2842
      %v2875 = vmul.f32 %v2747, %v2843
      %v2876 = vmul.f32 %v2748, %v2844
      %v2877 = vmul.f32 %v2749, %v2845
      %v2878 = vmul.f32 %v2750, %v2846
      %v2879 = vmul.f32 %v2751, %v2847
      %v2880 = vmul.f32 %v2752, %v2848
      %v2881 = vmul.f32 %v2753, %v2849
      %v2882 = vmul.f32 %v2754, %v2850
      %v2883 = vmul.f32 %v2755, %v2851
      %v2884 = vmul.f32 %v2756, %v2852
      %v2885 = vmul.f32 %v2757, %v2853
      %v2918 = vcombine.low %v2854, %v2855
      %v2919 = vcombine.low %v2856, %v2857
      %v2920 = vcombine.low %v2858, %v2859
      %v2921 = vcombine.low %v2860, %v2861
      %v2923 = vunpack.c.l.s4 1966171168
      %v2924 = vunpack.c.0.s8 %v2923
      %v2925 = vlaneseq
      %v2926 = vshrl.u32 %v2925, 7
      %v2927 = vsub.s32 %v2924, %v2926
      %v2928 = vrot.slane %v2918, %v2927
      %v2930 = vunpack.c.l.s4 1966171168
      %v2931 = vunpack.c.0.s8 %v2930
      %v2932 = vlaneseq
      %v2933 = vshrl.u32 %v2932, 7
      %v2934 = vsub.s32 %v2931, %v2933
      %v2935 = vrot.slane %v2919, %v2934
      %v2937 = vunpack.c.l.s4 1966171168
      %v2938 = vunpack.c.0.s8 %v2937
      %v2939 = vlaneseq
      %v2940 = vshrl.u32 %v2939, 7
      %v2941 = vsub.s32 %v2938, %v2940
      %v2942 = vrot.slane %v2920, %v2941
      %v2944 = vunpack.c.l.s4 1966171168
      %v2945 = vunpack.c.0.s8 %v2944
      %v2946 = vlaneseq
      %v2947 = vshrl.u32 %v2946, 7
      %v2948 = vsub.s32 %v2945, %v2947
      %v2949 = vrot.slane %v2921, %v2948
      %v2950 = vcombine.low %v2928, %v2935
      %v2951 = vcombine.low %v2942, %v2949
      %v2953 = vunpack.c.l.s4 1966171168
      %v2954 = vunpack.c.0.s8 %v2953
      %v2955 = vlaneseq
      %v2956 = vshrl.u32 %v2955, 7
      %v2957 = vsub.s32 %v2954, %v2956
      %v2958 = vrot.slane %v2950, %v2957
      %v2960 = vunpack.c.l.s4 1966171168
      %v2961 = vunpack.c.0.s8 %v2960
      %v2962 = vlaneseq
      %v2963 = vshrl.u32 %v2962, 7
      %v2964 = vsub.s32 %v2961, %v2963
      %v2965 = vrot.slane %v2951, %v2964
      %v2966 = vcombine.low %v2958, %v2965
      %v2967 = vcombine.low %v2862, %v2863
      %v2968 = vcombine.low %v2864, %v2865
      %v2969 = vcombine.low %v2866, %v2867
      %v2970 = vcombine.low %v2868, %v2869
      %v2972 = vunpack.c.l.s4 1966171168
      %v2973 = vunpack.c.0.s8 %v2972
      %v2974 = vlaneseq
      %v2975 = vshrl.u32 %v2974, 7
      %v2976 = vsub.s32 %v2973, %v2975
      %v2977 = vrot.slane %v2967, %v2976
      %v2979 = vunpack.c.l.s4 1966171168
      %v2980 = vunpack.c.0.s8 %v2979
      %v2981 = vlaneseq
      %v2982 = vshrl.u32 %v2981, 7
      %v2983 = vsub.s32 %v2980, %v2982
      %v2984 = vrot.slane %v2968, %v2983
      %v2986 = vunpack.c.l.s4 1966171168
      %v2987 = vunpack.c.0.s8 %v2986
      %v2988 = vlaneseq
      %v2989 = vshrl.u32 %v2988, 7
      %v2990 = vsub.s32 %v2987, %v2989
      %v2991 = vrot.slane %v2969, %v2990
      %v2993 = vunpack.c.l.s4 1966171168
      %v2994 = vunpack.c.0.s8 %v2993
      %v2995 = vlaneseq
      %v2996 = vshrl.u32 %v2995, 7
      %v2997 = vsub.s32 %v2994, %v2996
      %v2998 = vrot.slane %v2970, %v2997
      %v2999 = vcombine.low %v2977, %v2984
      %v3000 = vcombine.low %v2991, %v2998
      %v3002 = vunpack.c.l.s4 1966171168
      %v3003 = vunpack.c.0.s8 %v3002
      %v3004 = vlaneseq
      %v3005 = vshrl.u32 %v3004, 7
      %v3006 = vsub.s32 %v3003, %v3005
      %v3007 = vrot.slane %v2999, %v3006
      %v3009 = vunpack.c.l.s4 1966171168
      %v3010 = vunpack.c.0.s8 %v3009
      %v3011 = vlaneseq
      %v3012 = vshrl.u32 %v3011, 7
      %v3013 = vsub.s32 %v3010, %v3012
      %v3014 = vrot.slane %v3000, %v3013
      %v3015 = vcombine.low %v3007, %v3014
      %v3016 = vcombine.low %v2870, %v2871
      %v3017 = vcombine.low %v2872, %v2873
      %v3018 = vcombine.low %v2874, %v2875
      %v3019 = vcombine.low %v2876, %v2877
      %v3021 = vunpack.c.l.s4 1966171168
      %v3022 = vunpack.c.0.s8 %v3021
      %v3023 = vlaneseq
      %v3024 = vshrl.u32 %v3023, 7
      %v3025 = vsub.s32 %v3022, %v3024
      %v3026 = vrot.slane %v3016, %v3025
      %v3028 = vunpack.c.l.s4 1966171168
      %v3029 = vunpack.c.0.s8 %v3028
      %v3030 = vlaneseq
      %v3031 = vshrl.u32 %v3030, 7
      %v3032 = vsub.s32 %v3029, %v3031
      %v3033 = vrot.slane %v3017, %v3032
      %v3035 = vunpack.c.l.s4 1966171168
      %v3036 = vunpack.c.0.s8 %v3035
      %v3037 = vlaneseq
      %v3038 = vshrl.u32 %v3037, 7
      %v3039 = vsub.s32 %v3036, %v3038
      %v3040 = vrot.slane %v3018, %v3039
      %v3042 = vunpack.c.l.s4 1966171168
      %v3043 = vunpack.c.0.s8 %v3042
      %v3044 = vlaneseq
      %v3045 = vshrl.u32 %v3044, 7
      %v3046 = vsub.s32 %v3043, %v3045
      %v3047 = vrot.slane %v3019, %v3046
      %v3048 = vcombine.low %v3026, %v3033
      %v3049 = vcombine.low %v3040, %v3047
      %v3051 = vunpack.c.l.s4 1966171168
      %v3052 = vunpack.c.0.s8 %v3051
      %v3053 = vlaneseq
      %v3054 = vshrl.u32 %v3053, 7
      %v3055 = vsub.s32 %v3052, %v3054
      %v3056 = vrot.slane %v3048, %v3055
      %v3058 = vunpack.c.l.s4 1966171168
      %v3059 = vunpack.c.0.s8 %v3058
      %v3060 = vlaneseq
      %v3061 = vshrl.u32 %v3060, 7
      %v3062 = vsub.s32 %v3059, %v3061
      %v3063 = vrot.slane %v3049, %v3062
      %v3064 = vcombine.low %v3056, %v3063
      %v3065 = vcombine.low %v2878, %v2879
      %v3066 = vcombine.low %v2880, %v2881
      %v3067 = vcombine.low %v2882, %v2883
      %v3068 = vcombine.low %v2884, %v2885
      %v3070 = vunpack.c.l.s4 1966171168
      %v3071 = vunpack.c.0.s8 %v3070
      %v3072 = vlaneseq
      %v3073 = vshrl.u32 %v3072, 7
      %v3074 = vsub.s32 %v3071, %v3073
      %v3075 = vrot.slane %v3065, %v3074
      %v3077 = vunpack.c.l.s4 1966171168
      %v3078 = vunpack.c.0.s8 %v3077
      %v3079 = vlaneseq
      %v3080 = vshrl.u32 %v3079, 7
      %v3081 = vsub.s32 %v3078, %v3080
      %v3082 = vrot.slane %v3066, %v3081
      %v3084 = vunpack.c.l.s4 1966171168
      %v3085 = vunpack.c.0.s8 %v3084
      %v3086 = vlaneseq
      %v3087 = vshrl.u32 %v3086, 7
      %v3088 = vsub.s32 %v3085, %v3087
      %v3089 = vrot.slane %v3067, %v3088
      %v3091 = vunpack.c.l.s4 1966171168
      %v3092 = vunpack.c.0.s8 %v3091
      %v3093 = vlaneseq
      %v3094 = vshrl.u32 %v3093, 7
      %v3095 = vsub.s32 %v3092, %v3094
      %v3096 = vrot.slane %v3068, %v3095
      %v3097 = vcombine.low %v3075, %v3082
      %v3098 = vcombine.low %v3089, %v3096
      %v3100 = vunpack.c.l.s4 1966171168
      %v3101 = vunpack.c.0.s8 %v3100
      %v3102 = vlaneseq
      %v3103 = vshrl.u32 %v3102, 7
      %v3104 = vsub.s32 %v3101, %v3103
      %v3105 = vrot.slane %v3097, %v3104
      %v3107 = vunpack.c.l.s4 1966171168
      %v3108 = vunpack.c.0.s8 %v3107
      %v3109 = vlaneseq
      %v3110 = vshrl.u32 %v3109, 7
      %v3111 = vsub.s32 %v3108, %v3110
      %v3112 = vrot.slane %v3098, %v3111
      %v3113 = vcombine.low %v3105, %v3112
      %v3118 = vpack.c.bf16 %v3015, %v2966
      %v3119 = vpack.c.bf16 %v3113, %v3064
      %v3122 = vunpack.c.l.b16 %v3118
      %v3123 = vunpack.c.h.b16 %v3118
      %v3124 = vunpack.c.l.b16 %v3119
      %v3125 = vunpack.c.h.b16 %v3119
      %v3126 = vpack.c.b16 %v3122, %v3122
      %v3127 = vpack.c.b16 %v3123, %v3123
      %v3128 = vpack.c.b16 %v3124, %v3124
      %v3129 = vpack.c.b16 %v3125, %v3125
      %vm3134 = vcmask 125952
      %3135 = vst.msk [vmem:[%s316] sm:$0xf] %vm3134, %v3126
      %3136 = vst.msk [vmem:[%s316 + $0x4] sm:$0xf] %vm3134, %v3127
      %3137 = vst.msk [vmem:[%s316 + $0x8] sm:$0xf] %vm3134, %v3128
      %3138 = vst.msk [vmem:[%s316 + $0xc] sm:$0xf] %vm3134, %v3129
      %s3139 = smul.u32 4, %s20
      %p3140 = scmp.lt.s32.totalorder %s19, 1
      %s3141 = scalar_select %p3140, %s19, 1
      %p3142 = scmp.lt.s32.totalorder %s3139, 7
      %s3143 = scalar_select %p3142, %s3139, 7
      %s3144 = smul.addr %s3141, 8
      %s3145 = sadd.s32 %s3143, %s3144
      %s3146 = smul.addr %s3145, 4
      %s3147 = scalar_lea.vmem %s4, %s3146
      // Predicated region
      $region37: #{patch_embed_forward.2} parent=35 // pred_check
        %p3148 = pneg %p149
      $region38: #{patch_embed_forward.2} parent=35 // pred_check_branch
        %3150 = sbr.rel (%p3148) target = $region40
      $region39: #{patch_embed_forward.2} parent=35 // pred_region
        %s3151 = smul.u32 4, %s20
      $region40: #{patch_embed_forward.2} parent=35 // pred_fallthru
        _
    $region36: #{patch_embed_forward.2} parent=5 // pred_fallthru
      _
    %p3152 = scmp.le.s32.totalorder 2, %s10
    // Predicated region
    $region41: #{patch_embed_forward.2} parent=5 // pred_check
      %p3153 = pneg %p3152
    $region42: #{patch_embed_forward.2} parent=5 // pred_check_branch
      %3155 = sbr.rel (%p3153) target = $region44
    $region43: #{patch_embed_forward.2} parent=5 // pred_region
      %s3156 = ssub.s32 %s10, 2
      // Predicated region
      $region45: #{patch_embed_forward.2} parent=43 // pred_check
        %p3157 = pneg %p155
      $region46: #{patch_embed_forward.2} parent=43 // pred_check_branch
        %3159 = sbr.rel (%p3157) target = $region48
      $region47: #{patch_embed_forward.2} parent=43 // pred_region
        %s3160 = smul.u32 4, %s22
        %p3161 = scmp.lt.s32.totalorder %s21, 1
        %s3162 = scalar_select %p3161, %s21, 1
        %p3163 = scmp.lt.s32.totalorder %s3160, 7
        %s3164 = scalar_select %p3163, %s3160, 7
        %s3165 = smul.addr %s3162, 8
        %s3166 = sadd.s32 %s3164, %s3165
        %s3167 = smul.addr %s3166, 4
        %s3168 = scalar_lea.vmem %s4, %s3167
      $region48: #{patch_embed_forward.2} parent=43 // pred_fallthru
        _
    $region44: #{patch_embed_forward.2} parent=5 // pred_fallthru
      _
  $region6: #{patch_embed_forward.2} parent=0 // loop_footer
    %s14 = sadd.s32 1, %s10
  $region7: #{patch_embed_forward.2} parent=0 // loop_footer_branch
    %9 = sbr.rel target = $region3
  $region8: #{patch_embed_forward.2} parent=0 // loop_exit
    _

</llo_original>
